<compile_context>
chip_gen: v5e
topology: v5e:2x2
jax: 0.10.0
libtpu: 0.0.40
codegen_flags: <defaults>
</compile_context>

<pallas_src>
import functools

import jax
import jax.numpy as jnp
from jax.experimental import pallas as pl
from jax.experimental.pallas import tpu as pltpu

_EPS = 1e-6


# ------------------------------ small helpers ------------------------------

def _round_up(x, m):
    return (x + m - 1) // m * m


@functools.lru_cache(maxsize=None)
def _vmem_limit():
    """Generation-aware VMEM cap: ~80% of physical, capped at 100 MiB."""
    cap = None
    try:
        info = pltpu.get_tpu_info()
        for name in ("vmem_capacity_bytes", "vmem_bytes", "vmem_size_bytes"):
            cap = getattr(info, name, None)
            if cap:
                break
    except Exception:
        cap = None
    if not cap:
        return 48 * 1024 * 1024           # safe under v7x's 64 MiB physical VMEM
    return int(min(100 * 1024 * 1024, int(cap) * 4 // 5))


def _cparams(semantics):
    return pltpu.CompilerParams(dimension_semantics=semantics,
                                vmem_limit_bytes=_vmem_limit())


def _layernorm(y, g, b):
    """One-pass LayerNorm over the last axis (E[x^2] - E[x]^2 statistics)."""
    mu = jnp.mean(y, axis=-1, keepdims=True)
    ex2 = jnp.mean(y * y, axis=-1, keepdims=True)
    var = jnp.maximum(ex2 - mu * mu, 0.0)
    return (y - mu) * jax.lax.rsqrt(var + _EPS) * g + b


def _pick_row_tile(H, Wp, C, budget_bytes=2 * 1024 * 1024):
    """Largest divisor TR of H whose (TR*Wp, 4C) f32 hidden tile fits the budget."""
    best = 1
    for tr in range(1, H + 1):
        if H % tr == 0 and tr * Wp * 4 * C * 4 <= budget_bytes:
            best = tr
    return best


def _stage_layout(H, W, C):
    Wp = _round_up(W + 6, 8)              # padded row width, sublane aligned
    TR = _pick_row_tile(H, Wp, C)         # image rows per CNBlock grid step
    front = (-3) % TR                     # extra zero rows so tiles are block aligned
    back = (-(front + H + 6)) % TR
    return Wp, TR, front, back


# --------------------------------- kernels ---------------------------------

def stem_kernel(x_ref, w_ref, b_ref, g_ref, beta_ref, o_ref):
    """Stem: patchified 4x4/s4 conv as a single matmul + bias, then LayerNorm2d."""
    y = jnp.dot(x_ref[...].astype(jnp.bfloat16), w_ref[...],
                preferred_element_type=jnp.float32) + b_ref[...]
    o_ref[...] = _layernorm(y, g_ref[...], beta_ref[...])


def downsample_kernel(xp_ref, w_ref, b_ref, o_ref):
    """2x2/s2 downsample conv as ONE K=4*C matmul (its LayerNorm2d is fused into
    the last CNBlock of the preceding stage)."""
    o_ref[...] = jnp.dot(xp_ref[...].astype(jnp.bfloat16), w_ref[...],
                         preferred_element_type=jnp.float32) + b_ref[...]


def cnblock_kernel(Wp, TR, front_rows, post_ln,
                   xf_ref, mask_ref, dww_ref, dwb_ref, g_ref, beta_ref,
                   w1_ref, b1_ref, w2_ref, b2_ref, scale_ref,
                   g2_ref, beta2_ref, o_ref):
    """Fused CNBlock on one row-tile of one image (padded-flat layout).

    Depthwise 7x7 = 7 aligned sublane rolls (one per horizontal offset, XLU) +
    49 tile-aligned slice FMAs (per-dx partial accumulators), then
    LayerNorm -> Linear -> GELU -> Linear -> layer-scale -> residual
    (+ optional fused downsample LayerNorm2d).  Roll wrap-around only ever
    lands in pad columns, which the mask re-zeroes; pad rows are never written
    (the input buffer is aliased to the output, so they stay zero).
    """
    r = pl.program_id(1)
    TRW = TR * Wp
    strip_len = (TR + 6) * Wp
    start = pl.multiple_of((front_rows + r * TR) * Wp, 8)
    strip = xf_ref[0, pl.ds(start, strip_len), :]          # (strip_len, C) f32
    dww = dww_ref[...]                                     # (49, C) depthwise taps
    center = strip[3 * Wp:3 * Wp + TRW, :]                 # center tap == residual

    # ---- depthwise 7x7 conv ----
    partials = []
    for dx in range(-3, 4):
        shifted = strip if dx == 0 else pltpu.roll(strip, (-dx) % strip_len, 0)
        part = None
        for dy in range(-3, 4):
            k = (dy + 3) * 7 + (dx + 3)
            if dx == 0 and dy == 0:
                tap = center
            else:
                tap = shifted[(3 + dy) * Wp:(3 + dy) * Wp + TRW, :]
            term = tap * dww[k:k + 1, :]
            part = term if part is None else part + term
        partials.append(part)
    while len(partials) > 1:                               # pairwise tree-sum
        nxt = [partials[i] + partials[i + 1]
               for i in range(0, len(partials) - 1, 2)]
        if len(partials) % 2:
            nxt.append(partials[-1])
        partials = nxt
    acc = partials[0] + dwb_ref[...]

    # ---- LayerNorm + MLP (bf16 weights on the MXU, f32 accumulation) ----
    y = _layernorm(acc, g_ref[...], beta_ref[...])
    h = jnp.dot(y.astype(jnp.bfloat16), w1_ref[...],
                preferred_element_type=jnp.float32) + b1_ref[...]
    # TODO(synk): torchvision uses exact-erf nn.GELU; tanh approx used (EUP slot).
    h = jax.nn.gelu(h, approximate=True)
    z = jnp.dot(h.astype(jnp.bfloat16), w2_ref[...],
                preferred_element_type=jnp.float32) + b2_ref[...]
    out = z * scale_ref[...] + center
    # TODO(synk): StochasticDepth('row') is identity at prob=0 / eval mode, omitted.
    if post_ln:                                            # fused downsample LayerNorm2d
        out = _layernorm(out, g2_ref[...], beta2_ref[...])
    o_ref[0] = out * mask_ref[...]                         # re-zero horizontal pad columns


def head_kernel(x_ref, g_ref, beta_ref, w_ref, b_ref, o_ref):
    """Fused AdaptiveAvgPool2d(1) + LayerNorm2d + Linear, one image per step."""
    x = x_ref[0]                                           # (H*W, C)
    p = jnp.mean(x, axis=0, keepdims=True)                 # (1, C)
    p = _layernorm(p, g_ref[...], beta_ref[...])
    o_ref[0] = jnp.dot(p, w_ref[...], preferred_element_type=jnp.float32) + b_ref[...]


# ------------------------------ pallas wrappers -----------------------------

def _stem(patches, w, b, g, beta):
    rows, K = patches.shape
    C = w.shape[1]
    tm = min(512, _round_up(rows, 8))
    rows_p = _round_up(rows, tm)
    if rows_p != rows:
        patches = jnp.pad(patches, ((0, rows_p - rows), (0, 0)))
    out = pl.pallas_call(
        stem_kernel,
        out_shape=jax.ShapeDtypeStruct((rows_p, C), jnp.float32),
        grid=(rows_p // tm,),
        in_specs=[
            pl.BlockSpec((tm, K), lambda i: (i, 0)),
            pl.BlockSpec((K, C), lambda i: (0, 0)),
            pl.BlockSpec((1, C), lambda i: (0, 0)),
            pl.BlockSpec((1, C), lambda i: (0, 0)),
            pl.BlockSpec((1, C), lambda i: (0, 0)),
        ],
        out_specs=pl.BlockSpec((tm, C), lambda i: (i, 0)),
        compiler_params=_cparams(("parallel",)),
    )(patches, w, b, g, beta)
    return out[:rows]


def _downsample(patches, w, b):
    rows, K = patches.shape                                # K = 4*C
    Cout = w.shape[1]
    tm = min(512, _round_up(rows, 8))
    rows_p = _round_up(rows, tm)
    if rows_p != rows:
        patches = jnp.pad(patches, ((0, rows_p - rows), (0, 0)))
    out = pl.pallas_call(
        downsample_kernel,
        out_shape=jax.ShapeDtypeStruct((rows_p, Cout), jnp.float32),
        grid=(rows_p // tm,),
        in_specs=[
            pl.BlockSpec((tm, K), lambda i: (i, 0)),
            pl.BlockSpec((K, Cout), lambda i: (0, 0)),
            pl.BlockSpec((1, Cout), lambda i: (0, 0)),
        ],
        out_specs=pl.BlockSpec((tm, Cout), lambda i: (i, 0)),
        compiler_params=_cparams(("parallel",)),
    )(patches, w, b)
    return out[:rows]


def _cnblock(xf, blk, g2, beta2, H, W, Wp, TR, front_rows, post_ln):
    N, L, C = xf.shape
    TRW = TR * Wp
    R = H // TR
    OFF = (front_rows + 3) // TR                           # first interior output block
    col = jnp.arange(TRW, dtype=jnp.int32) % Wp
    mask = ((col >= 3) & (col < 3 + W)).astype(jnp.float32).reshape(TRW, 1)
    kernel = functools.partial(cnblock_kernel, Wp, TR, front_rows, post_ln)
    return pl.pallas_call(
        kernel,
        out_shape=jax.ShapeDtypeStruct((N, L, C), jnp.float32),
        grid=(N, R),
        in_specs=[
            pl.BlockSpec((1, L, C), lambda n, r: (n, 0, 0)),   # image, VMEM-resident over r
            pl.BlockSpec((TRW, 1), lambda n, r: (0, 0)),       # pad-column mask
            pl.BlockSpec((49, C), lambda n, r: (0, 0)),
            pl.BlockSpec((1, C), lambda n, r: (0, 0)),
            pl.BlockSpec((1, C), lambda n, r: (0, 0)),
            pl.BlockSpec((1, C), lambda n, r: (0, 0)),
            pl.BlockSpec((C, 4 * C), lambda n, r: (0, 0)),
            pl.BlockSpec((1, 4 * C), lambda n, r: (0, 0)),
            pl.BlockSpec((4 * C, C), lambda n, r: (0, 0)),
            pl.BlockSpec((1, C), lambda n, r: (0, 0)),
            pl.BlockSpec((1, C), lambda n, r: (0, 0)),
            pl.BlockSpec((1, C), lambda n, r: (0, 0)),
            pl.BlockSpec((1, C), lambda n, r: (0, 0)),
        ],
        out_specs=pl.BlockSpec((1, TRW, C), lambda n, r: (n, OFF + r, 0)),
        input_output_aliases={0: 0},       # pad rows stay zero; no fresh HBM buffer
        compiler_params=_cparams(("parallel", "arbitrary")),
    )(xf, mask, blk["dw_w"], blk["dw_b"], blk["g"], blk["beta"],
      blk["w1"], blk["b1"], blk["w2"], blk["b2"], blk["scale"], g2, beta2)


def _head(x3, g, beta, w, b):
    N, HW, C = x3.shape
    ncls = w.shape[1]
    out = pl.pallas_call(
        head_kernel,
        out_shape=jax.ShapeDtypeStruct((N, 1, ncls), jnp.float32),
        grid=(N,),
        in_specs=[
            pl.BlockSpec((1, HW, C), lambda n: (n, 0, 0)),
            pl.BlockSpec((1, C), lambda n: (0, 0)),
            pl.BlockSpec((1, C), lambda n: (0, 0)),
            pl.BlockSpec((C, ncls), lambda n: (0, 0)),
            pl.BlockSpec((1, ncls), lambda n: (0, 0)),
        ],
        out_specs=pl.BlockSpec((1, 1, ncls), lambda n: (n, 0, 0)),
        compiler_params=_cparams(("parallel",)),
    )(x3, g, beta, w, b)
    return out[:, 0, :]


# --------------------------- layout glue (XLA side) -------------------------

def _to_padded_flat(x, Wp, front, back):
    N, H, W, C = x.shape
    xp = jnp.pad(x, ((0, 0), (3, 3), (3, 3 + Wp - (W + 6)), (0, 0)))
    xf = xp.reshape(N, (H + 6) * Wp, C)
    return jnp.pad(xf, ((0, 0), (front * Wp, back * Wp), (0, 0)))


def _from_padded_flat(xf, H, W, Wp, front):
    N, _, C = xf.shape
    xp = xf[:, front * Wp:(front + H + 6) * Wp, :].reshape(N, H + 6, Wp, C)
    return xp[:, 3:3 + H, 3:3 + W, :]


# ------------------------- parameters / forward ----------------------------

def make_params(key, block_setting, num_classes, layer_scale=1e-6):
    keys = iter(jax.random.split(key, 512))

    def tn(shape, std=0.02, dtype=jnp.float32):           # trunc_normal_(std=0.02)
        w = std * jax.random.truncated_normal(next(keys), -2.0, 2.0, shape)
        return w.astype(dtype)

    def zeros(shape):
        return jnp.zeros(shape, jnp.float32)

    def ones(shape):
        return jnp.ones(shape, jnp.float32)

    c0 = block_setting[0][0]
    params = {
        "stem": dict(w=tn((3 * 16, c0), dtype=jnp.bfloat16), b=zeros((1, c0)),
                     g=ones((1, c0)), beta=zeros((1, c0))),
        "stages": [],
    }
    for (cin, cout, nlayers) in block_setting:
        assert nlayers >= 1, "each stage needs at least one CNBlock"
        blocks = []
        for _ in range(nlayers):
            blocks.append(dict(
                dw_w=tn((49, cin)), dw_b=zeros((1, cin)),
                g=ones((1, cin)), beta=zeros((1, cin)),
                w1=tn((cin, 4 * cin), dtype=jnp.bfloat16), b1=zeros((1, 4 * cin)),
                w2=tn((4 * cin, cin), dtype=jnp.bfloat16), b2=zeros((1, cin)),
                scale=layer_scale * ones((1, cin)),
            ))
        down = None
        if cout is not None:
            down = dict(g=ones((1, cin)), beta=zeros((1, cin)),
                        w=tn((4 * cin, cout), dtype=jnp.bfloat16), b=zeros((1, cout)))
        params["stages"].append(dict(blocks=blocks, down=down))

    cf = block_setting[-1][1] if block_setting[-1][1] is not None else block_setting[-1][0]
    params["head"] = dict(g=ones((1, cf)), beta=zeros((1, cf)),
                          w=tn((cf, num_classes)), b=zeros((1, num_classes)))
    return params


def convnext_forward(params, x_nchw):
    x_nchw = x_nchw.astype(jnp.float32)
    N, Cin, H, W = x_nchw.shape

    # --- stem: Conv2d(3, C0, k=4, s=4) + LayerNorm2d as patch matmul + LN ---
    stem = params["stem"]
    c0 = stem["w"].shape[1]
    Ho, Wo = H // 4, W // 4
    patches = (x_nchw.reshape(N, Cin, Ho, 4, Wo, 4)
               .transpose(0, 2, 4, 1, 3, 5)
               .reshape(N * Ho * Wo, Cin * 16))
    y = _stem(patches, stem["w"], stem["b"], stem["g"], stem["beta"])
    x = y.reshape(N, Ho, Wo, c0)                          # NHWC
    H, W, C = Ho, Wo, c0

    # --- stages: CNBlocks chain in padded-flat layout, one layout embed/stage ---
    for stage in params["stages"]:
        blocks, dn = stage["blocks"], stage["down"]
        Wp, TR, front, back = _stage_layout(H, W, C)
        xf = _to_padded_flat(x, Wp, front, back)
        for bi, blk in enumerate(blocks):
            post_ln = dn is not None and bi == len(blocks) - 1
            g2 = dn["g"] if post_ln else blk["g"]         # dummies when unused
            beta2 = dn["beta"] if post_ln else blk["beta"]
            xf = _cnblock(xf, blk, g2, beta2, H, W, Wp, TR, front, post_ln)
        x = _from_padded_flat(xf, H, W, Wp, front)

        # TODO(synk): downsample still re-embeds via XLA glue instead of reading
        # the padded-flat layout directly (review item 11).
        if dn is not None:
            Ho2, Wo2 = H // 2, W // 2
            Cout = dn["w"].shape[1]
            p = (x.reshape(N, Ho2, 2, Wo2, 2, C)
                 .transpose(0, 1, 3, 2, 4, 5)             # (ky, kx, cin) patch order
                 .reshape(N * Ho2 * Wo2, 4 * C))
            y = _downsample(p, dn["w"], dn["b"])
            x = y.reshape(N, Ho2, Wo2, Cout)
            H, W, C = Ho2, Wo2, Cout

    # --- avgpool + classifier (LayerNorm2d + Flatten + Linear), fused ---
    head = params["head"]
    logits = _head(x.reshape(N, H * W, C),
                   head["g"], head["beta"], head["w"], head["b"])
    return logits


if __name__ == "__main__":
    key = jax.random.PRNGKey(0)
    kx, kp = jax.random.split(key)

    # small CNBlockConfig list: (input_channels, out_channels, num_layers)
    block_setting = [(8, 16, 1), (16, None, 1)]
    num_classes = 10

    params = make_params(kp, block_setting, num_classes=num_classes, layer_scale=1e-6)
    x = jax.random.normal(kx, (2, 3, 16, 16), jnp.float32)   # NCHW, like the PyTorch module

    logits = jax.jit(convnext_forward)(params, x)
    logits = jax.block_until_ready(logits)

    assert logits.shape == (2, num_classes), logits.shape
    assert bool(jnp.all(jnp.isfinite(logits)))
    print("KERNEL_OK")
</pallas_src>

<mosaic_0001>
module attributes {stable_mosaic.version = 11 : i64} {
  func.func @stem_kernel(%arg0: i32, %arg1: memref<32x48xf32, #tpu.memory_space<vmem>>, %arg2: memref<48x8xbf16, #tpu.memory_space<vmem>>, %arg3: memref<1x8xf32, #tpu.memory_space<vmem>>, %arg4: memref<1x8xf32, #tpu.memory_space<vmem>>, %arg5: memref<1x8xf32, #tpu.memory_space<vmem>>, %arg6: memref<32x8xf32, #tpu.memory_space<vmem>>) attributes {dimension_semantics = [#tpu.dimension_semantics<parallel>], iteration_bounds = array<i64: 1>, scalar_prefetch = 0 : i64, scratch_operands = 0 : i64, tpu.core_type = #tpu.core_type<tc>, window_params = [{transform_indices = @transform_0, window_bounds = array<i64: 32, 48>}, {pipeline_mode = #tpu.pipeline_mode<synchronous>, transform_indices = @transform_1, window_bounds = array<i64: 48, 8>}, {pipeline_mode = #tpu.pipeline_mode<synchronous>, transform_indices = @transform_2, window_bounds = array<i64: 1, 8>}, {pipeline_mode = #tpu.pipeline_mode<synchronous>, transform_indices = @transform_3, window_bounds = array<i64: 1, 8>}, {pipeline_mode = #tpu.pipeline_mode<synchronous>, transform_indices = @transform_4, window_bounds = array<i64: 1, 8>}, {transform_indices = @transform_5, window_bounds = array<i64: 32, 8>}]} {
    %c0 = arith.constant 0 : index
    %c0_0 = arith.constant 0 : index
    %0 = vector.load %arg1[%c0, %c0_0] : memref<32x48xf32, #tpu.memory_space<vmem>>, vector<32x48xf32>
    %1 = arith.truncf %0 : vector<32x48xf32> to vector<32x48xbf16>
    %c0_1 = arith.constant 0 : index
    %c0_2 = arith.constant 0 : index
    %2 = vector.load %arg2[%c0_1, %c0_2] : memref<48x8xbf16, #tpu.memory_space<vmem>>, vector<48x8xbf16>
    %cst = arith.constant dense<0.000000e+00> : vector<32x8xf32>
    %3 = tpu.matmul %1, %2, %cst {dimension_numbers = #tpu.dot_dimension_numbers<[1], [0], [0], [1], [0, 0, 1, 1], [], []>} : vector<32x48xbf16>, vector<48x8xbf16>, vector<32x8xf32> -> vector<32x8xf32>
    %c0_3 = arith.constant 0 : index
    %c0_4 = arith.constant 0 : index
    %4 = vector.load %arg3[%c0_3, %c0_4] : memref<1x8xf32, #tpu.memory_space<vmem>>, vector<1x8xf32>
    %5 = vector.broadcast %4 : vector<1x8xf32> to vector<32x8xf32>
    %6 = arith.addf %3, %5 : vector<32x8xf32>
    %c0_5 = arith.constant 0 : index
    %c0_6 = arith.constant 0 : index
    %7 = vector.load %arg4[%c0_5, %c0_6] : memref<1x8xf32, #tpu.memory_space<vmem>>, vector<1x8xf32>
    %c0_7 = arith.constant 0 : index
    %c0_8 = arith.constant 0 : index
    %8 = vector.load %arg5[%c0_7, %c0_8] : memref<1x8xf32, #tpu.memory_space<vmem>>, vector<1x8xf32>
    %cst_9 = arith.constant dense<0.000000e+00> : vector<32xf32>
    %9 = vector.multi_reduction <add>, %6, %cst_9 [1] : vector<32x8xf32> to vector<32xf32>
    %10 = vector.shape_cast %9 : vector<32xf32> to vector<32x1xf32>
    %cst_10 = arith.constant 8.000000e+00 : f32
    %11 = vector.broadcast %cst_10 : f32 to vector<32x1xf32>
    %12 = arith.divf %10, %11 : vector<32x1xf32>
    %13 = arith.mulf %6, %6 : vector<32x8xf32>
    %cst_11 = arith.constant dense<0.000000e+00> : vector<32xf32>
    %14 = vector.multi_reduction <add>, %13, %cst_11 [1] : vector<32x8xf32> to vector<32xf32>
    %15 = vector.shape_cast %14 : vector<32xf32> to vector<32x1xf32>
    %cst_12 = arith.constant 8.000000e+00 : f32
    %16 = vector.broadcast %cst_12 : f32 to vector<32x1xf32>
    %17 = arith.divf %15, %16 : vector<32x1xf32>
    %18 = arith.mulf %12, %12 : vector<32x1xf32>
    %19 = arith.subf %17, %18 : vector<32x1xf32>
    %cst_13 = arith.constant 0.000000e+00 : f32
    %20 = vector.broadcast %cst_13 : f32 to vector<32x1xf32>
    %21 = arith.maximumf %19, %20 : vector<32x1xf32>
    %22 = vector.broadcast %12 : vector<32x1xf32> to vector<32x8xf32>
    %23 = arith.subf %6, %22 : vector<32x8xf32>
    %cst_14 = arith.constant 9.99999997E-7 : f32
    %24 = vector.broadcast %cst_14 : f32 to vector<32x1xf32>
    %25 = arith.addf %21, %24 : vector<32x1xf32>
    %26 = math.rsqrt %25 : vector<32x1xf32>
    %27 = vector.broadcast %26 : vector<32x1xf32> to vector<32x8xf32>
    %28 = arith.mulf %23, %27 : vector<32x8xf32>
    %29 = vector.broadcast %7 : vector<1x8xf32> to vector<32x8xf32>
    %30 = arith.mulf %28, %29 : vector<32x8xf32>
    %31 = vector.broadcast %8 : vector<1x8xf32> to vector<32x8xf32>
    %32 = arith.addf %30, %31 : vector<32x8xf32>
    %c0_15 = arith.constant 0 : index
    %c0_16 = arith.constant 0 : index
    %33 = vector.load %arg6[%c0_15, %c0_16] : memref<32x8xf32, #tpu.memory_space<vmem>>, vector<32x8xf32>
    tpu.vector_store %arg6[%c0_15, %c0_16], %32 {strides = array<i32>} : memref<32x8xf32, #tpu.memory_space<vmem>>, vector<32x8xf32>,
    return
  }
  func.func @transform_0(%arg0: i32) -> (i32, i32) {
    %c0_i32 = arith.constant 0 : i32
    %c0_i32_0 = arith.constant 0 : i32
    return %arg0, %c0_i32 : i32, i32
  }
  func.func @transform_1(%arg0: i32) -> (i32, i32) {
    %c0_i32 = arith.constant 0 : i32
    %c0_i32_0 = arith.constant 0 : i32
    %c0_i32_1 = arith.constant 0 : i32
    return %c0_i32, %c0_i32_0 : i32, i32
  }
  func.func @transform_2(%arg0: i32) -> (i32, i32) {
    %c0_i32 = arith.constant 0 : i32
    %c0_i32_0 = arith.constant 0 : i32
    %c0_i32_1 = arith.constant 0 : i32
    return %c0_i32, %c0_i32_0 : i32, i32
  }
  func.func @transform_3(%arg0: i32) -> (i32, i32) {
    %c0_i32 = arith.constant 0 : i32
    %c0_i32_0 = arith.constant 0 : i32
    %c0_i32_1 = arith.constant 0 : i32
    return %c0_i32, %c0_i32_0 : i32, i32
  }
  func.func @transform_4(%arg0: i32) -> (i32, i32) {
    %c0_i32 = arith.constant 0 : i32
    %c0_i32_0 = arith.constant 0 : i32
    %c0_i32_1 = arith.constant 0 : i32
    return %c0_i32, %c0_i32_0 : i32, i32
  }
  func.func @transform_5(%arg0: i32) -> (i32, i32) {
    %c0_i32 = arith.constant 0 : i32
    %c0_i32_0 = arith.constant 0 : i32
    return %arg0, %c0_i32 : i32, i32
  }
}

module attributes {stable_mosaic.version = 11 : i64} {
  func.func @downsample_kernel(%arg0: i32, %arg1: memref<8x32xf32, #tpu.memory_space<vmem>>, %arg2: memref<32x16xbf16, #tpu.memory_space<vmem>>, %arg3: memref<1x16xf32, #tpu.memory_space<vmem>>, %arg4: memref<8x16xf32, #tpu.memory_space<vmem>>) attributes {dimension_semantics = [#tpu.dimension_semantics<parallel>], iteration_bounds = array<i64: 1>, scalar_prefetch = 0 : i64, scratch_operands = 0 : i64, tpu.core_type = #tpu.core_type<tc>, window_params = [{transform_indices = @transform_0, window_bounds = array<i64: 8, 32>}, {pipeline_mode = #tpu.pipeline_mode<synchronous>, transform_indices = @transform_1, window_bounds = array<i64: 32, 16>}, {pipeline_mode = #tpu.pipeline_mode<synchronous>, transform_indices = @transform_2, window_bounds = array<i64: 1, 16>}, {transform_indices = @transform_3, window_bounds = array<i64: 8, 16>}]} {
    %c0 = arith.constant 0 : index
    %c0_0 = arith.constant 0 : index
    %0 = vector.load %arg1[%c0, %c0_0] : memref<8x32xf32, #tpu.memory_space<vmem>>, vector<8x32xf32>
    %1 = arith.truncf %0 : vector<8x32xf32> to vector<8x32xbf16>
    %c0_1 = arith.constant 0 : index
    %c0_2 = arith.constant 0 : index
    %2 = vector.load %arg2[%c0_1, %c0_2] : memref<32x16xbf16, #tpu.memory_space<vmem>>, vector<32x16xbf16>
    %cst = arith.constant dense<0.000000e+00> : vector<8x16xf32>
    %3 = tpu.matmul %1, %2, %cst {dimension_numbers = #tpu.dot_dimension_numbers<[1], [0], [0], [1], [0, 0, 1, 1], [], []>} : vector<8x32xbf16>, vector<32x16xbf16>, vector<8x16xf32> -> vector<8x16xf32>
    %c0_3 = arith.constant 0 : index
    %c0_4 = arith.constant 0 : index
    %4 = vector.load %arg3[%c0_3, %c0_4] : memref<1x16xf32, #tpu.memory_space<vmem>>, vector<1x16xf32>
    %5 = vector.broadcast %4 : vector<1x16xf32> to vector<8x16xf32>
    %6 = arith.addf %3, %5 : vector<8x16xf32>
    %c0_5 = arith.constant 0 : index
    %c0_6 = arith.constant 0 : index
    %7 = vector.load %arg4[%c0_5, %c0_6] : memref<8x16xf32, #tpu.memory_space<vmem>>, vector<8x16xf32>
    tpu.vector_store %arg4[%c0_5, %c0_6], %6 {strides = array<i32>} : memref<8x16xf32, #tpu.memory_space<vmem>>, vector<8x16xf32>,
    return
  }
  func.func @transform_0(%arg0: i32) -> (i32, i32) {
    %c0_i32 = arith.constant 0 : i32
    %c0_i32_0 = arith.constant 0 : i32
    return %arg0, %c0_i32 : i32, i32
  }
  func.func @transform_1(%arg0: i32) -> (i32, i32) {
    %c0_i32 = arith.constant 0 : i32
    %c0_i32_0 = arith.constant 0 : i32
    %c0_i32_1 = arith.constant 0 : i32
    return %c0_i32, %c0_i32_0 : i32, i32
  }
  func.func @transform_2(%arg0: i32) -> (i32, i32) {
    %c0_i32 = arith.constant 0 : i32
    %c0_i32_0 = arith.constant 0 : i32
    %c0_i32_1 = arith.constant 0 : i32
    return %c0_i32, %c0_i32_0 : i32, i32
  }
  func.func @transform_3(%arg0: i32) -> (i32, i32) {
    %c0_i32 = arith.constant 0 : i32
    %c0_i32_0 = arith.constant 0 : i32
    return %arg0, %c0_i32 : i32, i32
  }
}

module attributes {stable_mosaic.version = 11 : i64} {
  func.func @cnblock_kernel(%arg0: i32, %arg1: i32, %arg2: memref<1x192x8xf32, #tpu.memory_space<vmem>>, %arg3: memref<64x1xf32, #tpu.memory_space<vmem>>, %arg4: memref<49x8xf32, #tpu.memory_space<vmem>>, %arg5: memref<1x8xf32, #tpu.memory_space<vmem>>, %arg6: memref<1x8xf32, #tpu.memory_space<vmem>>, %arg7: memref<1x8xf32, #tpu.memory_space<vmem>>, %arg8: memref<8x32xbf16, #tpu.memory_space<vmem>>, %arg9: memref<1x32xf32, #tpu.memory_space<vmem>>, %arg10: memref<32x8xbf16, #tpu.memory_space<vmem>>, %arg11: memref<1x8xf32, #tpu.memory_space<vmem>>, %arg12: memref<1x8xf32, #tpu.memory_space<vmem>>, %arg13: memref<1x8xf32, #tpu.memory_space<vmem>>, %arg14: memref<1x8xf32, #tpu.memory_space<vmem>>, %arg15: memref<1x64x8xf32, #tpu.memory_space<vmem>>) attributes {dimension_semantics = [#tpu.dimension_semantics<parallel>, #tpu.dimension_semantics<arbitrary>], iteration_bounds = array<i64: 2, 1>, scalar_prefetch = 0 : i64, scratch_operands = 0 : i64, tpu.core_type = #tpu.core_type<tc>, window_params = [{transform_indices = @transform_0, window_bounds = array<i64: 1, 192, 8>}, {pipeline_mode = #tpu.pipeline_mode<synchronous>, transform_indices = @transform_1, window_bounds = array<i64: 64, 1>}, {pipeline_mode = #tpu.pipeline_mode<synchronous>, transform_indices = @transform_2, window_bounds = array<i64: 49, 8>}, {pipeline_mode = #tpu.pipeline_mode<synchronous>, transform_indices = @transform_3, window_bounds = array<i64: 1, 8>}, {pipeline_mode = #tpu.pipeline_mode<synchronous>, transform_indices = @transform_4, window_bounds = array<i64: 1, 8>}, {pipeline_mode = #tpu.pipeline_mode<synchronous>, transform_indices = @transform_5, window_bounds = array<i64: 1, 8>}, {pipeline_mode = #tpu.pipeline_mode<synchronous>, transform_indices = @transform_6, window_bounds = array<i64: 8, 32>}, {pipeline_mode = #tpu.pipeline_mode<synchronous>, transform_indices = @transform_7, window_bounds = array<i64: 1, 32>}, {pipeline_mode = #tpu.pipeline_mode<synchronous>, transform_indices = @transform_8, window_bounds = array<i64: 32, 8>}, {pipeline_mode = #tpu.pipeline_mode<synchronous>, transform_indices = @transform_9, window_bounds = array<i64: 1, 8>}, {pipeline_mode = #tpu.pipeline_mode<synchronous>, transform_indices = @transform_10, window_bounds = array<i64: 1, 8>}, {pipeline_mode = #tpu.pipeline_mode<synchronous>, transform_indices = @transform_11, window_bounds = array<i64: 1, 8>}, {pipeline_mode = #tpu.pipeline_mode<synchronous>, transform_indices = @transform_12, window_bounds = array<i64: 1, 8>}, {transform_indices = @transform_13, window_bounds = array<i64: 1, 64, 8>}]} {
    %c4_i32 = arith.constant 4 : i32
    %0 = arith.muli %arg1, %c4_i32 : i32
    %c1_i32 = arith.constant 1 : i32
    %1 = arith.addi %c1_i32, %0 : i32
    %c16_i32 = arith.constant 16 : i32
    %2 = arith.muli %1, %c16_i32 : i32
    %3 = tpu.assume_multiple %2, 8 : i32
    %c0 = arith.constant 0 : index
    %4 = arith.index_cast %3 : i32 to index
    %c0_0 = arith.constant 0 : index
    %5 = vector.load %arg2[%c0, %4, %c0_0] : memref<1x192x8xf32, #tpu.memory_space<vmem>>, vector<1x160x8xf32>
    %6 = vector.shape_cast %5 : vector<1x160x8xf32> to vector<160x8xf32>
    %c0_1 = arith.constant 0 : index
    %c0_2 = arith.constant 0 : index
    %7 = vector.load %arg4[%c0_1, %c0_2] : memref<49x8xf32, #tpu.memory_space<vmem>>, vector<49x8xf32>
    %8 = vector.extract_strided_slice %6 {offsets = [48, 0], sizes = [64, 8], strides = [1, 1]} : vector<160x8xf32> to vector<64x8xf32>
    %c3_i32 = arith.constant 3 : i32
    %9 = tpu.dynamic_rotate %6 by %c3_i32 dim 0 : vector<160x8xf32>, i32 -> vector<160x8xf32>
    %10 = vector.extract_strided_slice %9 {offsets = [0, 0], sizes = [64, 8], strides = [1, 1]} : vector<160x8xf32> to vector<64x8xf32>
    %11 = vector.extract_strided_slice %7 {offsets = [0, 0], sizes = [1, 8], strides = [1, 1]} : vector<49x8xf32> to vector<1x8xf32>
    %12 = vector.broadcast %11 : vector<1x8xf32> to vector<64x8xf32>
    %13 = arith.mulf %10, %12 : vector<64x8xf32>
    %14 = vector.extract_strided_slice %9 {offsets = [16, 0], sizes = [64, 8], strides = [1, 1]} : vector<160x8xf32> to vector<64x8xf32>
    %15 = vector.extract_strided_slice %7 {offsets = [7, 0], sizes = [1, 8], strides = [1, 1]} : vector<49x8xf32> to vector<1x8xf32>
    %16 = vector.broadcast %15 : vector<1x8xf32> to vector<64x8xf32>
    %17 = arith.mulf %14, %16 : vector<64x8xf32>
    %18 = arith.addf %13, %17 : vector<64x8xf32>
    %19 = vector.extract_strided_slice %9 {offsets = [32, 0], sizes = [64, 8], strides = [1, 1]} : vector<160x8xf32> to vector<64x8xf32>
    %20 = vector.extract_strided_slice %7 {offsets = [14, 0], sizes = [1, 8], strides = [1, 1]} : vector<49x8xf32> to vector<1x8xf32>
    %21 = vector.broadcast %20 : vector<1x8xf32> to vector<64x8xf32>
    %22 = arith.mulf %19, %21 : vector<64x8xf32>
    %23 = arith.addf %18, %22 : vector<64x8xf32>
    %24 = vector.extract_strided_slice %9 {offsets = [48, 0], sizes = [64, 8], strides = [1, 1]} : vector<160x8xf32> to vector<64x8xf32>
    %25 = vector.extract_strided_slice %7 {offsets = [21, 0], sizes = [1, 8], strides = [1, 1]} : vector<49x8xf32> to vector<1x8xf32>
    %26 = vector.broadcast %25 : vector<1x8xf32> to vector<64x8xf32>
    %27 = arith.mulf %24, %26 : vector<64x8xf32>
    %28 = arith.addf %23, %27 : vector<64x8xf32>
    %29 = vector.extract_strided_slice %9 {offsets = [64, 0], sizes = [64, 8], strides = [1, 1]} : vector<160x8xf32> to vector<64x8xf32>
    %30 = vector.extract_strided_slice %7 {offsets = [28, 0], sizes = [1, 8], strides = [1, 1]} : vector<49x8xf32> to vector<1x8xf32>
    %31 = vector.broadcast %30 : vector<1x8xf32> to vector<64x8xf32>
    %32 = arith.mulf %29, %31 : vector<64x8xf32>
    %33 = arith.addf %28, %32 : vector<64x8xf32>
    %34 = vector.extract_strided_slice %9 {offsets = [80, 0], sizes = [64, 8], strides = [1, 1]} : vector<160x8xf32> to vector<64x8xf32>
    %35 = vector.extract_strided_slice %7 {offsets = [35, 0], sizes = [1, 8], strides = [1, 1]} : vector<49x8xf32> to vector<1x8xf32>
    %36 = vector.broadcast %35 : vector<1x8xf32> to vector<64x8xf32>
    %37 = arith.mulf %34, %36 : vector<64x8xf32>
    %38 = arith.addf %33, %37 : vector<64x8xf32>
    %39 = vector.extract_strided_slice %9 {offsets = [96, 0], sizes = [64, 8], strides = [1, 1]} : vector<160x8xf32> to vector<64x8xf32>
    %40 = vector.extract_strided_slice %7 {offsets = [42, 0], sizes = [1, 8], strides = [1, 1]} : vector<49x8xf32> to vector<1x8xf32>
    %41 = vector.broadcast %40 : vector<1x8xf32> to vector<64x8xf32>
    %42 = arith.mulf %39, %41 : vector<64x8xf32>
    %43 = arith.addf %38, %42 : vector<64x8xf32>
    %c2_i32 = arith.constant 2 : i32
    %44 = tpu.dynamic_rotate %6 by %c2_i32 dim 0 : vector<160x8xf32>, i32 -> vector<160x8xf32>
    %45 = vector.extract_strided_slice %44 {offsets = [0, 0], sizes = [64, 8], strides = [1, 1]} : vector<160x8xf32> to vector<64x8xf32>
    %46 = vector.extract_strided_slice %7 {offsets = [1, 0], sizes = [1, 8], strides = [1, 1]} : vector<49x8xf32> to vector<1x8xf32>
    %47 = vector.broadcast %46 : vector<1x8xf32> to vector<64x8xf32>
    %48 = arith.mulf %45, %47 : vector<64x8xf32>
    %49 = vector.extract_strided_slice %44 {offsets = [16, 0], sizes = [64, 8], strides = [1, 1]} : vector<160x8xf32> to vector<64x8xf32>
    %50 = vector.extract_strided_slice %7 {offsets = [8, 0], sizes = [1, 8], strides = [1, 1]} : vector<49x8xf32> to vector<1x8xf32>
    %51 = vector.broadcast %50 : vector<1x8xf32> to vector<64x8xf32>
    %52 = arith.mulf %49, %51 : vector<64x8xf32>
    %53 = arith.addf %48, %52 : vector<64x8xf32>
    %54 = vector.extract_strided_slice %44 {offsets = [32, 0], sizes = [64, 8], strides = [1, 1]} : vector<160x8xf32> to vector<64x8xf32>
    %55 = vector.extract_strided_slice %7 {offsets = [15, 0], sizes = [1, 8], strides = [1, 1]} : vector<49x8xf32> to vector<1x8xf32>
    %56 = vector.broadcast %55 : vector<1x8xf32> to vector<64x8xf32>
    %57 = arith.mulf %54, %56 : vector<64x8xf32>
    %58 = arith.addf %53, %57 : vector<64x8xf32>
    %59 = vector.extract_strided_slice %44 {offsets = [48, 0], sizes = [64, 8], strides = [1, 1]} : vector<160x8xf32> to vector<64x8xf32>
    %60 = vector.extract_strided_slice %7 {offsets = [22, 0], sizes = [1, 8], strides = [1, 1]} : vector<49x8xf32> to vector<1x8xf32>
    %61 = vector.broadcast %60 : vector<1x8xf32> to vector<64x8xf32>
    %62 = arith.mulf %59, %61 : vector<64x8xf32>
    %63 = arith.addf %58, %62 : vector<64x8xf32>
    %64 = vector.extract_strided_slice %44 {offsets = [64, 0], sizes = [64, 8], strides = [1, 1]} : vector<160x8xf32> to vector<64x8xf32>
    %65 = vector.extract_strided_slice %7 {offsets = [29, 0], sizes = [1, 8], strides = [1, 1]} : vector<49x8xf32> to vector<1x8xf32>
    %66 = vector.broadcast %65 : vector<1x8xf32> to vector<64x8xf32>
    %67 = arith.mulf %64, %66 : vector<64x8xf32>
    %68 = arith.addf %63, %67 : vector<64x8xf32>
    %69 = vector.extract_strided_slice %44 {offsets = [80, 0], sizes = [64, 8], strides = [1, 1]} : vector<160x8xf32> to vector<64x8xf32>
    %70 = vector.extract_strided_slice %7 {offsets = [36, 0], sizes = [1, 8], strides = [1, 1]} : vector<49x8xf32> to vector<1x8xf32>
    %71 = vector.broadcast %70 : vector<1x8xf32> to vector<64x8xf32>
    %72 = arith.mulf %69, %71 : vector<64x8xf32>
    %73 = arith.addf %68, %72 : vector<64x8xf32>
    %74 = vector.extract_strided_slice %44 {offsets = [96, 0], sizes = [64, 8], strides = [1, 1]} : vector<160x8xf32> to vector<64x8xf32>
    %75 = vector.extract_strided_slice %7 {offsets = [43, 0], sizes = [1, 8], strides = [1, 1]} : vector<49x8xf32> to vector<1x8xf32>
    %76 = vector.broadcast %75 : vector<1x8xf32> to vector<64x8xf32>
    %77 = arith.mulf %74, %76 : vector<64x8xf32>
    %78 = arith.addf %73, %77 : vector<64x8xf32>
    %c1_i32_3 = arith.constant 1 : i32
    %79 = tpu.dynamic_rotate %6 by %c1_i32_3 dim 0 : vector<160x8xf32>, i32 -> vector<160x8xf32>
    %80 = vector.extract_strided_slice %79 {offsets = [0, 0], sizes = [64, 8], strides = [1, 1]} : vector<160x8xf32> to vector<64x8xf32>
    %81 = vector.extract_strided_slice %7 {offsets = [2, 0], sizes = [1, 8], strides = [1, 1]} : vector<49x8xf32> to vector<1x8xf32>
    %82 = vector.broadcast %81 : vector<1x8xf32> to vector<64x8xf32>
    %83 = arith.mulf %80, %82 : vector<64x8xf32>
    %84 = vector.extract_strided_slice %79 {offsets = [16, 0], sizes = [64, 8], strides = [1, 1]} : vector<160x8xf32> to vector<64x8xf32>
    %85 = vector.extract_strided_slice %7 {offsets = [9, 0], sizes = [1, 8], strides = [1, 1]} : vector<49x8xf32> to vector<1x8xf32>
    %86 = vector.broadcast %85 : vector<1x8xf32> to vector<64x8xf32>
    %87 = arith.mulf %84, %86 : vector<64x8xf32>
    %88 = arith.addf %83, %87 : vector<64x8xf32>
    %89 = vector.extract_strided_slice %79 {offsets = [32, 0], sizes = [64, 8], strides = [1, 1]} : vector<160x8xf32> to vector<64x8xf32>
    %90 = vector.extract_strided_slice %7 {offsets = [16, 0], sizes = [1, 8], strides = [1, 1]} : vector<49x8xf32> to vector<1x8xf32>
    %91 = vector.broadcast %90 : vector<1x8xf32> to vector<64x8xf32>
    %92 = arith.mulf %89, %91 : vector<64x8xf32>
    %93 = arith.addf %88, %92 : vector<64x8xf32>
    %94 = vector.extract_strided_slice %79 {offsets = [48, 0], sizes = [64, 8], strides = [1, 1]} : vector<160x8xf32> to vector<64x8xf32>
    %95 = vector.extract_strided_slice %7 {offsets = [23, 0], sizes = [1, 8], strides = [1, 1]} : vector<49x8xf32> to vector<1x8xf32>
    %96 = vector.broadcast %95 : vector<1x8xf32> to vector<64x8xf32>
    %97 = arith.mulf %94, %96 : vector<64x8xf32>
    %98 = arith.addf %93, %97 : vector<64x8xf32>
    %99 = vector.extract_strided_slice %79 {offsets = [64, 0], sizes = [64, 8], strides = [1, 1]} : vector<160x8xf32> to vector<64x8xf32>
    %100 = vector.extract_strided_slice %7 {offsets = [30, 0], sizes = [1, 8], strides = [1, 1]} : vector<49x8xf32> to vector<1x8xf32>
    %101 = vector.broadcast %100 : vector<1x8xf32> to vector<64x8xf32>
    %102 = arith.mulf %99, %101 : vector<64x8xf32>
    %103 = arith.addf %98, %102 : vector<64x8xf32>
    %104 = vector.extract_strided_slice %79 {offsets = [80, 0], sizes = [64, 8], strides = [1, 1]} : vector<160x8xf32> to vector<64x8xf32>
    %105 = vector.extract_strided_slice %7 {offsets = [37, 0], sizes = [1, 8], strides = [1, 1]} : vector<49x8xf32> to vector<1x8xf32>
    %106 = vector.broadcast %105 : vector<1x8xf32> to vector<64x8xf32>
    %107 = arith.mulf %104, %106 : vector<64x8xf32>
    %108 = arith.addf %103, %107 : vector<64x8xf32>
    %109 = vector.extract_strided_slice %79 {offsets = [96, 0], sizes = [64, 8], strides = [1, 1]} : vector<160x8xf32> to vector<64x8xf32>
    %110 = vector.extract_strided_slice %7 {offsets = [44, 0], sizes = [1, 8], strides = [1, 1]} : vector<49x8xf32> to vector<1x8xf32>
    %111 = vector.broadcast %110 : vector<1x8xf32> to vector<64x8xf32>
    %112 = arith.mulf %109, %111 : vector<64x8xf32>
    %113 = arith.addf %108, %112 : vector<64x8xf32>
    %114 = vector.extract_strided_slice %6 {offsets = [0, 0], sizes = [64, 8], strides = [1, 1]} : vector<160x8xf32> to vector<64x8xf32>
    %115 = vector.extract_strided_slice %7 {offsets = [3, 0], sizes = [1, 8], strides = [1, 1]} : vector<49x8xf32> to vector<1x8xf32>
    %116 = vector.broadcast %115 : vector<1x8xf32> to vector<64x8xf32>
    %117 = arith.mulf %114, %116 : vector<64x8xf32>
    %118 = vector.extract_strided_slice %6 {offsets = [16, 0], sizes = [64, 8], strides = [1, 1]} : vector<160x8xf32> to vector<64x8xf32>
    %119 = vector.extract_strided_slice %7 {offsets = [10, 0], sizes = [1, 8], strides = [1, 1]} : vector<49x8xf32> to vector<1x8xf32>
    %120 = vector.broadcast %119 : vector<1x8xf32> to vector<64x8xf32>
    %121 = arith.mulf %118, %120 : vector<64x8xf32>
    %122 = arith.addf %117, %121 : vector<64x8xf32>
    %123 = vector.extract_strided_slice %6 {offsets = [32, 0], sizes = [64, 8], strides = [1, 1]} : vector<160x8xf32> to vector<64x8xf32>
    %124 = vector.extract_strided_slice %7 {offsets = [17, 0], sizes = [1, 8], strides = [1, 1]} : vector<49x8xf32> to vector<1x8xf32>
    %125 = vector.broadcast %124 : vector<1x8xf32> to vector<64x8xf32>
    %126 = arith.mulf %123, %125 : vector<64x8xf32>
    %127 = arith.addf %122, %126 : vector<64x8xf32>
    %128 = vector.extract_strided_slice %7 {offsets = [24, 0], sizes = [1, 8], strides = [1, 1]} : vector<49x8xf32> to vector<1x8xf32>
    %129 = vector.broadcast %128 : vector<1x8xf32> to vector<64x8xf32>
    %130 = arith.mulf %8, %129 : vector<64x8xf32>
    %131 = arith.addf %127, %130 : vector<64x8xf32>
    %132 = vector.extract_strided_slice %6 {offsets = [64, 0], sizes = [64, 8], strides = [1, 1]} : vector<160x8xf32> to vector<64x8xf32>
    %133 = vector.extract_strided_slice %7 {offsets = [31, 0], sizes = [1, 8], strides = [1, 1]} : vector<49x8xf32> to vector<1x8xf32>
    %134 = vector.broadcast %133 : vector<1x8xf32> to vector<64x8xf32>
    %135 = arith.mulf %132, %134 : vector<64x8xf32>
    %136 = arith.addf %131, %135 : vector<64x8xf32>
    %137 = vector.extract_strided_slice %6 {offsets = [80, 0], sizes = [64, 8], strides = [1, 1]} : vector<160x8xf32> to vector<64x8xf32>
    %138 = vector.extract_strided_slice %7 {offsets = [38, 0], sizes = [1, 8], strides = [1, 1]} : vector<49x8xf32> to vector<1x8xf32>
    %139 = vector.broadcast %138 : vector<1x8xf32> to vector<64x8xf32>
    %140 = arith.mulf %137, %139 : vector<64x8xf32>
    %141 = arith.addf %136, %140 : vector<64x8xf32>
    %142 = vector.extract_strided_slice %6 {offsets = [96, 0], sizes = [64, 8], strides = [1, 1]} : vector<160x8xf32> to vector<64x8xf32>
    %143 = vector.extract_strided_slice %7 {offsets = [45, 0], sizes = [1, 8], strides = [1, 1]} : vector<49x8xf32> to vector<1x8xf32>
    %144 = vector.broadcast %143 : vector<1x8xf32> to vector<64x8xf32>
    %145 = arith.mulf %142, %144 : vector<64x8xf32>
    %146 = arith.addf %141, %145 : vector<64x8xf32>
    %c159_i32 = arith.constant 159 : i32
    %147 = tpu.dynamic_rotate %6 by %c159_i32 dim 0 : vector<160x8xf32>, i32 -> vector<160x8xf32>
    %148 = vector.extract_strided_slice %147 {offsets = [0, 0], sizes = [64, 8], strides = [1, 1]} : vector<160x8xf32> to vector<64x8xf32>
    %149 = vector.extract_strided_slice %7 {offsets = [4, 0], sizes = [1, 8], strides = [1, 1]} : vector<49x8xf32> to vector<1x8xf32>
    %150 = vector.broadcast %149 : vector<1x8xf32> to vector<64x8xf32>
    %151 = arith.mulf %148, %150 : vector<64x8xf32>
    %152 = vector.extract_strided_slice %147 {offsets = [16, 0], sizes = [64, 8], strides = [1, 1]} : vector<160x8xf32> to vector<64x8xf32>
    %153 = vector.extract_strided_slice %7 {offsets = [11, 0], sizes = [1, 8], strides = [1, 1]} : vector<49x8xf32> to vector<1x8xf32>
    %154 = vector.broadcast %153 : vector<1x8xf32> to vector<64x8xf32>
    %155 = arith.mulf %152, %154 : vector<64x8xf32>
    %156 = arith.addf %151, %155 : vector<64x8xf32>
    %157 = vector.extract_strided_slice %147 {offsets = [32, 0], sizes = [64, 8], strides = [1, 1]} : vector<160x8xf32> to vector<64x8xf32>
    %158 = vector.extract_strided_slice %7 {offsets = [18, 0], sizes = [1, 8], strides = [1, 1]} : vector<49x8xf32> to vector<1x8xf32>
    %159 = vector.broadcast %158 : vector<1x8xf32> to vector<64x8xf32>
    %160 = arith.mulf %157, %159 : vector<64x8xf32>
    %161 = arith.addf %156, %160 : vector<64x8xf32>
    %162 = vector.extract_strided_slice %147 {offsets = [48, 0], sizes = [64, 8], strides = [1, 1]} : vector<160x8xf32> to vector<64x8xf32>
    %163 = vector.extract_strided_slice %7 {offsets = [25, 0], sizes = [1, 8], strides = [1, 1]} : vector<49x8xf32> to vector<1x8xf32>
    %164 = vector.broadcast %163 : vector<1x8xf32> to vector<64x8xf32>
    %165 = arith.mulf %162, %164 : vector<64x8xf32>
    %166 = arith.addf %161, %165 : vector<64x8xf32>
    %167 = vector.extract_strided_slice %147 {offsets = [64, 0], sizes = [64, 8], strides = [1, 1]} : vector<160x8xf32> to vector<64x8xf32>
    %168 = vector.extract_strided_slice %7 {offsets = [32, 0], sizes = [1, 8], strides = [1, 1]} : vector<49x8xf32> to vector<1x8xf32>
    %169 = vector.broadcast %168 : vector<1x8xf32> to vector<64x8xf32>
    %170 = arith.mulf %167, %169 : vector<64x8xf32>
    %171 = arith.addf %166, %170 : vector<64x8xf32>
    %172 = vector.extract_strided_slice %147 {offsets = [80, 0], sizes = [64, 8], strides = [1, 1]} : vector<160x8xf32> to vector<64x8xf32>
    %173 = vector.extract_strided_slice %7 {offsets = [39, 0], sizes = [1, 8], strides = [1, 1]} : vector<49x8xf32> to vector<1x8xf32>
    %174 = vector.broadcast %173 : vector<1x8xf32> to vector<64x8xf32>
    %175 = arith.mulf %172, %174 : vector<64x8xf32>
    %176 = arith.addf %171, %175 : vector<64x8xf32>
    %177 = vector.extract_strided_slice %147 {offsets = [96, 0], sizes = [64, 8], strides = [1, 1]} : vector<160x8xf32> to vector<64x8xf32>
    %178 = vector.extract_strided_slice %7 {offsets = [46, 0], sizes = [1, 8], strides = [1, 1]} : vector<49x8xf32> to vector<1x8xf32>
    %179 = vector.broadcast %178 : vector<1x8xf32> to vector<64x8xf32>
    %180 = arith.mulf %177, %179 : vector<64x8xf32>
    %181 = arith.addf %176, %180 : vector<64x8xf32>
    %c158_i32 = arith.constant 158 : i32
    %182 = tpu.dynamic_rotate %6 by %c158_i32 dim 0 : vector<160x8xf32>, i32 -> vector<160x8xf32>
    %183 = vector.extract_strided_slice %182 {offsets = [0, 0], sizes = [64, 8], strides = [1, 1]} : vector<160x8xf32> to vector<64x8xf32>
    %184 = vector.extract_strided_slice %7 {offsets = [5, 0], sizes = [1, 8], strides = [1, 1]} : vector<49x8xf32> to vector<1x8xf32>
    %185 = vector.broadcast %184 : vector<1x8xf32> to vector<64x8xf32>
    %186 = arith.mulf %183, %185 : vector<64x8xf32>
    %187 = vector.extract_strided_slice %182 {offsets = [16, 0], sizes = [64, 8], strides = [1, 1]} : vector<160x8xf32> to vector<64x8xf32>
    %188 = vector.extract_strided_slice %7 {offsets = [12, 0], sizes = [1, 8], strides = [1, 1]} : vector<49x8xf32> to vector<1x8xf32>
    %189 = vector.broadcast %188 : vector<1x8xf32> to vector<64x8xf32>
    %190 = arith.mulf %187, %189 : vector<64x8xf32>
    %191 = arith.addf %186, %190 : vector<64x8xf32>
    %192 = vector.extract_strided_slice %182 {offsets = [32, 0], sizes = [64, 8], strides = [1, 1]} : vector<160x8xf32> to vector<64x8xf32>
    %193 = vector.extract_strided_slice %7 {offsets = [19, 0], sizes = [1, 8], strides = [1, 1]} : vector<49x8xf32> to vector<1x8xf32>
    %194 = vector.broadcast %193 : vector<1x8xf32> to vector<64x8xf32>
    %195 = arith.mulf %192, %194 : vector<64x8xf32>
    %196 = arith.addf %191, %195 : vector<64x8xf32>
    %197 = vector.extract_strided_slice %182 {offsets = [48, 0], sizes = [64, 8], strides = [1, 1]} : vector<160x8xf32> to vector<64x8xf32>
    %198 = vector.extract_strided_slice %7 {offsets = [26, 0], sizes = [1, 8], strides = [1, 1]} : vector<49x8xf32> to vector<1x8xf32>
    %199 = vector.broadcast %198 : vector<1x8xf32> to vector<64x8xf32>
    %200 = arith.mulf %197, %199 : vector<64x8xf32>
    %201 = arith.addf %196, %200 : vector<64x8xf32>
    %202 = vector.extract_strided_slice %182 {offsets = [64, 0], sizes = [64, 8], strides = [1, 1]} : vector<160x8xf32> to vector<64x8xf32>
    %203 = vector.extract_strided_slice %7 {offsets = [33, 0], sizes = [1, 8], strides = [1, 1]} : vector<49x8xf32> to vector<1x8xf32>
    %204 = vector.broadcast %203 : vector<1x8xf32> to vector<64x8xf32>
    %205 = arith.mulf %202, %204 : vector<64x8xf32>
    %206 = arith.addf %201, %205 : vector<64x8xf32>
    %207 = vector.extract_strided_slice %182 {offsets = [80, 0], sizes = [64, 8], strides = [1, 1]} : vector<160x8xf32> to vector<64x8xf32>
    %208 = vector.extract_strided_slice %7 {offsets = [40, 0], sizes = [1, 8], strides = [1, 1]} : vector<49x8xf32> to vector<1x8xf32>
    %209 = vector.broadcast %208 : vector<1x8xf32> to vector<64x8xf32>
    %210 = arith.mulf %207, %209 : vector<64x8xf32>
    %211 = arith.addf %206, %210 : vector<64x8xf32>
    %212 = vector.extract_strided_slice %182 {offsets = [96, 0], sizes = [64, 8], strides = [1, 1]} : vector<160x8xf32> to vector<64x8xf32>
    %213 = vector.extract_strided_slice %7 {offsets = [47, 0], sizes = [1, 8], strides = [1, 1]} : vector<49x8xf32> to vector<1x8xf32>
    %214 = vector.broadcast %213 : vector<1x8xf32> to vector<64x8xf32>
    %215 = arith.mulf %212, %214 : vector<64x8xf32>
    %216 = arith.addf %211, %215 : vector<64x8xf32>
    %c157_i32 = arith.constant 157 : i32
    %217 = tpu.dynamic_rotate %6 by %c157_i32 dim 0 : vector<160x8xf32>, i32 -> vector<160x8xf32>
    %218 = vector.extract_strided_slice %217 {offsets = [0, 0], sizes = [64, 8], strides = [1, 1]} : vector<160x8xf32> to vector<64x8xf32>
    %219 = vector.extract_strided_slice %7 {offsets = [6, 0], sizes = [1, 8], strides = [1, 1]} : vector<49x8xf32> to vector<1x8xf32>
    %220 = vector.broadcast %219 : vector<1x8xf32> to vector<64x8xf32>
    %221 = arith.mulf %218, %220 : vector<64x8xf32>
    %222 = vector.extract_strided_slice %217 {offsets = [16, 0], sizes = [64, 8], strides = [1, 1]} : vector<160x8xf32> to vector<64x8xf32>
    %223 = vector.extract_strided_slice %7 {offsets = [13, 0], sizes = [1, 8], strides = [1, 1]} : vector<49x8xf32> to vector<1x8xf32>
    %224 = vector.broadcast %223 : vector<1x8xf32> to vector<64x8xf32>
    %225 = arith.mulf %222, %224 : vector<64x8xf32>
    %226 = arith.addf %221, %225 : vector<64x8xf32>
    %227 = vector.extract_strided_slice %217 {offsets = [32, 0], sizes = [64, 8], strides = [1, 1]} : vector<160x8xf32> to vector<64x8xf32>
    %228 = vector.extract_strided_slice %7 {offsets = [20, 0], sizes = [1, 8], strides = [1, 1]} : vector<49x8xf32> to vector<1x8xf32>
    %229 = vector.broadcast %228 : vector<1x8xf32> to vector<64x8xf32>
    %230 = arith.mulf %227, %229 : vector<64x8xf32>
    %231 = arith.addf %226, %230 : vector<64x8xf32>
    %232 = vector.extract_strided_slice %217 {offsets = [48, 0], sizes = [64, 8], strides = [1, 1]} : vector<160x8xf32> to vector<64x8xf32>
    %233 = vector.extract_strided_slice %7 {offsets = [27, 0], sizes = [1, 8], strides = [1, 1]} : vector<49x8xf32> to vector<1x8xf32>
    %234 = vector.broadcast %233 : vector<1x8xf32> to vector<64x8xf32>
    %235 = arith.mulf %232, %234 : vector<64x8xf32>
    %236 = arith.addf %231, %235 : vector<64x8xf32>
    %237 = vector.extract_strided_slice %217 {offsets = [64, 0], sizes = [64, 8], strides = [1, 1]} : vector<160x8xf32> to vector<64x8xf32>
    %238 = vector.extract_strided_slice %7 {offsets = [34, 0], sizes = [1, 8], strides = [1, 1]} : vector<49x8xf32> to vector<1x8xf32>
    %239 = vector.broadcast %238 : vector<1x8xf32> to vector<64x8xf32>
    %240 = arith.mulf %237, %239 : vector<64x8xf32>
    %241 = arith.addf %236, %240 : vector<64x8xf32>
    %242 = vector.extract_strided_slice %217 {offsets = [80, 0], sizes = [64, 8], strides = [1, 1]} : vector<160x8xf32> to vector<64x8xf32>
    %243 = vector.extract_strided_slice %7 {offsets = [41, 0], sizes = [1, 8], strides = [1, 1]} : vector<49x8xf32> to vector<1x8xf32>
    %244 = vector.broadcast %243 : vector<1x8xf32> to vector<64x8xf32>
    %245 = arith.mulf %242, %244 : vector<64x8xf32>
    %246 = arith.addf %241, %245 : vector<64x8xf32>
    %247 = vector.extract_strided_slice %217 {offsets = [96, 0], sizes = [64, 8], strides = [1, 1]} : vector<160x8xf32> to vector<64x8xf32>
    %248 = vector.extract_strided_slice %7 {offsets = [48, 0], sizes = [1, 8], strides = [1, 1]} : vector<49x8xf32> to vector<1x8xf32>
    %249 = vector.broadcast %248 : vector<1x8xf32> to vector<64x8xf32>
    %250 = arith.mulf %247, %249 : vector<64x8xf32>
    %251 = arith.addf %246, %250 : vector<64x8xf32>
    %252 = arith.addf %43, %78 : vector<64x8xf32>
    %253 = arith.addf %113, %146 : vector<64x8xf32>
    %254 = arith.addf %181, %216 : vector<64x8xf32>
    %255 = arith.addf %252, %253 : vector<64x8xf32>
    %256 = arith.addf %254, %251 : vector<64x8xf32>
    %257 = arith.addf %255, %256 : vector<64x8xf32>
    %c0_4 = arith.constant 0 : index
    %c0_5 = arith.constant 0 : index
    %258 = vector.load %arg5[%c0_4, %c0_5] : memref<1x8xf32, #tpu.memory_space<vmem>>, vector<1x8xf32>
    %259 = vector.broadcast %258 : vector<1x8xf32> to vector<64x8xf32>
    %260 = arith.addf %257, %259 : vector<64x8xf32>
    %c0_6 = arith.constant 0 : index
    %c0_7 = arith.constant 0 : index
    %261 = vector.load %arg6[%c0_6, %c0_7] : memref<1x8xf32, #tpu.memory_space<vmem>>, vector<1x8xf32>
    %c0_8 = arith.constant 0 : index
    %c0_9 = arith.constant 0 : index
    %262 = vector.load %arg7[%c0_8, %c0_9] : memref<1x8xf32, #tpu.memory_space<vmem>>, vector<1x8xf32>
    %cst = arith.constant dense<0.000000e+00> : vector<64xf32>
    %263 = vector.multi_reduction <add>, %260, %cst [1] : vector<64x8xf32> to vector<64xf32>
    %264 = vector.shape_cast %263 : vector<64xf32> to vector<64x1xf32>
    %cst_10 = arith.constant 8.000000e+00 : f32
    %265 = vector.broadcast %cst_10 : f32 to vector<64x1xf32>
    %266 = arith.divf %264, %265 : vector<64x1xf32>
    %267 = arith.mulf %260, %260 : vector<64x8xf32>
    %cst_11 = arith.constant dense<0.000000e+00> : vector<64xf32>
    %268 = vector.multi_reduction <add>, %267, %cst_11 [1] : vector<64x8xf32> to vector<64xf32>
    %269 = vector.shape_cast %268 : vector<64xf32> to vector<64x1xf32>
    %cst_12 = arith.constant 8.000000e+00 : f32
    %270 = vector.broadcast %cst_12 : f32 to vector<64x1xf32>
    %271 = arith.divf %269, %270 : vector<64x1xf32>
    %272 = arith.mulf %266, %266 : vector<64x1xf32>
    %273 = arith.subf %271, %272 : vector<64x1xf32>
    %cst_13 = arith.constant 0.000000e+00 : f32
    %274 = vector.broadcast %cst_13 : f32 to vector<64x1xf32>
    %275 = arith.maximumf %273, %274 : vector<64x1xf32>
    %276 = vector.broadcast %266 : vector<64x1xf32> to vector<64x8xf32>
    %277 = arith.subf %260, %276 : vector<64x8xf32>
    %cst_14 = arith.constant 9.99999997E-7 : f32
    %278 = vector.broadcast %cst_14 : f32 to vector<64x1xf32>
    %279 = arith.addf %275, %278 : vector<64x1xf32>
    %280 = math.rsqrt %279 : vector<64x1xf32>
    %281 = vector.broadcast %280 : vector<64x1xf32> to vector<64x8xf32>
    %282 = arith.mulf %277, %281 : vector<64x8xf32>
    %283 = vector.broadcast %261 : vector<1x8xf32> to vector<64x8xf32>
    %284 = arith.mulf %282, %283 : vector<64x8xf32>
    %285 = vector.broadcast %262 : vector<1x8xf32> to vector<64x8xf32>
    %286 = arith.addf %284, %285 : vector<64x8xf32>
    %287 = arith.truncf %286 : vector<64x8xf32> to vector<64x8xbf16>
    %c0_15 = arith.constant 0 : index
    %c0_16 = arith.constant 0 : index
    %288 = vector.load %arg8[%c0_15, %c0_16] : memref<8x32xbf16, #tpu.memory_space<vmem>>, vector<8x32xbf16>
    %cst_17 = arith.constant dense<0.000000e+00> : vector<64x32xf32>
    %289 = tpu.matmul %287, %288, %cst_17 {dimension_numbers = #tpu.dot_dimension_numbers<[1], [0], [0], [1], [0, 0, 1, 1], [], []>} : vector<64x8xbf16>, vector<8x32xbf16>, vector<64x32xf32> -> vector<64x32xf32>
    %c0_18 = arith.constant 0 : index
    %c0_19 = arith.constant 0 : index
    %290 = vector.load %arg9[%c0_18, %c0_19] : memref<1x32xf32, #tpu.memory_space<vmem>>, vector<1x32xf32>
    %291 = vector.broadcast %290 : vector<1x32xf32> to vector<64x32xf32>
    %292 = arith.addf %289, %291 : vector<64x32xf32>
    %293 = arith.mulf %292, %292 : vector<64x32xf32>
    %294 = arith.mulf %292, %293 : vector<64x32xf32>
    %cst_20 = arith.constant 4.471500e-02 : f32
    %295 = vector.broadcast %cst_20 : f32 to vector<64x32xf32>
    %296 = arith.mulf %295, %294 : vector<64x32xf32>
    %297 = arith.addf %292, %296 : vector<64x32xf32>
    %cst_21 = arith.constant 0.797884583 : f32
    %298 = vector.broadcast %cst_21 : f32 to vector<64x32xf32>
    %299 = arith.mulf %298, %297 : vector<64x32xf32>
    %300 = math.tanh %299 : vector<64x32xf32>
    %cst_22 = arith.constant 1.000000e+00 : f32
    %301 = vector.broadcast %cst_22 : f32 to vector<64x32xf32>
    %302 = arith.addf %301, %300 : vector<64x32xf32>
    %cst_23 = arith.constant 5.000000e-01 : f32
    %303 = vector.broadcast %cst_23 : f32 to vector<64x32xf32>
    %304 = arith.mulf %303, %302 : vector<64x32xf32>
    %305 = arith.mulf %292, %304 : vector<64x32xf32>
    %306 = arith.truncf %305 : vector<64x32xf32> to vector<64x32xbf16>
    %c0_24 = arith.constant 0 : index
    %c0_25 = arith.constant 0 : index
    %307 = vector.load %arg10[%c0_24, %c0_25] : memref<32x8xbf16, #tpu.memory_space<vmem>>, vector<32x8xbf16>
    %cst_26 = arith.constant dense<0.000000e+00> : vector<64x8xf32>
    %308 = tpu.matmul %306, %307, %cst_26 {dimension_numbers = #tpu.dot_dimension_numbers<[1], [0], [0], [1], [0, 0, 1, 1], [], []>} : vector<64x32xbf16>, vector<32x8xbf16>, vector<64x8xf32> -> vector<64x8xf32>
    %c0_27 = arith.constant 0 : index
    %c0_28 = arith.constant 0 : index
    %309 = vector.load %arg11[%c0_27, %c0_28] : memref<1x8xf32, #tpu.memory_space<vmem>>, vector<1x8xf32>
    %310 = vector.broadcast %309 : vector<1x8xf32> to vector<64x8xf32>
    %311 = arith.addf %308, %310 : vector<64x8xf32>
    %c0_29 = arith.constant 0 : index
    %c0_30 = arith.constant 0 : index
    %312 = vector.load %arg12[%c0_29, %c0_30] : memref<1x8xf32, #tpu.memory_space<vmem>>, vector<1x8xf32>
    %313 = vector.broadcast %312 : vector<1x8xf32> to vector<64x8xf32>
    %314 = arith.mulf %311, %313 : vector<64x8xf32>
    %315 = arith.addf %314, %8 : vector<64x8xf32>
    %c0_31 = arith.constant 0 : index
    %c0_32 = arith.constant 0 : index
    %316 = vector.load %arg13[%c0_31, %c0_32] : memref<1x8xf32, #tpu.memory_space<vmem>>, vector<1x8xf32>
    %c0_33 = arith.constant 0 : index
    %c0_34 = arith.constant 0 : index
    %317 = vector.load %arg14[%c0_33, %c0_34] : memref<1x8xf32, #tpu.memory_space<vmem>>, vector<1x8xf32>
    %cst_35 = arith.constant dense<0.000000e+00> : vector<64xf32>
    %318 = vector.multi_reduction <add>, %315, %cst_35 [1] : vector<64x8xf32> to vector<64xf32>
    %319 = vector.shape_cast %318 : vector<64xf32> to vector<64x1xf32>
    %cst_36 = arith.constant 8.000000e+00 : f32
    %320 = vector.broadcast %cst_36 : f32 to vector<64x1xf32>
    %321 = arith.divf %319, %320 : vector<64x1xf32>
    %322 = arith.mulf %315, %315 : vector<64x8xf32>
    %cst_37 = arith.constant dense<0.000000e+00> : vector<64xf32>
    %323 = vector.multi_reduction <add>, %322, %cst_37 [1] : vector<64x8xf32> to vector<64xf32>
    %324 = vector.shape_cast %323 : vector<64xf32> to vector<64x1xf32>
    %cst_38 = arith.constant 8.000000e+00 : f32
    %325 = vector.broadcast %cst_38 : f32 to vector<64x1xf32>
    %326 = arith.divf %324, %325 : vector<64x1xf32>
    %327 = arith.mulf %321, %321 : vector<64x1xf32>
    %328 = arith.subf %326, %327 : vector<64x1xf32>
    %cst_39 = arith.constant 0.000000e+00 : f32
    %329 = vector.broadcast %cst_39 : f32 to vector<64x1xf32>
    %330 = arith.maximumf %328, %329 : vector<64x1xf32>
    %331 = vector.broadcast %321 : vector<64x1xf32> to vector<64x8xf32>
    %332 = arith.subf %315, %331 : vector<64x8xf32>
    %cst_40 = arith.constant 9.99999997E-7 : f32
    %333 = vector.broadcast %cst_40 : f32 to vector<64x1xf32>
    %334 = arith.addf %330, %333 : vector<64x1xf32>
    %335 = math.rsqrt %334 : vector<64x1xf32>
    %336 = vector.broadcast %335 : vector<64x1xf32> to vector<64x8xf32>
    %337 = arith.mulf %332, %336 : vector<64x8xf32>
    %338 = vector.broadcast %316 : vector<1x8xf32> to vector<64x8xf32>
    %339 = arith.mulf %337, %338 : vector<64x8xf32>
    %340 = vector.broadcast %317 : vector<1x8xf32> to vector<64x8xf32>
    %341 = arith.addf %339, %340 : vector<64x8xf32>
    %c0_41 = arith.constant 0 : index
    %c0_42 = arith.constant 0 : index
    %342 = vector.load %arg3[%c0_41, %c0_42] : memref<64x1xf32, #tpu.memory_space<vmem>>, vector<64x1xf32>
    %343 = vector.broadcast %342 : vector<64x1xf32> to vector<64x8xf32>
    %344 = arith.mulf %341, %343 : vector<64x8xf32>
    %c0_43 = arith.constant 0 : index
    %c0_44 = arith.constant 0 : index
    %c0_45 = arith.constant 0 : index
    %345 = vector.load %arg15[%c0_43, %c0_44, %c0_45] : memref<1x64x8xf32, #tpu.memory_space<vmem>>, vector<1x64x8xf32>
    %346 = vector.shape_cast %345 : vector<1x64x8xf32> to vector<64x8xf32>
    %347 = vector.shape_cast %344 : vector<64x8xf32> to vector<1x64x8xf32>
    tpu.vector_store %arg15[%c0_43, %c0_44, %c0_45], %347 {strides = array<i32>} : memref<1x64x8xf32, #tpu.memory_space<vmem>>, vector<1x64x8xf32>,
    return
  }
  func.func @transform_0(%arg0: i32, %arg1: i32) -> (i32, i32, i32) {
    %c0_i32 = arith.constant 0 : i32
    %c0_i32_0 = arith.constant 0 : i32
    %c0_i32_1 = arith.constant 0 : i32
    return %arg0, %c0_i32, %c0_i32_0 : i32, i32, i32
  }
  func.func @transform_1(%arg0: i32, %arg1: i32) -> (i32, i32) {
    %c0_i32 = arith.constant 0 : i32
    %c0_i32_0 = arith.constant 0 : i32
    %c0_i32_1 = arith.constant 0 : i32
    return %c0_i32, %c0_i32_0 : i32, i32
  }
  func.func @transform_2(%arg0: i32, %arg1: i32) -> (i32, i32) {
    %c0_i32 = arith.constant 0 : i32
    %c0_i32_0 = arith.constant 0 : i32
    %c0_i32_1 = arith.constant 0 : i32
    return %c0_i32, %c0_i32_0 : i32, i32
  }
  func.func @transform_3(%arg0: i32, %arg1: i32) -> (i32, i32) {
    %c0_i32 = arith.constant 0 : i32
    %c0_i32_0 = arith.constant 0 : i32
    %c0_i32_1 = arith.constant 0 : i32
    return %c0_i32, %c0_i32_0 : i32, i32
  }
  func.func @transform_4(%arg0: i32, %arg1: i32) -> (i32, i32) {
    %c0_i32 = arith.constant 0 : i32
    %c0_i32_0 = arith.constant 0 : i32
    %c0_i32_1 = arith.constant 0 : i32
    return %c0_i32, %c0_i32_0 : i32, i32
  }
  func.func @transform_5(%arg0: i32, %arg1: i32) -> (i32, i32) {
    %c0_i32 = arith.constant 0 : i32
    %c0_i32_0 = arith.constant 0 : i32
    %c0_i32_1 = arith.constant 0 : i32
    return %c0_i32, %c0_i32_0 : i32, i32
  }
  func.func @transform_6(%arg0: i32, %arg1: i32) -> (i32, i32) {
    %c0_i32 = arith.constant 0 : i32
    %c0_i32_0 = arith.constant 0 : i32
    %c0_i32_1 = arith.constant 0 : i32
    return %c0_i32, %c0_i32_0 : i32, i32
  }
  func.func @transform_7(%arg0: i32, %arg1: i32) -> (i32, i32) {
    %c0_i32 = arith.constant 0 : i32
    %c0_i32_0 = arith.constant 0 : i32
    %c0_i32_1 = arith.constant 0 : i32
    return %c0_i32, %c0_i32_0 : i32, i32
  }
  func.func @transform_8(%arg0: i32, %arg1: i32) -> (i32, i32) {
    %c0_i32 = arith.constant 0 : i32
    %c0_i32_0 = arith.constant 0 : i32
    %c0_i32_1 = arith.constant 0 : i32
    return %c0_i32, %c0_i32_0 : i32, i32
  }
  func.func @transform_9(%arg0: i32, %arg1: i32) -> (i32, i32) {
    %c0_i32 = arith.constant 0 : i32
    %c0_i32_0 = arith.constant 0 : i32
    %c0_i32_1 = arith.constant 0 : i32
    return %c0_i32, %c0_i32_0 : i32, i32
  }
  func.func @transform_10(%arg0: i32, %arg1: i32) -> (i32, i32) {
    %c0_i32 = arith.constant 0 : i32
    %c0_i32_0 = arith.constant 0 : i32
    %c0_i32_1 = arith.constant 0 : i32
    return %c0_i32, %c0_i32_0 : i32, i32
  }
  func.func @transform_11(%arg0: i32, %arg1: i32) -> (i32, i32) {
    %c0_i32 = arith.constant 0 : i32
    %c0_i32_0 = arith.constant 0 : i32
    %c0_i32_1 = arith.constant 0 : i32
    return %c0_i32, %c0_i32_0 : i32, i32
  }
  func.func @transform_12(%arg0: i32, %arg1: i32) -> (i32, i32) {
    %c0_i32 = arith.constant 0 : i32
    %c0_i32_0 = arith.constant 0 : i32
    %c0_i32_1 = arith.constant 0 : i32
    return %c0_i32, %c0_i32_0 : i32, i32
  }
  func.func @transform_13(%arg0: i32, %arg1: i32) -> (i32, i32, i32) {
    %c1_i32 = arith.constant 1 : i32
    %0 = arith.addi %c1_i32, %arg1 : i32
    %c0_i32 = arith.constant 0 : i32
    %c0_i32_0 = arith.constant 0 : i32
    return %arg0, %0, %c0_i32 : i32, i32, i32
  }
}

module attributes {stable_mosaic.version = 11 : i64} {
  func.func @cnblock_kernel(%arg0: i32, %arg1: i32, %arg2: memref<1x80x16xf32, #tpu.memory_space<vmem>>, %arg3: memref<16x1xf32, #tpu.memory_space<vmem>>, %arg4: memref<49x16xf32, #tpu.memory_space<vmem>>, %arg5: memref<1x16xf32, #tpu.memory_space<vmem>>, %arg6: memref<1x16xf32, #tpu.memory_space<vmem>>, %arg7: memref<1x16xf32, #tpu.memory_space<vmem>>, %arg8: memref<16x64xbf16, #tpu.memory_space<vmem>>, %arg9: memref<1x64xf32, #tpu.memory_space<vmem>>, %arg10: memref<64x16xbf16, #tpu.memory_space<vmem>>, %arg11: memref<1x16xf32, #tpu.memory_space<vmem>>, %arg12: memref<1x16xf32, #tpu.memory_space<vmem>>, %arg13: memref<1x16xf32, #tpu.memory_space<vmem>>, %arg14: memref<1x16xf32, #tpu.memory_space<vmem>>, %arg15: memref<1x16x16xf32, #tpu.memory_space<vmem>>) attributes {dimension_semantics = [#tpu.dimension_semantics<parallel>, #tpu.dimension_semantics<arbitrary>], iteration_bounds = array<i64: 2, 1>, scalar_prefetch = 0 : i64, scratch_operands = 0 : i64, tpu.core_type = #tpu.core_type<tc>, window_params = [{transform_indices = @transform_0, window_bounds = array<i64: 1, 80, 16>}, {pipeline_mode = #tpu.pipeline_mode<synchronous>, transform_indices = @transform_1, window_bounds = array<i64: 16, 1>}, {pipeline_mode = #tpu.pipeline_mode<synchronous>, transform_indices = @transform_2, window_bounds = array<i64: 49, 16>}, {pipeline_mode = #tpu.pipeline_mode<synchronous>, transform_indices = @transform_3, window_bounds = array<i64: 1, 16>}, {pipeline_mode = #tpu.pipeline_mode<synchronous>, transform_indices = @transform_4, window_bounds = array<i64: 1, 16>}, {pipeline_mode = #tpu.pipeline_mode<synchronous>, transform_indices = @transform_5, window_bounds = array<i64: 1, 16>}, {pipeline_mode = #tpu.pipeline_mode<synchronous>, transform_indices = @transform_6, window_bounds = array<i64: 16, 64>}, {pipeline_mode = #tpu.pipeline_mode<synchronous>, transform_indices = @transform_7, window_bounds = array<i64: 1, 64>}, {pipeline_mode = #tpu.pipeline_mode<synchronous>, transform_indices = @transform_8, window_bounds = array<i64: 64, 16>}, {pipeline_mode = #tpu.pipeline_mode<synchronous>, transform_indices = @transform_9, window_bounds = array<i64: 1, 16>}, {pipeline_mode = #tpu.pipeline_mode<synchronous>, transform_indices = @transform_10, window_bounds = array<i64: 1, 16>}, {pipeline_mode = #tpu.pipeline_mode<synchronous>, transform_indices = @transform_11, window_bounds = array<i64: 1, 16>}, {pipeline_mode = #tpu.pipeline_mode<synchronous>, transform_indices = @transform_12, window_bounds = array<i64: 1, 16>}, {transform_indices = @transform_13, window_bounds = array<i64: 1, 16, 16>}]} {
    %c2_i32 = arith.constant 2 : i32
    %0 = arith.muli %arg1, %c2_i32 : i32
    %c1_i32 = arith.constant 1 : i32
    %1 = arith.addi %c1_i32, %0 : i32
    %c8_i32 = arith.constant 8 : i32
    %2 = arith.muli %1, %c8_i32 : i32
    %3 = tpu.assume_multiple %2, 8 : i32
    %c0 = arith.constant 0 : index
    %4 = arith.index_cast %3 : i32 to index
    %c0_0 = arith.constant 0 : index
    %5 = vector.load %arg2[%c0, %4, %c0_0] : memref<1x80x16xf32, #tpu.memory_space<vmem>>, vector<1x64x16xf32>
    %6 = vector.shape_cast %5 : vector<1x64x16xf32> to vector<64x16xf32>
    %c0_1 = arith.constant 0 : index
    %c0_2 = arith.constant 0 : index
    %7 = vector.load %arg4[%c0_1, %c0_2] : memref<49x16xf32, #tpu.memory_space<vmem>>, vector<49x16xf32>
    %8 = vector.extract_strided_slice %6 {offsets = [24, 0], sizes = [16, 16], strides = [1, 1]} : vector<64x16xf32> to vector<16x16xf32>
    %c3_i32 = arith.constant 3 : i32
    %9 = tpu.dynamic_rotate %6 by %c3_i32 dim 0 : vector<64x16xf32>, i32 -> vector<64x16xf32>
    %10 = vector.extract_strided_slice %9 {offsets = [0, 0], sizes = [16, 16], strides = [1, 1]} : vector<64x16xf32> to vector<16x16xf32>
    %11 = vector.extract_strided_slice %7 {offsets = [0, 0], sizes = [1, 16], strides = [1, 1]} : vector<49x16xf32> to vector<1x16xf32>
    %12 = vector.broadcast %11 : vector<1x16xf32> to vector<16x16xf32>
    %13 = arith.mulf %10, %12 : vector<16x16xf32>
    %14 = vector.extract_strided_slice %9 {offsets = [8, 0], sizes = [16, 16], strides = [1, 1]} : vector<64x16xf32> to vector<16x16xf32>
    %15 = vector.extract_strided_slice %7 {offsets = [7, 0], sizes = [1, 16], strides = [1, 1]} : vector<49x16xf32> to vector<1x16xf32>
    %16 = vector.broadcast %15 : vector<1x16xf32> to vector<16x16xf32>
    %17 = arith.mulf %14, %16 : vector<16x16xf32>
    %18 = arith.addf %13, %17 : vector<16x16xf32>
    %19 = vector.extract_strided_slice %9 {offsets = [16, 0], sizes = [16, 16], strides = [1, 1]} : vector<64x16xf32> to vector<16x16xf32>
    %20 = vector.extract_strided_slice %7 {offsets = [14, 0], sizes = [1, 16], strides = [1, 1]} : vector<49x16xf32> to vector<1x16xf32>
    %21 = vector.broadcast %20 : vector<1x16xf32> to vector<16x16xf32>
    %22 = arith.mulf %19, %21 : vector<16x16xf32>
    %23 = arith.addf %18, %22 : vector<16x16xf32>
    %24 = vector.extract_strided_slice %9 {offsets = [24, 0], sizes = [16, 16], strides = [1, 1]} : vector<64x16xf32> to vector<16x16xf32>
    %25 = vector.extract_strided_slice %7 {offsets = [21, 0], sizes = [1, 16], strides = [1, 1]} : vector<49x16xf32> to vector<1x16xf32>
    %26 = vector.broadcast %25 : vector<1x16xf32> to vector<16x16xf32>
    %27 = arith.mulf %24, %26 : vector<16x16xf32>
    %28 = arith.addf %23, %27 : vector<16x16xf32>
    %29 = vector.extract_strided_slice %9 {offsets = [32, 0], sizes = [16, 16], strides = [1, 1]} : vector<64x16xf32> to vector<16x16xf32>
    %30 = vector.extract_strided_slice %7 {offsets = [28, 0], sizes = [1, 16], strides = [1, 1]} : vector<49x16xf32> to vector<1x16xf32>
    %31 = vector.broadcast %30 : vector<1x16xf32> to vector<16x16xf32>
    %32 = arith.mulf %29, %31 : vector<16x16xf32>
    %33 = arith.addf %28, %32 : vector<16x16xf32>
    %34 = vector.extract_strided_slice %9 {offsets = [40, 0], sizes = [16, 16], strides = [1, 1]} : vector<64x16xf32> to vector<16x16xf32>
    %35 = vector.extract_strided_slice %7 {offsets = [35, 0], sizes = [1, 16], strides = [1, 1]} : vector<49x16xf32> to vector<1x16xf32>
    %36 = vector.broadcast %35 : vector<1x16xf32> to vector<16x16xf32>
    %37 = arith.mulf %34, %36 : vector<16x16xf32>
    %38 = arith.addf %33, %37 : vector<16x16xf32>
    %39 = vector.extract_strided_slice %9 {offsets = [48, 0], sizes = [16, 16], strides = [1, 1]} : vector<64x16xf32> to vector<16x16xf32>
    %40 = vector.extract_strided_slice %7 {offsets = [42, 0], sizes = [1, 16], strides = [1, 1]} : vector<49x16xf32> to vector<1x16xf32>
    %41 = vector.broadcast %40 : vector<1x16xf32> to vector<16x16xf32>
    %42 = arith.mulf %39, %41 : vector<16x16xf32>
    %43 = arith.addf %38, %42 : vector<16x16xf32>
    %c2_i32_3 = arith.constant 2 : i32
    %44 = tpu.dynamic_rotate %6 by %c2_i32_3 dim 0 : vector<64x16xf32>, i32 -> vector<64x16xf32>
    %45 = vector.extract_strided_slice %44 {offsets = [0, 0], sizes = [16, 16], strides = [1, 1]} : vector<64x16xf32> to vector<16x16xf32>
    %46 = vector.extract_strided_slice %7 {offsets = [1, 0], sizes = [1, 16], strides = [1, 1]} : vector<49x16xf32> to vector<1x16xf32>
    %47 = vector.broadcast %46 : vector<1x16xf32> to vector<16x16xf32>
    %48 = arith.mulf %45, %47 : vector<16x16xf32>
    %49 = vector.extract_strided_slice %44 {offsets = [8, 0], sizes = [16, 16], strides = [1, 1]} : vector<64x16xf32> to vector<16x16xf32>
    %50 = vector.extract_strided_slice %7 {offsets = [8, 0], sizes = [1, 16], strides = [1, 1]} : vector<49x16xf32> to vector<1x16xf32>
    %51 = vector.broadcast %50 : vector<1x16xf32> to vector<16x16xf32>
    %52 = arith.mulf %49, %51 : vector<16x16xf32>
    %53 = arith.addf %48, %52 : vector<16x16xf32>
    %54 = vector.extract_strided_slice %44 {offsets = [16, 0], sizes = [16, 16], strides = [1, 1]} : vector<64x16xf32> to vector<16x16xf32>
    %55 = vector.extract_strided_slice %7 {offsets = [15, 0], sizes = [1, 16], strides = [1, 1]} : vector<49x16xf32> to vector<1x16xf32>
    %56 = vector.broadcast %55 : vector<1x16xf32> to vector<16x16xf32>
    %57 = arith.mulf %54, %56 : vector<16x16xf32>
    %58 = arith.addf %53, %57 : vector<16x16xf32>
    %59 = vector.extract_strided_slice %44 {offsets = [24, 0], sizes = [16, 16], strides = [1, 1]} : vector<64x16xf32> to vector<16x16xf32>
    %60 = vector.extract_strided_slice %7 {offsets = [22, 0], sizes = [1, 16], strides = [1, 1]} : vector<49x16xf32> to vector<1x16xf32>
    %61 = vector.broadcast %60 : vector<1x16xf32> to vector<16x16xf32>
    %62 = arith.mulf %59, %61 : vector<16x16xf32>
    %63 = arith.addf %58, %62 : vector<16x16xf32>
    %64 = vector.extract_strided_slice %44 {offsets = [32, 0], sizes = [16, 16], strides = [1, 1]} : vector<64x16xf32> to vector<16x16xf32>
    %65 = vector.extract_strided_slice %7 {offsets = [29, 0], sizes = [1, 16], strides = [1, 1]} : vector<49x16xf32> to vector<1x16xf32>
    %66 = vector.broadcast %65 : vector<1x16xf32> to vector<16x16xf32>
    %67 = arith.mulf %64, %66 : vector<16x16xf32>
    %68 = arith.addf %63, %67 : vector<16x16xf32>
    %69 = vector.extract_strided_slice %44 {offsets = [40, 0], sizes = [16, 16], strides = [1, 1]} : vector<64x16xf32> to vector<16x16xf32>
    %70 = vector.extract_strided_slice %7 {offsets = [36, 0], sizes = [1, 16], strides = [1, 1]} : vector<49x16xf32> to vector<1x16xf32>
    %71 = vector.broadcast %70 : vector<1x16xf32> to vector<16x16xf32>
    %72 = arith.mulf %69, %71 : vector<16x16xf32>
    %73 = arith.addf %68, %72 : vector<16x16xf32>
    %74 = vector.extract_strided_slice %44 {offsets = [48, 0], sizes = [16, 16], strides = [1, 1]} : vector<64x16xf32> to vector<16x16xf32>
    %75 = vector.extract_strided_slice %7 {offsets = [43, 0], sizes = [1, 16], strides = [1, 1]} : vector<49x16xf32> to vector<1x16xf32>
    %76 = vector.broadcast %75 : vector<1x16xf32> to vector<16x16xf32>
    %77 = arith.mulf %74, %76 : vector<16x16xf32>
    %78 = arith.addf %73, %77 : vector<16x16xf32>
    %c1_i32_4 = arith.constant 1 : i32
    %79 = tpu.dynamic_rotate %6 by %c1_i32_4 dim 0 : vector<64x16xf32>, i32 -> vector<64x16xf32>
    %80 = vector.extract_strided_slice %79 {offsets = [0, 0], sizes = [16, 16], strides = [1, 1]} : vector<64x16xf32> to vector<16x16xf32>
    %81 = vector.extract_strided_slice %7 {offsets = [2, 0], sizes = [1, 16], strides = [1, 1]} : vector<49x16xf32> to vector<1x16xf32>
    %82 = vector.broadcast %81 : vector<1x16xf32> to vector<16x16xf32>
    %83 = arith.mulf %80, %82 : vector<16x16xf32>
    %84 = vector.extract_strided_slice %79 {offsets = [8, 0], sizes = [16, 16], strides = [1, 1]} : vector<64x16xf32> to vector<16x16xf32>
    %85 = vector.extract_strided_slice %7 {offsets = [9, 0], sizes = [1, 16], strides = [1, 1]} : vector<49x16xf32> to vector<1x16xf32>
    %86 = vector.broadcast %85 : vector<1x16xf32> to vector<16x16xf32>
    %87 = arith.mulf %84, %86 : vector<16x16xf32>
    %88 = arith.addf %83, %87 : vector<16x16xf32>
    %89 = vector.extract_strided_slice %79 {offsets = [16, 0], sizes = [16, 16], strides = [1, 1]} : vector<64x16xf32> to vector<16x16xf32>
    %90 = vector.extract_strided_slice %7 {offsets = [16, 0], sizes = [1, 16], strides = [1, 1]} : vector<49x16xf32> to vector<1x16xf32>
    %91 = vector.broadcast %90 : vector<1x16xf32> to vector<16x16xf32>
    %92 = arith.mulf %89, %91 : vector<16x16xf32>
    %93 = arith.addf %88, %92 : vector<16x16xf32>
    %94 = vector.extract_strided_slice %79 {offsets = [24, 0], sizes = [16, 16], strides = [1, 1]} : vector<64x16xf32> to vector<16x16xf32>
    %95 = vector.extract_strided_slice %7 {offsets = [23, 0], sizes = [1, 16], strides = [1, 1]} : vector<49x16xf32> to vector<1x16xf32>
    %96 = vector.broadcast %95 : vector<1x16xf32> to vector<16x16xf32>
    %97 = arith.mulf %94, %96 : vector<16x16xf32>
    %98 = arith.addf %93, %97 : vector<16x16xf32>
    %99 = vector.extract_strided_slice %79 {offsets = [32, 0], sizes = [16, 16], strides = [1, 1]} : vector<64x16xf32> to vector<16x16xf32>
    %100 = vector.extract_strided_slice %7 {offsets = [30, 0], sizes = [1, 16], strides = [1, 1]} : vector<49x16xf32> to vector<1x16xf32>
    %101 = vector.broadcast %100 : vector<1x16xf32> to vector<16x16xf32>
    %102 = arith.mulf %99, %101 : vector<16x16xf32>
    %103 = arith.addf %98, %102 : vector<16x16xf32>
    %104 = vector.extract_strided_slice %79 {offsets = [40, 0], sizes = [16, 16], strides = [1, 1]} : vector<64x16xf32> to vector<16x16xf32>
    %105 = vector.extract_strided_slice %7 {offsets = [37, 0], sizes = [1, 16], strides = [1, 1]} : vector<49x16xf32> to vector<1x16xf32>
    %106 = vector.broadcast %105 : vector<1x16xf32> to vector<16x16xf32>
    %107 = arith.mulf %104, %106 : vector<16x16xf32>
    %108 = arith.addf %103, %107 : vector<16x16xf32>
    %109 = vector.extract_strided_slice %79 {offsets = [48, 0], sizes = [16, 16], strides = [1, 1]} : vector<64x16xf32> to vector<16x16xf32>
    %110 = vector.extract_strided_slice %7 {offsets = [44, 0], sizes = [1, 16], strides = [1, 1]} : vector<49x16xf32> to vector<1x16xf32>
    %111 = vector.broadcast %110 : vector<1x16xf32> to vector<16x16xf32>
    %112 = arith.mulf %109, %111 : vector<16x16xf32>
    %113 = arith.addf %108, %112 : vector<16x16xf32>
    %114 = vector.extract_strided_slice %6 {offsets = [0, 0], sizes = [16, 16], strides = [1, 1]} : vector<64x16xf32> to vector<16x16xf32>
    %115 = vector.extract_strided_slice %7 {offsets = [3, 0], sizes = [1, 16], strides = [1, 1]} : vector<49x16xf32> to vector<1x16xf32>
    %116 = vector.broadcast %115 : vector<1x16xf32> to vector<16x16xf32>
    %117 = arith.mulf %114, %116 : vector<16x16xf32>
    %118 = vector.extract_strided_slice %6 {offsets = [8, 0], sizes = [16, 16], strides = [1, 1]} : vector<64x16xf32> to vector<16x16xf32>
    %119 = vector.extract_strided_slice %7 {offsets = [10, 0], sizes = [1, 16], strides = [1, 1]} : vector<49x16xf32> to vector<1x16xf32>
    %120 = vector.broadcast %119 : vector<1x16xf32> to vector<16x16xf32>
    %121 = arith.mulf %118, %120 : vector<16x16xf32>
    %122 = arith.addf %117, %121 : vector<16x16xf32>
    %123 = vector.extract_strided_slice %6 {offsets = [16, 0], sizes = [16, 16], strides = [1, 1]} : vector<64x16xf32> to vector<16x16xf32>
    %124 = vector.extract_strided_slice %7 {offsets = [17, 0], sizes = [1, 16], strides = [1, 1]} : vector<49x16xf32> to vector<1x16xf32>
    %125 = vector.broadcast %124 : vector<1x16xf32> to vector<16x16xf32>
    %126 = arith.mulf %123, %125 : vector<16x16xf32>
    %127 = arith.addf %122, %126 : vector<16x16xf32>
    %128 = vector.extract_strided_slice %7 {offsets = [24, 0], sizes = [1, 16], strides = [1, 1]} : vector<49x16xf32> to vector<1x16xf32>
    %129 = vector.broadcast %128 : vector<1x16xf32> to vector<16x16xf32>
    %130 = arith.mulf %8, %129 : vector<16x16xf32>
    %131 = arith.addf %127, %130 : vector<16x16xf32>
    %132 = vector.extract_strided_slice %6 {offsets = [32, 0], sizes = [16, 16], strides = [1, 1]} : vector<64x16xf32> to vector<16x16xf32>
    %133 = vector.extract_strided_slice %7 {offsets = [31, 0], sizes = [1, 16], strides = [1, 1]} : vector<49x16xf32> to vector<1x16xf32>
    %134 = vector.broadcast %133 : vector<1x16xf32> to vector<16x16xf32>
    %135 = arith.mulf %132, %134 : vector<16x16xf32>
    %136 = arith.addf %131, %135 : vector<16x16xf32>
    %137 = vector.extract_strided_slice %6 {offsets = [40, 0], sizes = [16, 16], strides = [1, 1]} : vector<64x16xf32> to vector<16x16xf32>
    %138 = vector.extract_strided_slice %7 {offsets = [38, 0], sizes = [1, 16], strides = [1, 1]} : vector<49x16xf32> to vector<1x16xf32>
    %139 = vector.broadcast %138 : vector<1x16xf32> to vector<16x16xf32>
    %140 = arith.mulf %137, %139 : vector<16x16xf32>
    %141 = arith.addf %136, %140 : vector<16x16xf32>
    %142 = vector.extract_strided_slice %6 {offsets = [48, 0], sizes = [16, 16], strides = [1, 1]} : vector<64x16xf32> to vector<16x16xf32>
    %143 = vector.extract_strided_slice %7 {offsets = [45, 0], sizes = [1, 16], strides = [1, 1]} : vector<49x16xf32> to vector<1x16xf32>
    %144 = vector.broadcast %143 : vector<1x16xf32> to vector<16x16xf32>
    %145 = arith.mulf %142, %144 : vector<16x16xf32>
    %146 = arith.addf %141, %145 : vector<16x16xf32>
    %c63_i32 = arith.constant 63 : i32
    %147 = tpu.dynamic_rotate %6 by %c63_i32 dim 0 : vector<64x16xf32>, i32 -> vector<64x16xf32>
    %148 = vector.extract_strided_slice %147 {offsets = [0, 0], sizes = [16, 16], strides = [1, 1]} : vector<64x16xf32> to vector<16x16xf32>
    %149 = vector.extract_strided_slice %7 {offsets = [4, 0], sizes = [1, 16], strides = [1, 1]} : vector<49x16xf32> to vector<1x16xf32>
    %150 = vector.broadcast %149 : vector<1x16xf32> to vector<16x16xf32>
    %151 = arith.mulf %148, %150 : vector<16x16xf32>
    %152 = vector.extract_strided_slice %147 {offsets = [8, 0], sizes = [16, 16], strides = [1, 1]} : vector<64x16xf32> to vector<16x16xf32>
    %153 = vector.extract_strided_slice %7 {offsets = [11, 0], sizes = [1, 16], strides = [1, 1]} : vector<49x16xf32> to vector<1x16xf32>
    %154 = vector.broadcast %153 : vector<1x16xf32> to vector<16x16xf32>
    %155 = arith.mulf %152, %154 : vector<16x16xf32>
    %156 = arith.addf %151, %155 : vector<16x16xf32>
    %157 = vector.extract_strided_slice %147 {offsets = [16, 0], sizes = [16, 16], strides = [1, 1]} : vector<64x16xf32> to vector<16x16xf32>
    %158 = vector.extract_strided_slice %7 {offsets = [18, 0], sizes = [1, 16], strides = [1, 1]} : vector<49x16xf32> to vector<1x16xf32>
    %159 = vector.broadcast %158 : vector<1x16xf32> to vector<16x16xf32>
    %160 = arith.mulf %157, %159 : vector<16x16xf32>
    %161 = arith.addf %156, %160 : vector<16x16xf32>
    %162 = vector.extract_strided_slice %147 {offsets = [24, 0], sizes = [16, 16], strides = [1, 1]} : vector<64x16xf32> to vector<16x16xf32>
    %163 = vector.extract_strided_slice %7 {offsets = [25, 0], sizes = [1, 16], strides = [1, 1]} : vector<49x16xf32> to vector<1x16xf32>
    %164 = vector.broadcast %163 : vector<1x16xf32> to vector<16x16xf32>
    %165 = arith.mulf %162, %164 : vector<16x16xf32>
    %166 = arith.addf %161, %165 : vector<16x16xf32>
    %167 = vector.extract_strided_slice %147 {offsets = [32, 0], sizes = [16, 16], strides = [1, 1]} : vector<64x16xf32> to vector<16x16xf32>
    %168 = vector.extract_strided_slice %7 {offsets = [32, 0], sizes = [1, 16], strides = [1, 1]} : vector<49x16xf32> to vector<1x16xf32>
    %169 = vector.broadcast %168 : vector<1x16xf32> to vector<16x16xf32>
    %170 = arith.mulf %167, %169 : vector<16x16xf32>
    %171 = arith.addf %166, %170 : vector<16x16xf32>
    %172 = vector.extract_strided_slice %147 {offsets = [40, 0], sizes = [16, 16], strides = [1, 1]} : vector<64x16xf32> to vector<16x16xf32>
    %173 = vector.extract_strided_slice %7 {offsets = [39, 0], sizes = [1, 16], strides = [1, 1]} : vector<49x16xf32> to vector<1x16xf32>
    %174 = vector.broadcast %173 : vector<1x16xf32> to vector<16x16xf32>
    %175 = arith.mulf %172, %174 : vector<16x16xf32>
    %176 = arith.addf %171, %175 : vector<16x16xf32>
    %177 = vector.extract_strided_slice %147 {offsets = [48, 0], sizes = [16, 16], strides = [1, 1]} : vector<64x16xf32> to vector<16x16xf32>
    %178 = vector.extract_strided_slice %7 {offsets = [46, 0], sizes = [1, 16], strides = [1, 1]} : vector<49x16xf32> to vector<1x16xf32>
    %179 = vector.broadcast %178 : vector<1x16xf32> to vector<16x16xf32>
    %180 = arith.mulf %177, %179 : vector<16x16xf32>
    %181 = arith.addf %176, %180 : vector<16x16xf32>
    %c62_i32 = arith.constant 62 : i32
    %182 = tpu.dynamic_rotate %6 by %c62_i32 dim 0 : vector<64x16xf32>, i32 -> vector<64x16xf32>
    %183 = vector.extract_strided_slice %182 {offsets = [0, 0], sizes = [16, 16], strides = [1, 1]} : vector<64x16xf32> to vector<16x16xf32>
    %184 = vector.extract_strided_slice %7 {offsets = [5, 0], sizes = [1, 16], strides = [1, 1]} : vector<49x16xf32> to vector<1x16xf32>
    %185 = vector.broadcast %184 : vector<1x16xf32> to vector<16x16xf32>
    %186 = arith.mulf %183, %185 : vector<16x16xf32>
    %187 = vector.extract_strided_slice %182 {offsets = [8, 0], sizes = [16, 16], strides = [1, 1]} : vector<64x16xf32> to vector<16x16xf32>
    %188 = vector.extract_strided_slice %7 {offsets = [12, 0], sizes = [1, 16], strides = [1, 1]} : vector<49x16xf32> to vector<1x16xf32>
    %189 = vector.broadcast %188 : vector<1x16xf32> to vector<16x16xf32>
    %190 = arith.mulf %187, %189 : vector<16x16xf32>
    %191 = arith.addf %186, %190 : vector<16x16xf32>
    %192 = vector.extract_strided_slice %182 {offsets = [16, 0], sizes = [16, 16], strides = [1, 1]} : vector<64x16xf32> to vector<16x16xf32>
    %193 = vector.extract_strided_slice %7 {offsets = [19, 0], sizes = [1, 16], strides = [1, 1]} : vector<49x16xf32> to vector<1x16xf32>
    %194 = vector.broadcast %193 : vector<1x16xf32> to vector<16x16xf32>
    %195 = arith.mulf %192, %194 : vector<16x16xf32>
    %196 = arith.addf %191, %195 : vector<16x16xf32>
    %197 = vector.extract_strided_slice %182 {offsets = [24, 0], sizes = [16, 16], strides = [1, 1]} : vector<64x16xf32> to vector<16x16xf32>
    %198 = vector.extract_strided_slice %7 {offsets = [26, 0], sizes = [1, 16], strides = [1, 1]} : vector<49x16xf32> to vector<1x16xf32>
    %199 = vector.broadcast %198 : vector<1x16xf32> to vector<16x16xf32>
    %200 = arith.mulf %197, %199 : vector<16x16xf32>
    %201 = arith.addf %196, %200 : vector<16x16xf32>
    %202 = vector.extract_strided_slice %182 {offsets = [32, 0], sizes = [16, 16], strides = [1, 1]} : vector<64x16xf32> to vector<16x16xf32>
    %203 = vector.extract_strided_slice %7 {offsets = [33, 0], sizes = [1, 16], strides = [1, 1]} : vector<49x16xf32> to vector<1x16xf32>
    %204 = vector.broadcast %203 : vector<1x16xf32> to vector<16x16xf32>
    %205 = arith.mulf %202, %204 : vector<16x16xf32>
    %206 = arith.addf %201, %205 : vector<16x16xf32>
    %207 = vector.extract_strided_slice %182 {offsets = [40, 0], sizes = [16, 16], strides = [1, 1]} : vector<64x16xf32> to vector<16x16xf32>
    %208 = vector.extract_strided_slice %7 {offsets = [40, 0], sizes = [1, 16], strides = [1, 1]} : vector<49x16xf32> to vector<1x16xf32>
    %209 = vector.broadcast %208 : vector<1x16xf32> to vector<16x16xf32>
    %210 = arith.mulf %207, %209 : vector<16x16xf32>
    %211 = arith.addf %206, %210 : vector<16x16xf32>
    %212 = vector.extract_strided_slice %182 {offsets = [48, 0], sizes = [16, 16], strides = [1, 1]} : vector<64x16xf32> to vector<16x16xf32>
    %213 = vector.extract_strided_slice %7 {offsets = [47, 0], sizes = [1, 16], strides = [1, 1]} : vector<49x16xf32> to vector<1x16xf32>
    %214 = vector.broadcast %213 : vector<1x16xf32> to vector<16x16xf32>
    %215 = arith.mulf %212, %214 : vector<16x16xf32>
    %216 = arith.addf %211, %215 : vector<16x16xf32>
    %c61_i32 = arith.constant 61 : i32
    %217 = tpu.dynamic_rotate %6 by %c61_i32 dim 0 : vector<64x16xf32>, i32 -> vector<64x16xf32>
    %218 = vector.extract_strided_slice %217 {offsets = [0, 0], sizes = [16, 16], strides = [1, 1]} : vector<64x16xf32> to vector<16x16xf32>
    %219 = vector.extract_strided_slice %7 {offsets = [6, 0], sizes = [1, 16], strides = [1, 1]} : vector<49x16xf32> to vector<1x16xf32>
    %220 = vector.broadcast %219 : vector<1x16xf32> to vector<16x16xf32>
    %221 = arith.mulf %218, %220 : vector<16x16xf32>
    %222 = vector.extract_strided_slice %217 {offsets = [8, 0], sizes = [16, 16], strides = [1, 1]} : vector<64x16xf32> to vector<16x16xf32>
    %223 = vector.extract_strided_slice %7 {offsets = [13, 0], sizes = [1, 16], strides = [1, 1]} : vector<49x16xf32> to vector<1x16xf32>
    %224 = vector.broadcast %223 : vector<1x16xf32> to vector<16x16xf32>
    %225 = arith.mulf %222, %224 : vector<16x16xf32>
    %226 = arith.addf %221, %225 : vector<16x16xf32>
    %227 = vector.extract_strided_slice %217 {offsets = [16, 0], sizes = [16, 16], strides = [1, 1]} : vector<64x16xf32> to vector<16x16xf32>
    %228 = vector.extract_strided_slice %7 {offsets = [20, 0], sizes = [1, 16], strides = [1, 1]} : vector<49x16xf32> to vector<1x16xf32>
    %229 = vector.broadcast %228 : vector<1x16xf32> to vector<16x16xf32>
    %230 = arith.mulf %227, %229 : vector<16x16xf32>
    %231 = arith.addf %226, %230 : vector<16x16xf32>
    %232 = vector.extract_strided_slice %217 {offsets = [24, 0], sizes = [16, 16], strides = [1, 1]} : vector<64x16xf32> to vector<16x16xf32>
    %233 = vector.extract_strided_slice %7 {offsets = [27, 0], sizes = [1, 16], strides = [1, 1]} : vector<49x16xf32> to vector<1x16xf32>
    %234 = vector.broadcast %233 : vector<1x16xf32> to vector<16x16xf32>
    %235 = arith.mulf %232, %234 : vector<16x16xf32>
    %236 = arith.addf %231, %235 : vector<16x16xf32>
    %237 = vector.extract_strided_slice %217 {offsets = [32, 0], sizes = [16, 16], strides = [1, 1]} : vector<64x16xf32> to vector<16x16xf32>
    %238 = vector.extract_strided_slice %7 {offsets = [34, 0], sizes = [1, 16], strides = [1, 1]} : vector<49x16xf32> to vector<1x16xf32>
    %239 = vector.broadcast %238 : vector<1x16xf32> to vector<16x16xf32>
    %240 = arith.mulf %237, %239 : vector<16x16xf32>
    %241 = arith.addf %236, %240 : vector<16x16xf32>
    %242 = vector.extract_strided_slice %217 {offsets = [40, 0], sizes = [16, 16], strides = [1, 1]} : vector<64x16xf32> to vector<16x16xf32>
    %243 = vector.extract_strided_slice %7 {offsets = [41, 0], sizes = [1, 16], strides = [1, 1]} : vector<49x16xf32> to vector<1x16xf32>
    %244 = vector.broadcast %243 : vector<1x16xf32> to vector<16x16xf32>
    %245 = arith.mulf %242, %244 : vector<16x16xf32>
    %246 = arith.addf %241, %245 : vector<16x16xf32>
    %247 = vector.extract_strided_slice %217 {offsets = [48, 0], sizes = [16, 16], strides = [1, 1]} : vector<64x16xf32> to vector<16x16xf32>
    %248 = vector.extract_strided_slice %7 {offsets = [48, 0], sizes = [1, 16], strides = [1, 1]} : vector<49x16xf32> to vector<1x16xf32>
    %249 = vector.broadcast %248 : vector<1x16xf32> to vector<16x16xf32>
    %250 = arith.mulf %247, %249 : vector<16x16xf32>
    %251 = arith.addf %246, %250 : vector<16x16xf32>
    %252 = arith.addf %43, %78 : vector<16x16xf32>
    %253 = arith.addf %113, %146 : vector<16x16xf32>
    %254 = arith.addf %181, %216 : vector<16x16xf32>
    %255 = arith.addf %252, %253 : vector<16x16xf32>
    %256 = arith.addf %254, %251 : vector<16x16xf32>
    %257 = arith.addf %255, %256 : vector<16x16xf32>
    %c0_5 = arith.constant 0 : index
    %c0_6 = arith.constant 0 : index
    %258 = vector.load %arg5[%c0_5, %c0_6] : memref<1x16xf32, #tpu.memory_space<vmem>>, vector<1x16xf32>
    %259 = vector.broadcast %258 : vector<1x16xf32> to vector<16x16xf32>
    %260 = arith.addf %257, %259 : vector<16x16xf32>
    %c0_7 = arith.constant 0 : index
    %c0_8 = arith.constant 0 : index
    %261 = vector.load %arg6[%c0_7, %c0_8] : memref<1x16xf32, #tpu.memory_space<vmem>>, vector<1x16xf32>
    %c0_9 = arith.constant 0 : index
    %c0_10 = arith.constant 0 : index
    %262 = vector.load %arg7[%c0_9, %c0_10] : memref<1x16xf32, #tpu.memory_space<vmem>>, vector<1x16xf32>
    %cst = arith.constant dense<0.000000e+00> : vector<16xf32>
    %263 = vector.multi_reduction <add>, %260, %cst [1] : vector<16x16xf32> to vector<16xf32>
    %264 = vector.shape_cast %263 : vector<16xf32> to vector<16x1xf32>
    %cst_11 = arith.constant 1.600000e+01 : f32
    %265 = vector.broadcast %cst_11 : f32 to vector<16x1xf32>
    %266 = arith.divf %264, %265 : vector<16x1xf32>
    %267 = arith.mulf %260, %260 : vector<16x16xf32>
    %cst_12 = arith.constant dense<0.000000e+00> : vector<16xf32>
    %268 = vector.multi_reduction <add>, %267, %cst_12 [1] : vector<16x16xf32> to vector<16xf32>
    %269 = vector.shape_cast %268 : vector<16xf32> to vector<16x1xf32>
    %cst_13 = arith.constant 1.600000e+01 : f32
    %270 = vector.broadcast %cst_13 : f32 to vector<16x1xf32>
    %271 = arith.divf %269, %270 : vector<16x1xf32>
    %272 = arith.mulf %266, %266 : vector<16x1xf32>
    %273 = arith.subf %271, %272 : vector<16x1xf32>
    %cst_14 = arith.constant 0.000000e+00 : f32
    %274 = vector.broadcast %cst_14 : f32 to vector<16x1xf32>
    %275 = arith.maximumf %273, %274 : vector<16x1xf32>
    %276 = vector.broadcast %266 : vector<16x1xf32> to vector<16x16xf32>
    %277 = arith.subf %260, %276 : vector<16x16xf32>
    %cst_15 = arith.constant 9.99999997E-7 : f32
    %278 = vector.broadcast %cst_15 : f32 to vector<16x1xf32>
    %279 = arith.addf %275, %278 : vector<16x1xf32>
    %280 = math.rsqrt %279 : vector<16x1xf32>
    %281 = vector.broadcast %280 : vector<16x1xf32> to vector<16x16xf32>
    %282 = arith.mulf %277, %281 : vector<16x16xf32>
    %283 = vector.broadcast %261 : vector<1x16xf32> to vector<16x16xf32>
    %284 = arith.mulf %282, %283 : vector<16x16xf32>
    %285 = vector.broadcast %262 : vector<1x16xf32> to vector<16x16xf32>
    %286 = arith.addf %284, %285 : vector<16x16xf32>
    %287 = arith.truncf %286 : vector<16x16xf32> to vector<16x16xbf16>
    %c0_16 = arith.constant 0 : index
    %c0_17 = arith.constant 0 : index
    %288 = vector.load %arg8[%c0_16, %c0_17] : memref<16x64xbf16, #tpu.memory_space<vmem>>, vector<16x64xbf16>
    %cst_18 = arith.constant dense<0.000000e+00> : vector<16x64xf32>
    %289 = tpu.matmul %287, %288, %cst_18 {dimension_numbers = #tpu.dot_dimension_numbers<[1], [0], [0], [1], [0, 0, 1, 1], [], []>} : vector<16x16xbf16>, vector<16x64xbf16>, vector<16x64xf32> -> vector<16x64xf32>
    %c0_19 = arith.constant 0 : index
    %c0_20 = arith.constant 0 : index
    %290 = vector.load %arg9[%c0_19, %c0_20] : memref<1x64xf32, #tpu.memory_space<vmem>>, vector<1x64xf32>
    %291 = vector.broadcast %290 : vector<1x64xf32> to vector<16x64xf32>
    %292 = arith.addf %289, %291 : vector<16x64xf32>
    %293 = arith.mulf %292, %292 : vector<16x64xf32>
    %294 = arith.mulf %292, %293 : vector<16x64xf32>
    %cst_21 = arith.constant 4.471500e-02 : f32
    %295 = vector.broadcast %cst_21 : f32 to vector<16x64xf32>
    %296 = arith.mulf %295, %294 : vector<16x64xf32>
    %297 = arith.addf %292, %296 : vector<16x64xf32>
    %cst_22 = arith.constant 0.797884583 : f32
    %298 = vector.broadcast %cst_22 : f32 to vector<16x64xf32>
    %299 = arith.mulf %298, %297 : vector<16x64xf32>
    %300 = math.tanh %299 : vector<16x64xf32>
    %cst_23 = arith.constant 1.000000e+00 : f32
    %301 = vector.broadcast %cst_23 : f32 to vector<16x64xf32>
    %302 = arith.addf %301, %300 : vector<16x64xf32>
    %cst_24 = arith.constant 5.000000e-01 : f32
    %303 = vector.broadcast %cst_24 : f32 to vector<16x64xf32>
    %304 = arith.mulf %303, %302 : vector<16x64xf32>
    %305 = arith.mulf %292, %304 : vector<16x64xf32>
    %306 = arith.truncf %305 : vector<16x64xf32> to vector<16x64xbf16>
    %c0_25 = arith.constant 0 : index
    %c0_26 = arith.constant 0 : index
    %307 = vector.load %arg10[%c0_25, %c0_26] : memref<64x16xbf16, #tpu.memory_space<vmem>>, vector<64x16xbf16>
    %cst_27 = arith.constant dense<0.000000e+00> : vector<16x16xf32>
    %308 = tpu.matmul %306, %307, %cst_27 {dimension_numbers = #tpu.dot_dimension_numbers<[1], [0], [0], [1], [0, 0, 1, 1], [], []>} : vector<16x64xbf16>, vector<64x16xbf16>, vector<16x16xf32> -> vector<16x16xf32>
    %c0_28 = arith.constant 0 : index
    %c0_29 = arith.constant 0 : index
    %309 = vector.load %arg11[%c0_28, %c0_29] : memref<1x16xf32, #tpu.memory_space<vmem>>, vector<1x16xf32>
    %310 = vector.broadcast %309 : vector<1x16xf32> to vector<16x16xf32>
    %311 = arith.addf %308, %310 : vector<16x16xf32>
    %c0_30 = arith.constant 0 : index
    %c0_31 = arith.constant 0 : index
    %312 = vector.load %arg12[%c0_30, %c0_31] : memref<1x16xf32, #tpu.memory_space<vmem>>, vector<1x16xf32>
    %313 = vector.broadcast %312 : vector<1x16xf32> to vector<16x16xf32>
    %314 = arith.mulf %311, %313 : vector<16x16xf32>
    %315 = arith.addf %314, %8 : vector<16x16xf32>
    %c0_32 = arith.constant 0 : index
    %c0_33 = arith.constant 0 : index
    %316 = vector.load %arg3[%c0_32, %c0_33] : memref<16x1xf32, #tpu.memory_space<vmem>>, vector<16x1xf32>
    %317 = vector.broadcast %316 : vector<16x1xf32> to vector<16x16xf32>
    %318 = arith.mulf %315, %317 : vector<16x16xf32>
    %c0_34 = arith.constant 0 : index
    %c0_35 = arith.constant 0 : index
    %c0_36 = arith.constant 0 : index
    %319 = vector.load %arg15[%c0_34, %c0_35, %c0_36] : memref<1x16x16xf32, #tpu.memory_space<vmem>>, vector<1x16x16xf32>
    %320 = vector.shape_cast %319 : vector<1x16x16xf32> to vector<16x16xf32>
    %321 = vector.shape_cast %318 : vector<16x16xf32> to vector<1x16x16xf32>
    tpu.vector_store %arg15[%c0_34, %c0_35, %c0_36], %321 {strides = array<i32>} : memref<1x16x16xf32, #tpu.memory_space<vmem>>, vector<1x16x16xf32>,
    return
  }
  func.func @transform_0(%arg0: i32, %arg1: i32) -> (i32, i32, i32) {
    %c0_i32 = arith.constant 0 : i32
    %c0_i32_0 = arith.constant 0 : i32
    %c0_i32_1 = arith.constant 0 : i32
    return %arg0, %c0_i32, %c0_i32_0 : i32, i32, i32
  }
  func.func @transform_1(%arg0: i32, %arg1: i32) -> (i32, i32) {
    %c0_i32 = arith.constant 0 : i32
    %c0_i32_0 = arith.constant 0 : i32
    %c0_i32_1 = arith.constant 0 : i32
    return %c0_i32, %c0_i32_0 : i32, i32
  }
  func.func @transform_2(%arg0: i32, %arg1: i32) -> (i32, i32) {
    %c0_i32 = arith.constant 0 : i32
    %c0_i32_0 = arith.constant 0 : i32
    %c0_i32_1 = arith.constant 0 : i32
    return %c0_i32, %c0_i32_0 : i32, i32
  }
  func.func @transform_3(%arg0: i32, %arg1: i32) -> (i32, i32) {
    %c0_i32 = arith.constant 0 : i32
    %c0_i32_0 = arith.constant 0 : i32
    %c0_i32_1 = arith.constant 0 : i32
    return %c0_i32, %c0_i32_0 : i32, i32
  }
  func.func @transform_4(%arg0: i32, %arg1: i32) -> (i32, i32) {
    %c0_i32 = arith.constant 0 : i32
    %c0_i32_0 = arith.constant 0 : i32
    %c0_i32_1 = arith.constant 0 : i32
    return %c0_i32, %c0_i32_0 : i32, i32
  }
  func.func @transform_5(%arg0: i32, %arg1: i32) -> (i32, i32) {
    %c0_i32 = arith.constant 0 : i32
    %c0_i32_0 = arith.constant 0 : i32
    %c0_i32_1 = arith.constant 0 : i32
    return %c0_i32, %c0_i32_0 : i32, i32
  }
  func.func @transform_6(%arg0: i32, %arg1: i32) -> (i32, i32) {
    %c0_i32 = arith.constant 0 : i32
    %c0_i32_0 = arith.constant 0 : i32
    %c0_i32_1 = arith.constant 0 : i32
    return %c0_i32, %c0_i32_0 : i32, i32
  }
  func.func @transform_7(%arg0: i32, %arg1: i32) -> (i32, i32) {
    %c0_i32 = arith.constant 0 : i32
    %c0_i32_0 = arith.constant 0 : i32
    %c0_i32_1 = arith.constant 0 : i32
    return %c0_i32, %c0_i32_0 : i32, i32
  }
  func.func @transform_8(%arg0: i32, %arg1: i32) -> (i32, i32) {
    %c0_i32 = arith.constant 0 : i32
    %c0_i32_0 = arith.constant 0 : i32
    %c0_i32_1 = arith.constant 0 : i32
    return %c0_i32, %c0_i32_0 : i32, i32
  }
  func.func @transform_9(%arg0: i32, %arg1: i32) -> (i32, i32) {
    %c0_i32 = arith.constant 0 : i32
    %c0_i32_0 = arith.constant 0 : i32
    %c0_i32_1 = arith.constant 0 : i32
    return %c0_i32, %c0_i32_0 : i32, i32
  }
  func.func @transform_10(%arg0: i32, %arg1: i32) -> (i32, i32) {
    %c0_i32 = arith.constant 0 : i32
    %c0_i32_0 = arith.constant 0 : i32
    %c0_i32_1 = arith.constant 0 : i32
    return %c0_i32, %c0_i32_0 : i32, i32
  }
  func.func @transform_11(%arg0: i32, %arg1: i32) -> (i32, i32) {
    %c0_i32 = arith.constant 0 : i32
    %c0_i32_0 = arith.constant 0 : i32
    %c0_i32_1 = arith.constant 0 : i32
    return %c0_i32, %c0_i32_0 : i32, i32
  }
  func.func @transform_12(%arg0: i32, %arg1: i32) -> (i32, i32) {
    %c0_i32 = arith.constant 0 : i32
    %c0_i32_0 = arith.constant 0 : i32
    %c0_i32_1 = arith.constant 0 : i32
    return %c0_i32, %c0_i32_0 : i32, i32
  }
  func.func @transform_13(%arg0: i32, %arg1: i32) -> (i32, i32, i32) {
    %c2_i32 = arith.constant 2 : i32
    %0 = arith.addi %c2_i32, %arg1 : i32
    %c0_i32 = arith.constant 0 : i32
    %c0_i32_0 = arith.constant 0 : i32
    return %arg0, %0, %c0_i32 : i32, i32, i32
  }
}

module attributes {stable_mosaic.version = 11 : i64} {
  func.func @head_kernel(%arg0: i32, %arg1: memref<1x4x16xf32, #tpu.memory_space<vmem>>, %arg2: memref<1x16xf32, #tpu.memory_space<vmem>>, %arg3: memref<1x16xf32, #tpu.memory_space<vmem>>, %arg4: memref<16x10xf32, #tpu.memory_space<vmem>>, %arg5: memref<1x10xf32, #tpu.memory_space<vmem>>, %arg6: memref<1x1x10xf32, #tpu.memory_space<vmem>>) attributes {dimension_semantics = [#tpu.dimension_semantics<parallel>], iteration_bounds = array<i64: 2>, scalar_prefetch = 0 : i64, scratch_operands = 0 : i64, tpu.core_type = #tpu.core_type<tc>, window_params = [{transform_indices = @transform_0, window_bounds = array<i64: 1, 4, 16>}, {pipeline_mode = #tpu.pipeline_mode<synchronous>, transform_indices = @transform_1, window_bounds = array<i64: 1, 16>}, {pipeline_mode = #tpu.pipeline_mode<synchronous>, transform_indices = @transform_2, window_bounds = array<i64: 1, 16>}, {pipeline_mode = #tpu.pipeline_mode<synchronous>, transform_indices = @transform_3, window_bounds = array<i64: 16, 10>}, {pipeline_mode = #tpu.pipeline_mode<synchronous>, transform_indices = @transform_4, window_bounds = array<i64: 1, 10>}, {transform_indices = @transform_5, window_bounds = array<i64: 1, 1, 10>}]} {
    %c0 = arith.constant 0 : index
    %c0_0 = arith.constant 0 : index
    %c0_1 = arith.constant 0 : index
    %0 = vector.load %arg1[%c0, %c0_0, %c0_1] : memref<1x4x16xf32, #tpu.memory_space<vmem>>, vector<1x4x16xf32>
    %1 = vector.shape_cast %0 : vector<1x4x16xf32> to vector<4x16xf32>
    %cst = arith.constant dense<0.000000e+00> : vector<16xf32>
    %2 = vector.multi_reduction <add>, %1, %cst [0] : vector<4x16xf32> to vector<16xf32>
    %3 = vector.shape_cast %2 : vector<16xf32> to vector<1x16xf32>
    %cst_2 = arith.constant 4.000000e+00 : f32
    %4 = vector.broadcast %cst_2 : f32 to vector<1x16xf32>
    %5 = arith.divf %3, %4 : vector<1x16xf32>
    %c0_3 = arith.constant 0 : index
    %c0_4 = arith.constant 0 : index
    %6 = vector.load %arg2[%c0_3, %c0_4] : memref<1x16xf32, #tpu.memory_space<vmem>>, vector<1x16xf32>
    %c0_5 = arith.constant 0 : index
    %c0_6 = arith.constant 0 : index
    %7 = vector.load %arg3[%c0_5, %c0_6] : memref<1x16xf32, #tpu.memory_space<vmem>>, vector<1x16xf32>
    %cst_7 = arith.constant dense<0.000000e+00> : vector<1xf32>
    %8 = vector.multi_reduction <add>, %5, %cst_7 [1] : vector<1x16xf32> to vector<1xf32>
    %9 = vector.shape_cast %8 : vector<1xf32> to vector<1x1xf32>
    %cst_8 = arith.constant 1.600000e+01 : f32
    %10 = vector.broadcast %cst_8 : f32 to vector<1x1xf32>
    %11 = arith.divf %9, %10 : vector<1x1xf32>
    %12 = arith.mulf %5, %5 : vector<1x16xf32>
    %cst_9 = arith.constant dense<0.000000e+00> : vector<1xf32>
    %13 = vector.multi_reduction <add>, %12, %cst_9 [1] : vector<1x16xf32> to vector<1xf32>
    %14 = vector.shape_cast %13 : vector<1xf32> to vector<1x1xf32>
    %cst_10 = arith.constant 1.600000e+01 : f32
    %15 = vector.broadcast %cst_10 : f32 to vector<1x1xf32>
    %16 = arith.divf %14, %15 : vector<1x1xf32>
    %17 = arith.mulf %11, %11 : vector<1x1xf32>
    %18 = arith.subf %16, %17 : vector<1x1xf32>
    %cst_11 = arith.constant 0.000000e+00 : f32
    %19 = vector.broadcast %cst_11 : f32 to vector<1x1xf32>
    %20 = arith.maximumf %18, %19 : vector<1x1xf32>
    %21 = vector.broadcast %11 : vector<1x1xf32> to vector<1x16xf32>
    %22 = arith.subf %5, %21 : vector<1x16xf32>
    %cst_12 = arith.constant 9.99999997E-7 : f32
    %23 = vector.broadcast %cst_12 : f32 to vector<1x1xf32>
    %24 = arith.addf %20, %23 : vector<1x1xf32>
    %25 = math.rsqrt %24 : vector<1x1xf32>
    %26 = vector.broadcast %25 : vector<1x1xf32> to vector<1x16xf32>
    %27 = arith.mulf %22, %26 : vector<1x16xf32>
    %28 = arith.mulf %27, %6 : vector<1x16xf32>
    %29 = arith.addf %28, %7 : vector<1x16xf32>
    %c0_13 = arith.constant 0 : index
    %c0_14 = arith.constant 0 : index
    %30 = vector.load %arg4[%c0_13, %c0_14] : memref<16x10xf32, #tpu.memory_space<vmem>>, vector<16x10xf32>
    %cst_15 = arith.constant dense<0.000000e+00> : vector<1x10xf32>
    %31 = tpu.matmul %29, %30, %cst_15 {dimension_numbers = #tpu.dot_dimension_numbers<[1], [0], [0], [1], [0, 0, 1, 1], [], []>} : vector<1x16xf32>, vector<16x10xf32>, vector<1x10xf32> -> vector<1x10xf32>
    %c0_16 = arith.constant 0 : index
    %c0_17 = arith.constant 0 : index
    %32 = vector.load %arg5[%c0_16, %c0_17] : memref<1x10xf32, #tpu.memory_space<vmem>>, vector<1x10xf32>
    %33 = arith.addf %31, %32 : vector<1x10xf32>
    %c0_18 = arith.constant 0 : index
    %c0_19 = arith.constant 0 : index
    %c0_20 = arith.constant 0 : index
    %34 = vector.load %arg6[%c0_18, %c0_19, %c0_20] : memref<1x1x10xf32, #tpu.memory_space<vmem>>, vector<1x1x10xf32>
    %35 = vector.shape_cast %34 : vector<1x1x10xf32> to vector<1x10xf32>
    %36 = vector.shape_cast %33 : vector<1x10xf32> to vector<1x1x10xf32>
    tpu.vector_store %arg6[%c0_18, %c0_19, %c0_20], %36 {strides = array<i32>} : memref<1x1x10xf32, #tpu.memory_space<vmem>>, vector<1x1x10xf32>,
    return
  }
  func.func @transform_0(%arg0: i32) -> (i32, i32, i32) {
    %c0_i32 = arith.constant 0 : i32
    %c0_i32_0 = arith.constant 0 : i32
    %c0_i32_1 = arith.constant 0 : i32
    return %arg0, %c0_i32, %c0_i32_0 : i32, i32, i32
  }
  func.func @transform_1(%arg0: i32) -> (i32, i32) {
    %c0_i32 = arith.constant 0 : i32
    %c0_i32_0 = arith.constant 0 : i32
    %c0_i32_1 = arith.constant 0 : i32
    return %c0_i32, %c0_i32_0 : i32, i32
  }
  func.func @transform_2(%arg0: i32) -> (i32, i32) {
    %c0_i32 = arith.constant 0 : i32
    %c0_i32_0 = arith.constant 0 : i32
    %c0_i32_1 = arith.constant 0 : i32
    return %c0_i32, %c0_i32_0 : i32, i32
  }
  func.func @transform_3(%arg0: i32) -> (i32, i32) {
    %c0_i32 = arith.constant 0 : i32
    %c0_i32_0 = arith.constant 0 : i32
    %c0_i32_1 = arith.constant 0 : i32
    return %c0_i32, %c0_i32_0 : i32, i32
  }
  func.func @transform_4(%arg0: i32) -> (i32, i32) {
    %c0_i32 = arith.constant 0 : i32
    %c0_i32_0 = arith.constant 0 : i32
    %c0_i32_1 = arith.constant 0 : i32
    return %c0_i32, %c0_i32_0 : i32, i32
  }
  func.func @transform_5(%arg0: i32) -> (i32, i32, i32) {
    %c0_i32 = arith.constant 0 : i32
    %c0_i32_0 = arith.constant 0 : i32
    %c0_i32_1 = arith.constant 0 : i32
    return %arg0, %c0_i32, %c0_i32_0 : i32, i32, i32
  }
}

</mosaic_0001>

<llo_original>
// kernel: convnext_forward.7
$region0: #{convnext_forward.7}
  #allocation0 [shape = 'u32[]', space=smem, size = 0x4, offset = 0x4, fixed_abs, tag = 'smem constant byte address 0x4 - core index']
  #allocation1 [shape = 'u32[72,128]{1,0:T(1,128)}', space=vmem, size = 0x9000, scoped, tag = 'internal scratch']
  %s0 = inlined_call_operand.vmem [shape: f32[8,32], index: 0, kind: input, shape index: {}]
  %s1 = inlined_call_operand.vmem [shape: bf16[32,16], index: 1, kind: input, shape index: {}]
  %s2 = inlined_call_operand.vmem [shape: f32[1,16], index: 2, kind: input, shape index: {}]
  %s3 = inlined_call_operand.vmem [shape: f32[8,16], index: 3, kind: output, shape index: {}]
  %s4 = sld [smem:[#allocation0]]
  $region22: #{convnext_forward.7} parent=0
    _
  %s6 = ssub.s32 1, %s4
  %s7 = scalar_select 0, %s6, %s4
  // Predicated region
  $region2: #{convnext_forward.7} parent=0 // pred_check
    _
  $region3: #{convnext_forward.7} parent=0 // pred_check_branch
    %9 = sbr.rel (0) target = $region5
  $region4: #{convnext_forward.7} parent=0 // pred_region
    _
  $region5: #{convnext_forward.7} parent=0 // pred_fallthru
    _
  // Predicated region
  $region6: #{convnext_forward.7} parent=0 // pred_check
    _
  $region7: #{convnext_forward.7} parent=0 // pred_check_branch
    %11 = sbr.rel (0) target = $region9
  $region8: #{convnext_forward.7} parent=0 // pred_region
    _
  $region9: #{convnext_forward.7} parent=0 // pred_fallthru
    _
  // Predicated region
  $region10: #{convnext_forward.7} parent=0 // pred_check
    _
  $region11: #{convnext_forward.7} parent=0 // pred_check_branch
    %13 = sbr.rel (0) target = $region13
  $region12: #{convnext_forward.7} parent=0 // pred_region
    _
  $region13: #{convnext_forward.7} parent=0 // pred_fallthru
    _
  %v15 = vld [vmem:[%s0] sm:$0xff]
  %v16 = vpack.c.bf16 %v15, %v15
  %v17 = vld [vmem:[%s1] sm:$0xf]
  %v18 = vld [vmem:[%s1 + $0x4] sm:$0xf]
  %v19 = vld [vmem:[%s1 + $0x8] sm:$0xf]
  %v20 = vld [vmem:[%s1 + $0xc] sm:$0xf]
  %v21 = vld [vmem:[%s2] sm:$0x1]
  %v23 = vperm.slane %v21, 0
  %v29 = vunpack.c.l.b16 %v17
  %v30 = vunpack.c.l.b16 %v18
  %v31 = vunpack.c.l.b16 %v19
  %v32 = vunpack.c.l.b16 %v20
  %v33 = vpack.c.b16 %v30, %v29
  %v34 = vpack.c.b16 %v32, %v31
  %vm37 = vcmask 261120
  %v39 = vsel %vm37, %v16, 0
  %41 = vmatpush.bf16.msra.mxu0 0
  %42 = vmatpush.bf16.msra.mxu0 0
  %43 = vmatpush.bf16.msra.mxu0 0
  %44 = vmatpush.bf16.msra.mxu0 0
  %45 = vmatpush.bf16.msra.mxu0 0
  %46 = vmatpush.bf16.msra.mxu0 0
  %47 = vmatpush.bf16.msra.mxu0 %v34
  %48 = vmatpush.bf16.msra.mxu0 %v33
  %49 = vmatmul.bf16.gmra.mxu0 %v39
  %v50 = vpop.f32.mrf.mxu0
  %v51 = vadd.f32 %v23, %v50
  %v52 = vpop.f32.mrf.mxu0
  %53 = vdwg.mxu0
  %vm54 = vcmask 130048
  %55 = vst.msk [vmem:[%s3] sm:$0xff] %vm54, %v51
  // Predicated region
  $region14: #{convnext_forward.7} parent=0 // pred_check
    _
  $region15: #{convnext_forward.7} parent=0 // pred_check_branch
    %57 = sbr.rel (0) target = $region17
  $region16: #{convnext_forward.7} parent=0 // pred_region
    _
  $region17: #{convnext_forward.7} parent=0 // pred_fallthru
    _
  // Predicated region
  $region18: #{convnext_forward.7} parent=0 // pred_check
    _
  $region19: #{convnext_forward.7} parent=0 // pred_check_branch
    %59 = sbr.rel (0) target = $region21
  $region20: #{convnext_forward.7} parent=0 // pred_region
    _
  $region21: #{convnext_forward.7} parent=0 // pred_fallthru
    _

// kernel: convnext_forward.5
$region0: #{convnext_forward.5}
  #allocation0 [shape = 'u32[]', space=smem, size = 0x4, offset = 0x4, fixed_abs, tag = 'smem constant byte address 0x4 - core index']
  #allocation1 [shape = 'u32[72,128]{1,0:T(1,128)}', space=vmem, size = 0x9000, scoped, tag = 'internal scratch']
  %s0 = inlined_call_operand.vmem [shape: f32[32,48], index: 0, kind: input, shape index: {}]
  %s1 = inlined_call_operand.vmem [shape: bf16[48,8], index: 1, kind: input, shape index: {}]
  %s2 = inlined_call_operand.vmem [shape: f32[1,8], index: 2, kind: input, shape index: {}]
  %s3 = inlined_call_operand.vmem [shape: f32[1,8], index: 3, kind: input, shape index: {}]
  %s4 = inlined_call_operand.vmem [shape: f32[1,8], index: 4, kind: input, shape index: {}]
  %s5 = inlined_call_operand.vmem [shape: f32[32,8], index: 5, kind: output, shape index: {}]
  %s6 = sld [smem:[#allocation0]]
  $region30: #{convnext_forward.5} parent=0
    _
  %s8 = ssub.s32 1, %s6
  %s9 = scalar_select 0, %s8, %s6
  // Predicated region
  $region2: #{convnext_forward.5} parent=0 // pred_check
    _
  $region3: #{convnext_forward.5} parent=0 // pred_check_branch
    %11 = sbr.rel (0) target = $region5
  $region4: #{convnext_forward.5} parent=0 // pred_region
    _
  $region5: #{convnext_forward.5} parent=0 // pred_fallthru
    _
  // Predicated region
  $region6: #{convnext_forward.5} parent=0 // pred_check
    _
  $region7: #{convnext_forward.5} parent=0 // pred_check_branch
    %13 = sbr.rel (0) target = $region9
  $region8: #{convnext_forward.5} parent=0 // pred_region
    _
  $region9: #{convnext_forward.5} parent=0 // pred_fallthru
    _
  // Predicated region
  $region10: #{convnext_forward.5} parent=0 // pred_check
    _
  $region11: #{convnext_forward.5} parent=0 // pred_check_branch
    %15 = sbr.rel (0) target = $region13
  $region12: #{convnext_forward.5} parent=0 // pred_region
    _
  $region13: #{convnext_forward.5} parent=0 // pred_fallthru
    _
  // Predicated region
  $region14: #{convnext_forward.5} parent=0 // pred_check
    _
  $region15: #{convnext_forward.5} parent=0 // pred_check_branch
    %17 = sbr.rel (0) target = $region17
  $region16: #{convnext_forward.5} parent=0 // pred_region
    _
  $region17: #{convnext_forward.5} parent=0 // pred_fallthru
    _
  // Predicated region
  $region18: #{convnext_forward.5} parent=0 // pred_check
    _
  $region19: #{convnext_forward.5} parent=0 // pred_check_branch
    %19 = sbr.rel (0) target = $region21
  $region20: #{convnext_forward.5} parent=0 // pred_region
    _
  $region21: #{convnext_forward.5} parent=0 // pred_fallthru
    _
  %v21 = vld [vmem:[%s0] sm:$0xff]
  %v22 = vld [vmem:[%s0 + $0x8] sm:$0xff]
  %v23 = vld [vmem:[%s0 + $0x10] sm:$0xff]
  %v24 = vld [vmem:[%s0 + $0x18] sm:$0xff]
  %v25 = vpack.c.bf16 %v22, %v21
  %v26 = vpack.c.bf16 %v24, %v23
  %v27 = vld [vmem:[%s1] sm:$0xf]
  %v28 = vld [vmem:[%s1 + $0x4] sm:$0xf]
  %v29 = vld [vmem:[%s1 + $0x8] sm:$0xf]
  %v30 = vld [vmem:[%s1 + $0xc] sm:$0xf]
  %v31 = vld [vmem:[%s1 + $0x10] sm:$0xf]
  %v32 = vld [vmem:[%s1 + $0x14] sm:$0xf]
  %v33 = vld [vmem:[%s2] sm:$0x1]
  %v35 = vperm.slane %v33, 0
  %v43 = vunpack.c.l.b16 %v27
  %v44 = vunpack.c.l.b16 %v28
  %v45 = vunpack.c.l.b16 %v29
  %v46 = vunpack.c.l.b16 %v30
  %v47 = vunpack.c.l.b16 %v31
  %v48 = vunpack.c.l.b16 %v32
  %v49 = vpack.c.b16 %v44, %v43
  %v50 = vpack.c.b16 %v46, %v45
  %v51 = vpack.c.b16 %v48, %v47
  %vm55 = vcmask 392192
  %v57 = vsel %vm55, %v25, 0
  %v60 = vsel %vm55, %v26, 0
  %62 = vmatpush.bf16.msra.mxu0 0
  %63 = vmatpush.bf16.msra.mxu0 0
  %64 = vmatpush.bf16.msra.mxu0 0
  %65 = vmatpush.bf16.msra.mxu0 0
  %66 = vmatpush.bf16.msra.mxu0 0
  %67 = vmatpush.bf16.msra.mxu0 %v51
  %68 = vmatpush.bf16.msra.mxu0 %v50
  %69 = vmatpush.bf16.msra.mxu0 %v49
  %70 = vmatmul.bf16.gmra.mxu0 %v57
  %v71 = vpop.f32.mrf.mxu0
  %v72 = vadd.f32 %v35, %v71
  %v73 = vpop.f32.mrf.mxu0
  %v74 = vadd.f32 %v35, %v73
  %75 = vmatmul.bf16.gmra.mxu0 %v60
  %v76 = vpop.f32.mrf.mxu0
  %v77 = vadd.f32 %v35, %v76
  %v78 = vpop.f32.mrf.mxu0
  %v79 = vadd.f32 %v35, %v78
  %80 = vdwg.mxu0
  %v81 = vld [vmem:[%s3] sm:$0x1]
  %v82 = vld [vmem:[%s4] sm:$0x1]
  %vm83 = vcmask 64512
  %v84 = vsel %vm83, %v72, 0.0
  %85 = vadd.xlane.f32.xlu0 %v84
  %v86 = vpop.xlane.xlu0 %85
  %v87 = vsel %vm83, %v74, 0.0
  %88 = vadd.xlane.f32.xlu0 %v87
  %v89 = vpop.xlane.xlu0 %88
  %v90 = vsel %vm83, %v77, 0.0
  %91 = vadd.xlane.f32.xlu0 %v90
  %v92 = vpop.xlane.xlu0 %91
  %v93 = vsel %vm83, %v79, 0.0
  %94 = vadd.xlane.f32.xlu0 %v93
  %v95 = vpop.xlane.xlu0 %94
  %v96 = vrcp.pop 8.0
  %v97 = vmul.f32 8.0, %v96
  %v98 = vsub.f32 1.0, %v97
  %v99 = vmul.f32 %v96, %v98
  %v100 = vadd.f32 %v96, %v99
  %vm101 = vweird.f32 %v96
  %v102 = vsel %vm101, %v96, %v100
  %v103 = vmul.f32 %v86, %v102
  %v104 = vmul.f32 %v89, %v102
  %v105 = vmul.f32 %v92, %v102
  %v106 = vmul.f32 %v95, %v102
  %v107 = vmul.f32 %v72, %v72
  %v108 = vmul.f32 %v74, %v74
  %v109 = vmul.f32 %v77, %v77
  %v110 = vmul.f32 %v79, %v79
  %v111 = vsel %vm83, %v107, 0.0
  %112 = vadd.xlane.f32.xlu0 %v111
  %v113 = vpop.xlane.xlu0 %112
  %v114 = vsel %vm83, %v108, 0.0
  %115 = vadd.xlane.f32.xlu0 %v114
  %v116 = vpop.xlane.xlu0 %115
  %v117 = vsel %vm83, %v109, 0.0
  %118 = vadd.xlane.f32.xlu0 %v117
  %v119 = vpop.xlane.xlu0 %118
  %v120 = vsel %vm83, %v110, 0.0
  %121 = vadd.xlane.f32.xlu0 %v120
  %v122 = vpop.xlane.xlu0 %121
  %v123 = vmul.f32 %v113, %v102
  %v124 = vmul.f32 %v116, %v102
  %v125 = vmul.f32 %v119, %v102
  %v126 = vmul.f32 %v122, %v102
  %v127 = vmul.f32 %v103, %v103
  %v128 = vmul.f32 %v104, %v104
  %v129 = vmul.f32 %v105, %v105
  %v130 = vmul.f32 %v106, %v106
  %v131 = vsub.f32 %v123, %v127
  %v132 = vsub.f32 %v124, %v128
  %v133 = vsub.f32 %v125, %v129
  %v134 = vsub.f32 %v126, %v130
  %v135 = vmax.f32 %v131, 0.0
  %v136 = vmax.f32 %v132, 0.0
  %v137 = vmax.f32 %v133, 0.0
  %v138 = vmax.f32 %v134, 0.0
  %v139 = vsub.f32 %v72, %v103
  %v140 = vsub.f32 %v74, %v104
  %v141 = vsub.f32 %v77, %v105
  %v142 = vsub.f32 %v79, %v106
  %v143 = vadd.f32 %v135, 1e-06
  %v144 = vadd.f32 %v136, 1e-06
  %v145 = vadd.f32 %v137, 1e-06
  %v146 = vadd.f32 %v138, 1e-06
  %v147 = vrsqrt.pop %v143
  %v148 = vmul.f32 %v147, %v143
  %v149 = vmul.f32 %v148, %v147
  %v150 = vmul.f32 0.5, %v149
  %v151 = vsub.f32 1.5, %v150
  %v152 = vmul.f32 %v147, %v151
  %vm153 = vweird.f32 %v143
  %vm154 = vweird.f32 %v147
  %vm155 = vmor %vm153, %vm154
  %v156 = vsel %vm155, %v147, %v152
  %v157 = vrsqrt.pop %v144
  %v158 = vmul.f32 %v157, %v144
  %v159 = vmul.f32 %v158, %v157
  %v160 = vmul.f32 0.5, %v159
  %v161 = vsub.f32 1.5, %v160
  %v162 = vmul.f32 %v157, %v161
  %vm163 = vweird.f32 %v144
  %vm164 = vweird.f32 %v157
  %vm165 = vmor %vm163, %vm164
  %v166 = vsel %vm165, %v157, %v162
  %v167 = vrsqrt.pop %v145
  %v168 = vmul.f32 %v167, %v145
  %v169 = vmul.f32 %v168, %v167
  %v170 = vmul.f32 0.5, %v169
  %v171 = vsub.f32 1.5, %v170
  %v172 = vmul.f32 %v167, %v171
  %vm173 = vweird.f32 %v145
  %vm174 = vweird.f32 %v167
  %vm175 = vmor %vm173, %vm174
  %v176 = vsel %vm175, %v167, %v172
  %v177 = vrsqrt.pop %v146
  %v178 = vmul.f32 %v177, %v146
  %v179 = vmul.f32 %v178, %v177
  %v180 = vmul.f32 0.5, %v179
  %v181 = vsub.f32 1.5, %v180
  %v182 = vmul.f32 %v177, %v181
  %vm183 = vweird.f32 %v146
  %vm184 = vweird.f32 %v177
  %vm185 = vmor %vm183, %vm184
  %v186 = vsel %vm185, %v177, %v182
  %v187 = vmul.f32 %v139, %v156
  %v188 = vmul.f32 %v140, %v166
  %v189 = vmul.f32 %v141, %v176
  %v190 = vmul.f32 %v142, %v186
  %v192 = vperm.slane %v81, 0
  %v194 = vmul.f32 %v187, %v192
  %v195 = vmul.f32 %v188, %v192
  %v196 = vmul.f32 %v189, %v192
  %v197 = vmul.f32 %v190, %v192
  %v199 = vperm.slane %v82, 0
  %v201 = vadd.f32 %v194, %v199
  %v202 = vadd.f32 %v195, %v199
  %v203 = vadd.f32 %v196, %v199
  %v204 = vadd.f32 %v197, %v199
  %205 = vst.msk [vmem:[%s5] sm:$0xff] %vm83, %v201
  %206 = vst.msk [vmem:[%s5 + $0x8] sm:$0xff] %vm83, %v202
  %207 = vst.msk [vmem:[%s5 + $0x10] sm:$0xff] %vm83, %v203
  %208 = vst.msk [vmem:[%s5 + $0x18] sm:$0xff] %vm83, %v204
  // Predicated region
  $region22: #{convnext_forward.5} parent=0 // pred_check
    _
  $region23: #{convnext_forward.5} parent=0 // pred_check_branch
    %210 = sbr.rel (0) target = $region25
  $region24: #{convnext_forward.5} parent=0 // pred_region
    _
  $region25: #{convnext_forward.5} parent=0 // pred_fallthru
    _
  // Predicated region
  $region26: #{convnext_forward.5} parent=0 // pred_check
    _
  $region27: #{convnext_forward.5} parent=0 // pred_check_branch
    %212 = sbr.rel (0) target = $region29
  $region28: #{convnext_forward.5} parent=0 // pred_region
    _
  $region29: #{convnext_forward.5} parent=0 // pred_fallthru
    _

// kernel: convnext_forward.9
$region0: #{convnext_forward.9}
  #allocation0 [shape = 'u32[]', space=smem, size = 0x4, offset = 0x4, fixed_abs, tag = 'smem constant byte address 0x4 - core index']
  #allocation1 [shape = 'u32[72,128]{1,0:T(1,128)}', space=vmem, size = 0x9000, scoped, tag = 'internal scratch']
  %s0 = inlined_call_operand.vmem [shape: f32[2,4,16], index: 0, kind: input, shape index: {}]
  %s1 = inlined_call_operand.vmem [shape: f32[1,16], index: 1, kind: input, shape index: {}]
  %s2 = inlined_call_operand.vmem [shape: f32[1,16], index: 2, kind: input, shape index: {}]
  %s3 = inlined_call_operand.vmem [shape: f32[16,10], index: 3, kind: input, shape index: {}]
  %s4 = inlined_call_operand.vmem [shape: f32[1,10], index: 4, kind: input, shape index: {}]
  %s5 = inlined_call_operand.hbm [shape: f32[2,1,10], index: 5, kind: output, shape index: {}]
  %s6 = sld [smem:[#allocation0]]
  $region53: #{convnext_forward.9} parent=0
    _
  %s8 = ssub.s32 1, %s6
  %s9 = scalar_select 0, %s8, %s6
  $region1: #{convnext_forward.9} parent=0
    #allocation2 [shape = 'u8[1024]{0}', space=vmem, size = 0x400, scoped, tag = 'output window, operand 0']
    #allocation3 [shape = 's32[2]{0}', space=sflag, size = 0x8, scoped, tag = 'scoped memory for convnext_forward.9']
    %10 = vsyncpa [#allocation3], 0
    %s11 = scalar_lea.sflag [#allocation3], 1
    %12 = vsyncpa %s11, 0
    loop: start=0, step=1, limit=4
    $region2: #{convnext_forward.9} parent=1 // loop_pre_header
      _
    $region3: #{convnext_forward.9} parent=1 // loop_header
      %s14 = sphi 0, %s18
      %p15 = scmp.ge.s32.totalorder %s14, 4
      %s24 = sphi 0, %s26
      %s27 = sphi 0, %s24
      %s28 = sphi 0, %s27
      %s44 = sphi 0, %s28
      %s48 = sphi 0, %s48
      %s50 = sphi 0, %s48
      %s51 = sphi 0, %s50
      %s65 = sphi 0, %s51
      %s69 = sphi 0, %s69
      %s71 = sphi 0, %s69
      %s72 = sphi 0, %s71
      %s86 = sphi 0, %s72
      %s90 = sphi 0, %s90
      %s92 = sphi 0, %s90
      %s93 = sphi 0, %s92
      %s107 = sphi 0, %s93
      %s111 = sphi 0, %s111
      %s113 = sphi 0, %s111
      %s114 = sphi 0, %s113
      %s128 = sphi 0, %s114
      %s134 = sphi 0, %s136
      %s137 = sphi 0, %s134
      %s138 = sphi 0, %s137
      %s154 = sphi 0, %s138
    $region4: #{convnext_forward.9} parent=1 // loop_header_branch
      %17 = sbr.rel (%p15) target = $region8
    $region5: #{convnext_forward.9} parent=1 // loop_body
      %s19 = ssub.s32 %s14, 1
      %s20 = ssub.s32 %s14, 2
      %s21 = sadd.s32 %s14, 1
      %s22 = ssub.s32 %s14, %s21
      %p23 = scmp.eq.s32.totalorder %s22, 0
      %s25 = sadd.s32 %s24, 1
      %s26 = scalar_select %p23, %s24, %s25
      %p29 = pneg %p23
      %p30 = scmp.eq.s32.totalorder %s14, 1
      %p31 = por %p29, %p30
      %p32 = scmp.ne.s32.totalorder %s24, %s27
      %p33 = scmp.eq.s32.totalorder %s14, 0
      %p34 = por %p32, %p33
      %p35 = scmp.ne.s32.totalorder %s24, %s27
      %p36 = scmp.eq.s32.totalorder %s19, 1
      %p37 = por %p35, %p36
      %p38 = scmp.ne.s32.totalorder %s27, %s28
      %p39 = scmp.eq.s32.totalorder %s19, 0
      %p40 = por %p38, %p39
      %p41 = scmp.ne.s32.totalorder %s27, %s28
      %p42 = scmp.eq.s32.totalorder %s20, 1
      %p43 = por %p41, %p42
      %p45 = scmp.ne.s32.totalorder %s28, %s44
      %p46 = scmp.eq.s32.totalorder %s20, 0
      %p47 = por %p45, %p46
      %s49 = sadd.s32 %s48, 1
      %p52 = scmp.eq.s32.totalorder %s14, 1
      %p53 = scmp.ne.s32.totalorder %s48, %s50
      %p54 = scmp.eq.s32.totalorder %s14, 0
      %p55 = por %p53, %p54
      %p56 = scmp.ne.s32.totalorder %s48, %s50
      %p57 = scmp.eq.s32.totalorder %s19, 1
      %p58 = por %p56, %p57
      %p59 = scmp.ne.s32.totalorder %s50, %s51
      %p60 = scmp.eq.s32.totalorder %s19, 0
      %p61 = por %p59, %p60
      %p62 = scmp.ne.s32.totalorder %s50, %s51
      %p63 = scmp.eq.s32.totalorder %s20, 1
      %p64 = por %p62, %p63
      %p66 = scmp.ne.s32.totalorder %s51, %s65
      %p67 = scmp.eq.s32.totalorder %s20, 0
      %p68 = por %p66, %p67
      %s70 = sadd.s32 %s69, 1
      %p73 = scmp.eq.s32.totalorder %s14, 1
      %p74 = scmp.ne.s32.totalorder %s69, %s71
      %p75 = scmp.eq.s32.totalorder %s14, 0
      %p76 = por %p74, %p75
      %p77 = scmp.ne.s32.totalorder %s69, %s71
      %p78 = scmp.eq.s32.totalorder %s19, 1
      %p79 = por %p77, %p78
      %p80 = scmp.ne.s32.totalorder %s71, %s72
      %p81 = scmp.eq.s32.totalorder %s19, 0
      %p82 = por %p80, %p81
      %p83 = scmp.ne.s32.totalorder %s71, %s72
      %p84 = scmp.eq.s32.totalorder %s20, 1
      %p85 = por %p83, %p84
      %p87 = scmp.ne.s32.totalorder %s72, %s86
      %p88 = scmp.eq.s32.totalorder %s20, 0
      %p89 = por %p87, %p88
      %s91 = sadd.s32 %s90, 1
      %p94 = scmp.eq.s32.totalorder %s14, 1
      %p95 = scmp.ne.s32.totalorder %s90, %s92
      %p96 = scmp.eq.s32.totalorder %s14, 0
      %p97 = por %p95, %p96
      %p98 = scmp.ne.s32.totalorder %s90, %s92
      %p99 = scmp.eq.s32.totalorder %s19, 1
      %p100 = por %p98, %p99
      %p101 = scmp.ne.s32.totalorder %s92, %s93
      %p102 = scmp.eq.s32.totalorder %s19, 0
      %p103 = por %p101, %p102
      %p104 = scmp.ne.s32.totalorder %s92, %s93
      %p105 = scmp.eq.s32.totalorder %s20, 1
      %p106 = por %p104, %p105
      %p108 = scmp.ne.s32.totalorder %s93, %s107
      %p109 = scmp.eq.s32.totalorder %s20, 0
      %p110 = por %p108, %p109
      %s112 = sadd.s32 %s111, 1
      %p115 = scmp.eq.s32.totalorder %s14, 1
      %p116 = scmp.ne.s32.totalorder %s111, %s113
      %p117 = scmp.eq.s32.totalorder %s14, 0
      %p118 = por %p116, %p117
      %p119 = scmp.ne.s32.totalorder %s111, %s113
      %p120 = scmp.eq.s32.totalorder %s19, 1
      %p121 = por %p119, %p120
      %p122 = scmp.ne.s32.totalorder %s113, %s114
      %p123 = scmp.eq.s32.totalorder %s19, 0
      %p124 = por %p122, %p123
      %p125 = scmp.ne.s32.totalorder %s113, %s114
      %p126 = scmp.eq.s32.totalorder %s20, 1
      %p127 = por %p125, %p126
      %p129 = scmp.ne.s32.totalorder %s114, %s128
      %p130 = scmp.eq.s32.totalorder %s20, 0
      %p131 = por %p129, %p130
      %s132 = ssub.s32 %s14, %s21
      %p133 = scmp.eq.s32.totalorder %s132, 0
      %s135 = sadd.s32 %s134, 1
      %s136 = scalar_select %p133, %s134, %s135
      %p139 = pneg %p133
      %p140 = scmp.eq.s32.totalorder %s14, 1
      %p141 = por %p139, %p140
      %p142 = scmp.ne.s32.totalorder %s134, %s137
      %p143 = scmp.eq.s32.totalorder %s14, 0
      %p144 = por %p142, %p143
      %p145 = scmp.ne.s32.totalorder %s134, %s137
      %p146 = scmp.eq.s32.totalorder %s19, 1
      %p147 = por %p145, %p146
      %p148 = scmp.ne.s32.totalorder %s137, %s138
      %p149 = scmp.eq.s32.totalorder %s19, 0
      %p150 = por %p148, %p149
      %p151 = scmp.ne.s32.totalorder %s137, %s138
      %p152 = scmp.eq.s32.totalorder %s20, 1
      %p153 = por %p151, %p152
      %p155 = scmp.ne.s32.totalorder %s138, %s154
      %p156 = scmp.eq.s32.totalorder %s20, 0
      %p157 = por %p155, %p156
      %p158 = scmp.le.s32.totalorder 1, %s14
      %p159 = scmp.lt.s32.totalorder %s14, 3
      %p160 = pnand %p158, %p159
      %p161 = pneg %p160
      // Predicated region
      $region9: #{convnext_forward.9} parent=5 // pred_check
        _
      $region10: #{convnext_forward.9} parent=5 // pred_check_branch
        %163 = sbr.rel (%p160) target = $region12
      $region11: #{convnext_forward.9} parent=5 // pred_region
        %s164 = ssub.s32 %s14, 1
        // Predicated region
        $region13: #{convnext_forward.9} parent=11 // pred_check
          %p165 = pneg %p61
        $region14: #{convnext_forward.9} parent=11 // pred_check_branch
          %167 = sbr.rel (%p165) target = $region16
        $region15: #{convnext_forward.9} parent=11 // pred_region
          _
        $region16: #{convnext_forward.9} parent=11 // pred_fallthru
          _
        // Predicated region
        $region17: #{convnext_forward.9} parent=11 // pred_check
          %p168 = pneg %p82
        $region18: #{convnext_forward.9} parent=11 // pred_check_branch
          %170 = sbr.rel (%p168) target = $region20
        $region19: #{convnext_forward.9} parent=11 // pred_region
          _
        $region20: #{convnext_forward.9} parent=11 // pred_fallthru
          _
        // Predicated region
        $region21: #{convnext_forward.9} parent=11 // pred_check
          %p171 = pneg %p103
        $region22: #{convnext_forward.9} parent=11 // pred_check_branch
          %173 = sbr.rel (%p171) target = $region24
        $region23: #{convnext_forward.9} parent=11 // pred_region
          _
        $region24: #{convnext_forward.9} parent=11 // pred_fallthru
          _
        // Predicated region
        $region25: #{convnext_forward.9} parent=11 // pred_check
          %p174 = pneg %p124
        $region26: #{convnext_forward.9} parent=11 // pred_check_branch
          %176 = sbr.rel (%p174) target = $region28
        $region27: #{convnext_forward.9} parent=11 // pred_region
          _
        $region28: #{convnext_forward.9} parent=11 // pred_fallthru
          _
      $region12: #{convnext_forward.9} parent=5 // pred_fallthru
        _
      %p177 = scmp.lt.s32.totalorder %s14, 2
      // Predicated region
      $region29: #{convnext_forward.9} parent=5 // pred_check
        %p178 = pneg %p177
      $region30: #{convnext_forward.9} parent=5 // pred_check_branch
        %180 = sbr.rel (%p178) target = $region32
      $region31: #{convnext_forward.9} parent=5 // pred_region
        // Predicated region
        $region33: #{convnext_forward.9} parent=31 // pred_check
          %p181 = pneg %p34
        $region34: #{convnext_forward.9} parent=31 // pred_check_branch
          %183 = sbr.rel (%p181) target = $region36
        $region35: #{convnext_forward.9} parent=31 // pred_region
          %p184 = scmp.lt.s32.totalorder %s14, 1
          %s185 = scalar_select %p184, %s14, 1
          %s186 = smul.addr %s185, 4
          %s187 = scalar_lea.vmem %s0, %s186
        $region36: #{convnext_forward.9} parent=31 // pred_fallthru
          _
      $region32: #{convnext_forward.9} parent=5 // pred_fallthru
        _
      %p188 = scmp.le.s32.totalorder 1, %s14
      %p189 = scmp.lt.s32.totalorder %s14, 3
      %p190 = pnand %p188, %p189
      %p191 = pneg %p190
      // Predicated region
      $region37: #{convnext_forward.9} parent=5 // pred_check
        _
      $region38: #{convnext_forward.9} parent=5 // pred_check_branch
        %193 = sbr.rel (%p190) target = $region40
      $region39: #{convnext_forward.9} parent=5 // pred_region
        %s194 = ssub.s32 %s14, 1
        %p195 = scmp.lt.s32.totalorder %s19, 1
        %s196 = scalar_select %p195, %s19, 1
        %s197 = smul.addr %s196, 4
        %s198 = scalar_lea.vmem %s0, %s197
        %p199 = pneg %p40
        %p200 = pneg %p37
        %p201 = pneg %p61
        %p202 = pneg %p58
        %p203 = pneg %p82
        %p204 = pneg %p79
        %p205 = pneg %p103
        %p206 = pneg %p100
        %p207 = pneg %p124
        %p208 = pneg %p121
        %p209 = pneg %p150
        %p210 = pneg %p147
        %s211 = sand.u32 %s137, 1
        %s212 = scalar_lea.sflag [#allocation3], %s211
        %s213 = sand.u32 %s137, 1
        %s214 = scalar_lea.vmem [#allocation2], %s213
        %p215 = scmp.lt.s32.totalorder %s19, 1
        %s216 = scalar_select %p215, %s19, 1
        %s217 = smul.addr %s216, 4
        %s218 = scalar_lea.vmem %s0, %s217
        %v219 = vld [vmem:[%s218] sm:$0xf]
        %vm220 = vcmask 125952
        %v221 = vsel %vm220, %v219, 0.0
        %v222 = vrot.slane %v221, 4
        %v223 = vadd.f32 %v221, %v222
        %v224 = vrot.slane %v223, 2
        %v225 = vadd.f32 %v223, %v224
        %v226 = vrot.slane %v225, 1
        %v227 = vadd.f32 %v225, %v226
        %v228 = vrcp.pop 4.0
        %v229 = vmul.f32 4.0, %v228
        %v230 = vsub.f32 1.0, %v229
        %v231 = vmul.f32 %v228, %v230
        %v232 = vadd.f32 %v228, %v231
        %vm233 = vweird.f32 %v228
        %v234 = vsel %vm233, %v228, %v232
        %v235 = vmul.f32 %v227, %v234
        %v236 = vld [vmem:[%s1] sm:$0x1]
        %v237 = vld [vmem:[%s2] sm:$0x1]
        %vm238 = vcmask 130048
        %v239 = vsel %vm238, %v235, 0.0
        %240 = vadd.xlane.f32.xlu0 %v239
        %v241 = vpop.xlane.xlu0 %240
        %v242 = vrcp.pop 16.0
        %v243 = vmul.f32 16.0, %v242
        %v244 = vsub.f32 1.0, %v243
        %v245 = vmul.f32 %v242, %v244
        %v246 = vadd.f32 %v242, %v245
        %vm247 = vweird.f32 %v242
        %v248 = vsel %vm247, %v242, %v246
        %v249 = vmul.f32 %v241, %v248
        %v250 = vmul.f32 %v235, %v235
        %v251 = vsel %vm238, %v250, 0.0
        %252 = vadd.xlane.f32.xlu0 %v251
        %v253 = vpop.xlane.xlu0 %252
        %v254 = vmul.f32 %v253, %v248
        %v255 = vmul.f32 %v249, %v249
        %v256 = vsub.f32 %v254, %v255
        %v257 = vmax.f32 %v256, 0.0
        %v258 = vsub.f32 %v235, %v249
        %v259 = vadd.f32 %v257, 1e-06
        %v260 = vrsqrt.pop %v259
        %v261 = vmul.f32 %v260, %v259
        %v262 = vmul.f32 %v261, %v260
        %v263 = vmul.f32 0.5, %v262
        %v264 = vsub.f32 1.5, %v263
        %v265 = vmul.f32 %v260, %v264
        %vm266 = vweird.f32 %v259
        %vm267 = vweird.f32 %v260
        %vm268 = vmor %vm266, %vm267
        %v269 = vsel %vm268, %v260, %v265
        %v270 = vmul.f32 %v258, %v269
        %v271 = vmul.f32 %v270, %v236
        %v272 = vadd.f32 %v271, %v237
        %v273 = vld [vmem:[%s3] sm:$0xff]
        %v274 = vld [vmem:[%s3 + $0x8] sm:$0xff]
        %v275 = vld [vmem:[%s4] sm:$0x1]
        %v277 = vsel %vm238, %v272, 0
        %279 = vmatpush.msra.mxu0 0.0
        %280 = vmatpush.msra.mxu0 0.0
        %281 = vmatpush.msra.mxu0 0.0
        %282 = vmatpush.msra.mxu0 0.0
        %283 = vmatpush.msra.mxu0 0.0
        %284 = vmatpush.msra.mxu0 0.0
        %285 = vmatpush.msra.mxu0 0.0
        %286 = vmatpush.msra.mxu0 0.0
        %287 = vmatpush.msra.mxu0 0.0
        %288 = vmatpush.msra.mxu0 0.0
        %289 = vmatpush.msra.mxu0 0.0
        %290 = vmatpush.msra.mxu0 0.0
        %291 = vmatpush.msra.mxu0 0.0
        %292 = vmatpush.msra.mxu0 0.0
        %293 = vmatpush.msra.mxu0 %v274
        %294 = vmatpush.msra.mxu0 %v273
        %295 = vmatmul.f32.gmra.mxu0 %v277
        %v296 = vpop.f32.mrf.mxu0
        %v297 = vadd.f32 %v275, %v296
        %298 = vdwg.mxu0
        %vm299 = vcmask 73728
        %300 = vst.msk [vmem:[%s214] sm:$0x1] %vm299, %v297
        %s301 = sand.u32 %s137, 1
        %s302 = scalar_lea.sflag [#allocation3], %s301
        %s303 = sand.u32 %s137, 1
        %s304 = scalar_lea.vmem [#allocation2], %s303
        // Predicated region
        $region41: #{convnext_forward.9} parent=39 // pred_check
          %p305 = pneg %p147
        $region42: #{convnext_forward.9} parent=39 // pred_check_branch
          %307 = sbr.rel (%p305) target = $region44
        $region43: #{convnext_forward.9} parent=39 // pred_region
          %309 = vsyncadd %s302, 0
          %s310 = scalar_lea.hbm %s5, %s19
          %s312 = sshll.u32 %s304, 4
          %s313 = int_to_ptr.vmem [resolvable:$true] %s312
          %s314 = sshll.u32 %s310, 4
          %s315 = int_to_ptr.hbm [resolvable:$true] %s314
          %317 = dma.vmem_to_hbm [thread:$0]  %s313, 16, %s315, %s302
        $region44: #{convnext_forward.9} parent=39 // pred_fallthru
          _
      $region40: #{convnext_forward.9} parent=5 // pred_fallthru
        _
      %p318 = scmp.le.s32.totalorder 2, %s14
      // Predicated region
      $region45: #{convnext_forward.9} parent=5 // pred_check
        %p319 = pneg %p318
      $region46: #{convnext_forward.9} parent=5 // pred_check_branch
        %321 = sbr.rel (%p319) target = $region48
      $region47: #{convnext_forward.9} parent=5 // pred_region
        %s322 = ssub.s32 %s14, 2
        // Predicated region
        $region49: #{convnext_forward.9} parent=47 // pred_check
          %p323 = pneg %p153
        $region50: #{convnext_forward.9} parent=47 // pred_check_branch
          %325 = sbr.rel (%p323) target = $region52
        $region51: #{convnext_forward.9} parent=47 // pred_region
          %s326 = sand.u32 %s138, 1
          %s327 = scalar_lea.sflag [#allocation3], %s326
          %s328 = sand.u32 %s138, 1
          %s329 = scalar_lea.vmem [#allocation2], %s328
          %331 = dma.done %s327, 16
        $region52: #{convnext_forward.9} parent=47 // pred_fallthru
          _
      $region48: #{convnext_forward.9} parent=5 // pred_fallthru
        _
    $region6: #{convnext_forward.9} parent=1 // loop_footer
      %s18 = sadd.s32 1, %s14
    $region7: #{convnext_forward.9} parent=1 // loop_footer_branch
      %13 = sbr.rel target = $region3
    $region8: #{convnext_forward.9} parent=1 // loop_exit
      _
    %332 = vsyncpa [#allocation3], 1
    %s333 = scalar_lea.sflag [#allocation3], 1
    %334 = vsyncpa %s333, 1

// kernel: convnext_forward.8
$region0: #{convnext_forward.8}
  #allocation0 [shape = 'u32[]', space=smem, size = 0x4, offset = 0x4, fixed_abs, tag = 'smem constant byte address 0x4 - core index']
  #allocation1 [shape = 'u32[72,128]{1,0:T(1,128)}', space=vmem, size = 0x9000, scoped, tag = 'internal scratch']
  %s0 = inlined_call_operand.vmem [shape: f32[2,80,16], index: 0, kind: input, shape index: {}, may-alias: {0,13}]
  %s1 = inlined_call_operand.vmem [shape: f32[16,1], index: 1, kind: input, shape index: {}]
  %s2 = inlined_call_operand.vmem [shape: f32[49,16], index: 2, kind: input, shape index: {}]
  %s3 = inlined_call_operand.vmem [shape: f32[1,16], index: 3, kind: input, shape index: {}]
  %s4 = inlined_call_operand.vmem [shape: f32[1,16], index: 4, kind: input, shape index: {}, may-alias: {4,11}]
  %s5 = inlined_call_operand.vmem [shape: f32[1,16], index: 5, kind: input, shape index: {}, may-alias: {5,12}]
  %s6 = inlined_call_operand.vmem [shape: bf16[16,64], index: 6, kind: input, shape index: {}]
  %s7 = inlined_call_operand.vmem [shape: f32[1,64], index: 7, kind: input, shape index: {}]
  %s8 = inlined_call_operand.vmem [shape: bf16[64,16], index: 8, kind: input, shape index: {}]
  %s9 = inlined_call_operand.vmem [shape: f32[1,16], index: 9, kind: input, shape index: {}]
  %s10 = inlined_call_operand.vmem [shape: f32[1,16], index: 10, kind: input, shape index: {}]
  %s11 = inlined_call_operand.vmem [shape: f32[1,16], index: 11, kind: input, shape index: {}, may-alias: {4,11}]
  %s12 = inlined_call_operand.vmem [shape: f32[1,16], index: 12, kind: input, shape index: {}, may-alias: {5,12}]
  %s13 = inlined_call_operand.vmem [shape: f32[2,80,16], index: 13, kind: output, shape index: {}, may-alias: {0,13}]
  %s14 = sld [smem:[#allocation0]]
  $region85: #{convnext_forward.8} parent=0
    _
  %s16 = ssub.s32 1, %s14
  %s17 = scalar_select 0, %s16, %s14
  loop: start=0, step=1, limit=4
  $region2: #{convnext_forward.8} parent=0 // loop_pre_header
    _
  $region3: #{convnext_forward.8} parent=0 // loop_header
    %s19 = sphi 0, %s23
    %p20 = scmp.ge.s32.totalorder %s19, 4
    %s26 = sphi 0, %s38
    %s27 = sphi 0, %s34
    %s28 = sphi 0, %s26
    %s29 = sphi 0, %s27
    %s30 = sphi 0, %s28
    %s31 = sphi 0, %s29
    %s41 = sphi 0, %s43
    %s44 = sphi 0, %s41
    %s45 = sphi 0, %s44
    %s61 = sphi 0, %s45
    %s65 = sphi 0, %s65
    %s67 = sphi 0, %s65
    %s68 = sphi 0, %s67
    %s82 = sphi 0, %s68
    %s86 = sphi 0, %s86
    %s88 = sphi 0, %s86
    %s89 = sphi 0, %s88
    %s103 = sphi 0, %s89
    %s107 = sphi 0, %s107
    %s109 = sphi 0, %s107
    %s110 = sphi 0, %s109
    %s124 = sphi 0, %s110
    %s128 = sphi 0, %s128
    %s130 = sphi 0, %s128
    %s131 = sphi 0, %s130
    %s145 = sphi 0, %s131
    %s149 = sphi 0, %s149
    %s151 = sphi 0, %s149
    %s152 = sphi 0, %s151
    %s166 = sphi 0, %s152
    %s170 = sphi 0, %s170
    %s172 = sphi 0, %s170
    %s173 = sphi 0, %s172
    %s187 = sphi 0, %s173
    %s191 = sphi 0, %s191
    %s193 = sphi 0, %s191
    %s194 = sphi 0, %s193
    %s208 = sphi 0, %s194
    %s212 = sphi 0, %s212
    %s214 = sphi 0, %s212
    %s215 = sphi 0, %s214
    %s229 = sphi 0, %s215
    %s233 = sphi 0, %s233
    %s235 = sphi 0, %s233
    %s236 = sphi 0, %s235
    %s250 = sphi 0, %s236
    %s254 = sphi 0, %s254
    %s256 = sphi 0, %s254
    %s257 = sphi 0, %s256
    %s271 = sphi 0, %s257
    %s275 = sphi 0, %s275
    %s277 = sphi 0, %s275
    %s278 = sphi 0, %s277
    %s292 = sphi 0, %s278
    %s296 = sphi 0, %s296
    %s298 = sphi 0, %s296
    %s299 = sphi 0, %s298
    %s313 = sphi 0, %s299
    %s323 = sphi 0, %s325
    %s326 = sphi 0, %s323
    %s327 = sphi 0, %s326
    %s343 = sphi 0, %s327
  $region4: #{convnext_forward.8} parent=0 // loop_header_branch
    %22 = sbr.rel (%p20) target = $region8
  $region5: #{convnext_forward.8} parent=0 // loop_body
    %s24 = ssub.s32 %s19, 1
    %s25 = ssub.s32 %s19, 2
    %s32 = sadd.s32 1, %s27
    %p33 = scmp.ge.s32.totalorder %s32, 1
    %s34 = scalar_select %p33, 0, %s32
    %s35 = sadd.s32 1, %s26
    %s36 = scalar_select %p33, %s35, %s26
    %p37 = scmp.ge.s32.totalorder %s36, 2
    %s38 = scalar_select %p37, 0, %s36
    %s39 = ssub.s32 %s26, %s38
    %p40 = scmp.eq.s32.totalorder %s39, 0
    %s42 = sadd.s32 %s41, 1
    %s43 = scalar_select %p40, %s41, %s42
    %p46 = pneg %p40
    %p47 = scmp.eq.s32.totalorder %s19, 1
    %p48 = por %p46, %p47
    %p49 = scmp.ne.s32.totalorder %s41, %s44
    %p50 = scmp.eq.s32.totalorder %s19, 0
    %p51 = por %p49, %p50
    %p52 = scmp.ne.s32.totalorder %s41, %s44
    %p53 = scmp.eq.s32.totalorder %s24, 1
    %p54 = por %p52, %p53
    %p55 = scmp.ne.s32.totalorder %s44, %s45
    %p56 = scmp.eq.s32.totalorder %s24, 0
    %p57 = por %p55, %p56
    %p58 = scmp.ne.s32.totalorder %s44, %s45
    %p59 = scmp.eq.s32.totalorder %s25, 1
    %p60 = por %p58, %p59
    %p62 = scmp.ne.s32.totalorder %s45, %s61
    %p63 = scmp.eq.s32.totalorder %s25, 0
    %p64 = por %p62, %p63
    %s66 = sadd.s32 %s65, 1
    %p69 = scmp.eq.s32.totalorder %s19, 1
    %p70 = scmp.ne.s32.totalorder %s65, %s67
    %p71 = scmp.eq.s32.totalorder %s19, 0
    %p72 = por %p70, %p71
    %p73 = scmp.ne.s32.totalorder %s65, %s67
    %p74 = scmp.eq.s32.totalorder %s24, 1
    %p75 = por %p73, %p74
    %p76 = scmp.ne.s32.totalorder %s67, %s68
    %p77 = scmp.eq.s32.totalorder %s24, 0
    %p78 = por %p76, %p77
    %p79 = scmp.ne.s32.totalorder %s67, %s68
    %p80 = scmp.eq.s32.totalorder %s25, 1
    %p81 = por %p79, %p80
    %p83 = scmp.ne.s32.totalorder %s68, %s82
    %p84 = scmp.eq.s32.totalorder %s25, 0
    %p85 = por %p83, %p84
    %s87 = sadd.s32 %s86, 1
    %p90 = scmp.eq.s32.totalorder %s19, 1
    %p91 = scmp.ne.s32.totalorder %s86, %s88
    %p92 = scmp.eq.s32.totalorder %s19, 0
    %p93 = por %p91, %p92
    %p94 = scmp.ne.s32.totalorder %s86, %s88
    %p95 = scmp.eq.s32.totalorder %s24, 1
    %p96 = por %p94, %p95
    %p97 = scmp.ne.s32.totalorder %s88, %s89
    %p98 = scmp.eq.s32.totalorder %s24, 0
    %p99 = por %p97, %p98
    %p100 = scmp.ne.s32.totalorder %s88, %s89
    %p101 = scmp.eq.s32.totalorder %s25, 1
    %p102 = por %p100, %p101
    %p104 = scmp.ne.s32.totalorder %s89, %s103
    %p105 = scmp.eq.s32.totalorder %s25, 0
    %p106 = por %p104, %p105
    %s108 = sadd.s32 %s107, 1
    %p111 = scmp.eq.s32.totalorder %s19, 1
    %p112 = scmp.ne.s32.totalorder %s107, %s109
    %p113 = scmp.eq.s32.totalorder %s19, 0
    %p114 = por %p112, %p113
    %p115 = scmp.ne.s32.totalorder %s107, %s109
    %p116 = scmp.eq.s32.totalorder %s24, 1
    %p117 = por %p115, %p116
    %p118 = scmp.ne.s32.totalorder %s109, %s110
    %p119 = scmp.eq.s32.totalorder %s24, 0
    %p120 = por %p118, %p119
    %p121 = scmp.ne.s32.totalorder %s109, %s110
    %p122 = scmp.eq.s32.totalorder %s25, 1
    %p123 = por %p121, %p122
    %p125 = scmp.ne.s32.totalorder %s110, %s124
    %p126 = scmp.eq.s32.totalorder %s25, 0
    %p127 = por %p125, %p126
    %s129 = sadd.s32 %s128, 1
    %p132 = scmp.eq.s32.totalorder %s19, 1
    %p133 = scmp.ne.s32.totalorder %s128, %s130
    %p134 = scmp.eq.s32.totalorder %s19, 0
    %p135 = por %p133, %p134
    %p136 = scmp.ne.s32.totalorder %s128, %s130
    %p137 = scmp.eq.s32.totalorder %s24, 1
    %p138 = por %p136, %p137
    %p139 = scmp.ne.s32.totalorder %s130, %s131
    %p140 = scmp.eq.s32.totalorder %s24, 0
    %p141 = por %p139, %p140
    %p142 = scmp.ne.s32.totalorder %s130, %s131
    %p143 = scmp.eq.s32.totalorder %s25, 1
    %p144 = por %p142, %p143
    %p146 = scmp.ne.s32.totalorder %s131, %s145
    %p147 = scmp.eq.s32.totalorder %s25, 0
    %p148 = por %p146, %p147
    %s150 = sadd.s32 %s149, 1
    %p153 = scmp.eq.s32.totalorder %s19, 1
    %p154 = scmp.ne.s32.totalorder %s149, %s151
    %p155 = scmp.eq.s32.totalorder %s19, 0
    %p156 = por %p154, %p155
    %p157 = scmp.ne.s32.totalorder %s149, %s151
    %p158 = scmp.eq.s32.totalorder %s24, 1
    %p159 = por %p157, %p158
    %p160 = scmp.ne.s32.totalorder %s151, %s152
    %p161 = scmp.eq.s32.totalorder %s24, 0
    %p162 = por %p160, %p161
    %p163 = scmp.ne.s32.totalorder %s151, %s152
    %p164 = scmp.eq.s32.totalorder %s25, 1
    %p165 = por %p163, %p164
    %p167 = scmp.ne.s32.totalorder %s152, %s166
    %p168 = scmp.eq.s32.totalorder %s25, 0
    %p169 = por %p167, %p168
    %s171 = sadd.s32 %s170, 1
    %p174 = scmp.eq.s32.totalorder %s19, 1
    %p175 = scmp.ne.s32.totalorder %s170, %s172
    %p176 = scmp.eq.s32.totalorder %s19, 0
    %p177 = por %p175, %p176
    %p178 = scmp.ne.s32.totalorder %s170, %s172
    %p179 = scmp.eq.s32.totalorder %s24, 1
    %p180 = por %p178, %p179
    %p181 = scmp.ne.s32.totalorder %s172, %s173
    %p182 = scmp.eq.s32.totalorder %s24, 0
    %p183 = por %p181, %p182
    %p184 = scmp.ne.s32.totalorder %s172, %s173
    %p185 = scmp.eq.s32.totalorder %s25, 1
    %p186 = por %p184, %p185
    %p188 = scmp.ne.s32.totalorder %s173, %s187
    %p189 = scmp.eq.s32.totalorder %s25, 0
    %p190 = por %p188, %p189
    %s192 = sadd.s32 %s191, 1
    %p195 = scmp.eq.s32.totalorder %s19, 1
    %p196 = scmp.ne.s32.totalorder %s191, %s193
    %p197 = scmp.eq.s32.totalorder %s19, 0
    %p198 = por %p196, %p197
    %p199 = scmp.ne.s32.totalorder %s191, %s193
    %p200 = scmp.eq.s32.totalorder %s24, 1
    %p201 = por %p199, %p200
    %p202 = scmp.ne.s32.totalorder %s193, %s194
    %p203 = scmp.eq.s32.totalorder %s24, 0
    %p204 = por %p202, %p203
    %p205 = scmp.ne.s32.totalorder %s193, %s194
    %p206 = scmp.eq.s32.totalorder %s25, 1
    %p207 = por %p205, %p206
    %p209 = scmp.ne.s32.totalorder %s194, %s208
    %p210 = scmp.eq.s32.totalorder %s25, 0
    %p211 = por %p209, %p210
    %s213 = sadd.s32 %s212, 1
    %p216 = scmp.eq.s32.totalorder %s19, 1
    %p217 = scmp.ne.s32.totalorder %s212, %s214
    %p218 = scmp.eq.s32.totalorder %s19, 0
    %p219 = por %p217, %p218
    %p220 = scmp.ne.s32.totalorder %s212, %s214
    %p221 = scmp.eq.s32.totalorder %s24, 1
    %p222 = por %p220, %p221
    %p223 = scmp.ne.s32.totalorder %s214, %s215
    %p224 = scmp.eq.s32.totalorder %s24, 0
    %p225 = por %p223, %p224
    %p226 = scmp.ne.s32.totalorder %s214, %s215
    %p227 = scmp.eq.s32.totalorder %s25, 1
    %p228 = por %p226, %p227
    %p230 = scmp.ne.s32.totalorder %s215, %s229
    %p231 = scmp.eq.s32.totalorder %s25, 0
    %p232 = por %p230, %p231
    %s234 = sadd.s32 %s233, 1
    %p237 = scmp.eq.s32.totalorder %s19, 1
    %p238 = scmp.ne.s32.totalorder %s233, %s235
    %p239 = scmp.eq.s32.totalorder %s19, 0
    %p240 = por %p238, %p239
    %p241 = scmp.ne.s32.totalorder %s233, %s235
    %p242 = scmp.eq.s32.totalorder %s24, 1
    %p243 = por %p241, %p242
    %p244 = scmp.ne.s32.totalorder %s235, %s236
    %p245 = scmp.eq.s32.totalorder %s24, 0
    %p246 = por %p244, %p245
    %p247 = scmp.ne.s32.totalorder %s235, %s236
    %p248 = scmp.eq.s32.totalorder %s25, 1
    %p249 = por %p247, %p248
    %p251 = scmp.ne.s32.totalorder %s236, %s250
    %p252 = scmp.eq.s32.totalorder %s25, 0
    %p253 = por %p251, %p252
    %s255 = sadd.s32 %s254, 1
    %p258 = scmp.eq.s32.totalorder %s19, 1
    %p259 = scmp.ne.s32.totalorder %s254, %s256
    %p260 = scmp.eq.s32.totalorder %s19, 0
    %p261 = por %p259, %p260
    %p262 = scmp.ne.s32.totalorder %s254, %s256
    %p263 = scmp.eq.s32.totalorder %s24, 1
    %p264 = por %p262, %p263
    %p265 = scmp.ne.s32.totalorder %s256, %s257
    %p266 = scmp.eq.s32.totalorder %s24, 0
    %p267 = por %p265, %p266
    %p268 = scmp.ne.s32.totalorder %s256, %s257
    %p269 = scmp.eq.s32.totalorder %s25, 1
    %p270 = por %p268, %p269
    %p272 = scmp.ne.s32.totalorder %s257, %s271
    %p273 = scmp.eq.s32.totalorder %s25, 0
    %p274 = por %p272, %p273
    %s276 = sadd.s32 %s275, 1
    %p279 = scmp.eq.s32.totalorder %s19, 1
    %p280 = scmp.ne.s32.totalorder %s275, %s277
    %p281 = scmp.eq.s32.totalorder %s19, 0
    %p282 = por %p280, %p281
    %p283 = scmp.ne.s32.totalorder %s275, %s277
    %p284 = scmp.eq.s32.totalorder %s24, 1
    %p285 = por %p283, %p284
    %p286 = scmp.ne.s32.totalorder %s277, %s278
    %p287 = scmp.eq.s32.totalorder %s24, 0
    %p288 = por %p286, %p287
    %p289 = scmp.ne.s32.totalorder %s277, %s278
    %p290 = scmp.eq.s32.totalorder %s25, 1
    %p291 = por %p289, %p290
    %p293 = scmp.ne.s32.totalorder %s278, %s292
    %p294 = scmp.eq.s32.totalorder %s25, 0
    %p295 = por %p293, %p294
    %s297 = sadd.s32 %s296, 1
    %p300 = scmp.eq.s32.totalorder %s19, 1
    %p301 = scmp.ne.s32.totalorder %s296, %s298
    %p302 = scmp.eq.s32.totalorder %s19, 0
    %p303 = por %p301, %p302
    %p304 = scmp.ne.s32.totalorder %s296, %s298
    %p305 = scmp.eq.s32.totalorder %s24, 1
    %p306 = por %p304, %p305
    %p307 = scmp.ne.s32.totalorder %s298, %s299
    %p308 = scmp.eq.s32.totalorder %s24, 0
    %p309 = por %p307, %p308
    %p310 = scmp.ne.s32.totalorder %s298, %s299
    %p311 = scmp.eq.s32.totalorder %s25, 1
    %p312 = por %p310, %p311
    %p314 = scmp.ne.s32.totalorder %s299, %s313
    %p315 = scmp.eq.s32.totalorder %s25, 0
    %p316 = por %p314, %p315
    %s317 = sadd.s32 %s27, 2
    %s318 = sadd.s32 %s34, 2
    %s319 = ssub.s32 %s26, %s38
    %s320 = ssub.s32 %s317, %s318
    %s321 = sor.u32 %s319, %s320
    %p322 = scmp.eq.s32.totalorder %s321, 0
    %s324 = sadd.s32 %s323, 1
    %s325 = scalar_select %p322, %s323, %s324
    %p328 = pneg %p322
    %p329 = scmp.eq.s32.totalorder %s19, 1
    %p330 = por %p328, %p329
    %p331 = scmp.ne.s32.totalorder %s323, %s326
    %p332 = scmp.eq.s32.totalorder %s19, 0
    %p333 = por %p331, %p332
    %p334 = scmp.ne.s32.totalorder %s323, %s326
    %p335 = scmp.eq.s32.totalorder %s24, 1
    %p336 = por %p334, %p335
    %p337 = scmp.ne.s32.totalorder %s326, %s327
    %p338 = scmp.eq.s32.totalorder %s24, 0
    %p339 = por %p337, %p338
    %p340 = scmp.ne.s32.totalorder %s326, %s327
    %p341 = scmp.eq.s32.totalorder %s25, 1
    %p342 = por %p340, %p341
    %p344 = scmp.ne.s32.totalorder %s327, %s343
    %p345 = scmp.eq.s32.totalorder %s25, 0
    %p346 = por %p344, %p345
    %p347 = scmp.le.s32.totalorder 1, %s19
    %p348 = scmp.lt.s32.totalorder %s19, 3
    %p349 = pnand %p347, %p348
    %p350 = pneg %p349
    // Predicated region
    $region9: #{convnext_forward.8} parent=5 // pred_check
      _
    $region10: #{convnext_forward.8} parent=5 // pred_check_branch
      %352 = sbr.rel (%p349) target = $region12
    $region11: #{convnext_forward.8} parent=5 // pred_region
      %s353 = ssub.s32 %s19, 1
      // Predicated region
      $region13: #{convnext_forward.8} parent=11 // pred_check
        %p354 = pneg %p78
      $region14: #{convnext_forward.8} parent=11 // pred_check_branch
        %356 = sbr.rel (%p354) target = $region16
      $region15: #{convnext_forward.8} parent=11 // pred_region
        _
      $region16: #{convnext_forward.8} parent=11 // pred_fallthru
        _
      // Predicated region
      $region17: #{convnext_forward.8} parent=11 // pred_check
        %p357 = pneg %p99
      $region18: #{convnext_forward.8} parent=11 // pred_check_branch
        %359 = sbr.rel (%p357) target = $region20
      $region19: #{convnext_forward.8} parent=11 // pred_region
        _
      $region20: #{convnext_forward.8} parent=11 // pred_fallthru
        _
      // Predicated region
      $region21: #{convnext_forward.8} parent=11 // pred_check
        %p360 = pneg %p120
      $region22: #{convnext_forward.8} parent=11 // pred_check_branch
        %362 = sbr.rel (%p360) target = $region24
      $region23: #{convnext_forward.8} parent=11 // pred_region
        _
      $region24: #{convnext_forward.8} parent=11 // pred_fallthru
        _
      // Predicated region
      $region25: #{convnext_forward.8} parent=11 // pred_check
        %p363 = pneg %p141
      $region26: #{convnext_forward.8} parent=11 // pred_check_branch
        %365 = sbr.rel (%p363) target = $region28
      $region27: #{convnext_forward.8} parent=11 // pred_region
        _
      $region28: #{convnext_forward.8} parent=11 // pred_fallthru
        _
      // Predicated region
      $region29: #{convnext_forward.8} parent=11 // pred_check
        %p366 = pneg %p162
      $region30: #{convnext_forward.8} parent=11 // pred_check_branch
        %368 = sbr.rel (%p366) target = $region32
      $region31: #{convnext_forward.8} parent=11 // pred_region
        _
      $region32: #{convnext_forward.8} parent=11 // pred_fallthru
        _
      // Predicated region
      $region33: #{convnext_forward.8} parent=11 // pred_check
        %p369 = pneg %p183
      $region34: #{convnext_forward.8} parent=11 // pred_check_branch
        %371 = sbr.rel (%p369) target = $region36
      $region35: #{convnext_forward.8} parent=11 // pred_region
        _
      $region36: #{convnext_forward.8} parent=11 // pred_fallthru
        _
      // Predicated region
      $region37: #{convnext_forward.8} parent=11 // pred_check
        %p372 = pneg %p204
      $region38: #{convnext_forward.8} parent=11 // pred_check_branch
        %374 = sbr.rel (%p372) target = $region40
      $region39: #{convnext_forward.8} parent=11 // pred_region
        _
      $region40: #{convnext_forward.8} parent=11 // pred_fallthru
        _
      // Predicated region
      $region41: #{convnext_forward.8} parent=11 // pred_check
        %p375 = pneg %p225
      $region42: #{convnext_forward.8} parent=11 // pred_check_branch
        %377 = sbr.rel (%p375) target = $region44
      $region43: #{convnext_forward.8} parent=11 // pred_region
        _
      $region44: #{convnext_forward.8} parent=11 // pred_fallthru
        _
      // Predicated region
      $region45: #{convnext_forward.8} parent=11 // pred_check
        %p378 = pneg %p246
      $region46: #{convnext_forward.8} parent=11 // pred_check_branch
        %380 = sbr.rel (%p378) target = $region48
      $region47: #{convnext_forward.8} parent=11 // pred_region
        _
      $region48: #{convnext_forward.8} parent=11 // pred_fallthru
        _
      // Predicated region
      $region49: #{convnext_forward.8} parent=11 // pred_check
        %p381 = pneg %p267
      $region50: #{convnext_forward.8} parent=11 // pred_check_branch
        %383 = sbr.rel (%p381) target = $region52
      $region51: #{convnext_forward.8} parent=11 // pred_region
        _
      $region52: #{convnext_forward.8} parent=11 // pred_fallthru
        _
      // Predicated region
      $region53: #{convnext_forward.8} parent=11 // pred_check
        %p384 = pneg %p288
      $region54: #{convnext_forward.8} parent=11 // pred_check_branch
        %386 = sbr.rel (%p384) target = $region56
      $region55: #{convnext_forward.8} parent=11 // pred_region
        _
      $region56: #{convnext_forward.8} parent=11 // pred_fallthru
        _
      // Predicated region
      $region57: #{convnext_forward.8} parent=11 // pred_check
        %p387 = pneg %p309
      $region58: #{convnext_forward.8} parent=11 // pred_check_branch
        %389 = sbr.rel (%p387) target = $region60
      $region59: #{convnext_forward.8} parent=11 // pred_region
        _
      $region60: #{convnext_forward.8} parent=11 // pred_fallthru
        _
    $region12: #{convnext_forward.8} parent=5 // pred_fallthru
      _
    %p390 = scmp.lt.s32.totalorder %s19, 2
    // Predicated region
    $region61: #{convnext_forward.8} parent=5 // pred_check
      %p391 = pneg %p390
    $region62: #{convnext_forward.8} parent=5 // pred_check_branch
      %393 = sbr.rel (%p391) target = $region64
    $region63: #{convnext_forward.8} parent=5 // pred_region
      // Predicated region
      $region65: #{convnext_forward.8} parent=63 // pred_check
        %p394 = pneg %p51
      $region66: #{convnext_forward.8} parent=63 // pred_check_branch
        %396 = sbr.rel (%p394) target = $region68
      $region67: #{convnext_forward.8} parent=63 // pred_region
        %p397 = scmp.lt.s32.totalorder %s26, 1
        %s398 = scalar_select %p397, %s26, 1
        %s399 = smul.addr %s398, 10
        %s400 = smul.addr %s399, 8
        %s401 = scalar_lea.vmem %s0, %s400
      $region68: #{convnext_forward.8} parent=63 // pred_fallthru
        _
    $region64: #{convnext_forward.8} parent=5 // pred_fallthru
      _
    %p402 = scmp.le.s32.totalorder 1, %s19
    %p403 = scmp.lt.s32.totalorder %s19, 3
    %p404 = pnand %p402, %p403
    %p405 = pneg %p404
    // Predicated region
    $region69: #{convnext_forward.8} parent=5 // pred_check
      _
    $region70: #{convnext_forward.8} parent=5 // pred_check_branch
      %407 = sbr.rel (%p404) target = $region72
    $region71: #{convnext_forward.8} parent=5 // pred_region
      %s408 = ssub.s32 %s19, 1
      %p409 = scmp.lt.s32.totalorder %s28, 1
      %s410 = scalar_select %p409, %s28, 1
      %s411 = smul.addr %s410, 10
      %s412 = smul.addr %s411, 8
      %s413 = scalar_lea.vmem %s0, %s412
      %p414 = pneg %p57
      %p415 = pneg %p54
      %p416 = pneg %p78
      %p417 = pneg %p75
      %p418 = pneg %p99
      %p419 = pneg %p96
      %p420 = pneg %p120
      %p421 = pneg %p117
      %p422 = pneg %p141
      %p423 = pneg %p138
      %p424 = pneg %p162
      %p425 = pneg %p159
      %p426 = pneg %p183
      %p427 = pneg %p180
      %p428 = pneg %p204
      %p429 = pneg %p201
      %p430 = pneg %p225
      %p431 = pneg %p222
      %p432 = pneg %p246
      %p433 = pneg %p243
      %p434 = pneg %p267
      %p435 = pneg %p264
      %p436 = pneg %p288
      %p437 = pneg %p285
      %p438 = pneg %p309
      %p439 = pneg %p306
      %p440 = pneg %p339
      %p441 = pneg %p336
      %s442 = sadd.s32 %s29, 2
      %s443 = smul.u32 2, %s442
      %p444 = scmp.lt.s32.totalorder %s28, 1
      %s445 = scalar_select %p444, %s28, 1
      %p446 = scmp.lt.s32.totalorder %s443, 9
      %s447 = scalar_select %p446, %s443, 9
      %s448 = smul.addr %s445, 10
      %s449 = sadd.s32 %s447, %s448
      %s450 = smul.addr %s449, 8
      %s451 = scalar_lea.vmem %s13, %s450
      %p452 = scmp.lt.s32.totalorder %s28, 1
      %s453 = scalar_select %p452, %s28, 1
      %s454 = smul.addr %s453, 10
      %s455 = smul.addr %s454, 8
      %s456 = scalar_lea.vmem %s0, %s455
      %s457 = sadd.s32 %s29, 2
      %s458 = smul.u32 2, %s457
      %p459 = scmp.lt.s32.totalorder %s28, 1
      %s460 = scalar_select %p459, %s28, 1
      %p461 = scmp.lt.s32.totalorder %s458, 9
      %s462 = scalar_select %p461, %s458, 9
      %s463 = smul.addr %s460, 10
      %s464 = sadd.s32 %s462, %s463
      %s465 = smul.addr %s464, 8
      %s466 = scalar_lea.vmem %s13, %s465
      %s467 = sadd.s32 %s29, 2
      %s468 = smul.u32 2, %s467
      %s470 = smul.u32 %s29, 2
      %s471 = sadd.s32 %s470, 1
      %s472 = smul.u32 %s471, 8
      %s473 = scalar_lea.vmem %s456, %s472
      %v474 = vld [vmem:[%s473] sm:$0xff]
      %v475 = vld [vmem:[%s473 + $0x8] sm:$0xff]
      %v476 = vld [vmem:[%s473 + $0x10] sm:$0xff]
      %v477 = vld [vmem:[%s473 + $0x18] sm:$0xff]
      %v478 = vld [vmem:[%s473 + $0x20] sm:$0xff]
      %v479 = vld [vmem:[%s473 + $0x28] sm:$0xff]
      %v480 = vld [vmem:[%s473 + $0x30] sm:$0xff]
      %v481 = vld [vmem:[%s473 + $0x38] sm:$0xff]
      %v482 = vld [vmem:[%s2] sm:$0xff]
      %v483 = vld [vmem:[%s2 + $0x8] sm:$0xff]
      %v484 = vld [vmem:[%s2 + $0x10] sm:$0xff]
      %v485 = vld [vmem:[%s2 + $0x18] sm:$0xff]
      %v486 = vld [vmem:[%s2 + $0x20] sm:$0xff]
      %v487 = vld [vmem:[%s2 + $0x28] sm:$0xff]
      %v488 = vld [vmem:[%s2 + $0x30] sm:$0x1]
      %v489 = vrot.slane %v474, 5
      %v490 = vrot.slane %v475, 5
      %v491 = vrot.slane %v476, 5
      %v492 = vrot.slane %v477, 5
      %v493 = vrot.slane %v478, 5
      %v494 = vrot.slane %v479, 5
      %v495 = vrot.slane %v480, 5
      %v496 = vrot.slane %v481, 5
      %v497 = vlaneseq
      %v498 = vshrl.u32 %v497, 7
      %vm499 = vcmp.lt.s32.totalorder %v498, 3
      %v500 = vsel %vm499, %v495, %v496
      %v501 = vsel %vm499, %v494, %v495
      %v502 = vsel %vm499, %v493, %v494
      %v503 = vsel %vm499, %v492, %v493
      %v504 = vsel %vm499, %v491, %v492
      %v505 = vsel %vm499, %v490, %v491
      %v506 = vsel %vm499, %v489, %v490
      %v507 = vsel %vm499, %v496, %v489
      %v508 = vperm.slane %v482, 0
      %v509 = vmul.f32 %v507, %v508
      %v510 = vmul.f32 %v506, %v508
      %v511 = vperm.slane %v482, 7
      %v512 = vmul.f32 %v506, %v511
      %v513 = vmul.f32 %v505, %v511
      %v514 = vadd.f32 %v509, %v512
      %v515 = vadd.f32 %v510, %v513
      %v516 = vperm.slane %v483, 6
      %v517 = vmul.f32 %v505, %v516
      %v518 = vmul.f32 %v504, %v516
      %v519 = vadd.f32 %v514, %v517
      %v520 = vadd.f32 %v515, %v518
      %v521 = vperm.slane %v484, 5
      %v522 = vmul.f32 %v504, %v521
      %v523 = vmul.f32 %v503, %v521
      %v524 = vadd.f32 %v519, %v522
      %v525 = vadd.f32 %v520, %v523
      %v526 = vperm.slane %v485, 4
      %v527 = vmul.f32 %v503, %v526
      %v528 = vmul.f32 %v502, %v526
      %v529 = vadd.f32 %v524, %v527
      %v530 = vadd.f32 %v525, %v528
      %v531 = vperm.slane %v486, 3
      %v532 = vmul.f32 %v502, %v531
      %v533 = vmul.f32 %v501, %v531
      %v534 = vadd.f32 %v529, %v532
      %v535 = vadd.f32 %v530, %v533
      %v536 = vperm.slane %v487, 2
      %v537 = vmul.f32 %v501, %v536
      %v538 = vmul.f32 %v500, %v536
      %v539 = vadd.f32 %v534, %v537
      %v540 = vadd.f32 %v535, %v538
      %v541 = vrot.slane %v474, 6
      %v542 = vrot.slane %v475, 6
      %v543 = vrot.slane %v476, 6
      %v544 = vrot.slane %v477, 6
      %v545 = vrot.slane %v478, 6
      %v546 = vrot.slane %v479, 6
      %v547 = vrot.slane %v480, 6
      %v548 = vrot.slane %v481, 6
      %vm549 = vcmp.lt.s32.totalorder %v498, 2
      %v550 = vsel %vm549, %v547, %v548
      %v551 = vsel %vm549, %v546, %v547
      %v552 = vsel %vm549, %v545, %v546
      %v553 = vsel %vm549, %v544, %v545
      %v554 = vsel %vm549, %v543, %v544
      %v555 = vsel %vm549, %v542, %v543
      %v556 = vsel %vm549, %v541, %v542
      %v557 = vsel %vm549, %v548, %v541
      %v558 = vperm.slane %v482, 1
      %v559 = vmul.f32 %v557, %v558
      %v560 = vmul.f32 %v556, %v558
      %v561 = vperm.slane %v483, 0
      %v562 = vmul.f32 %v556, %v561
      %v563 = vmul.f32 %v555, %v561
      %v564 = vadd.f32 %v559, %v562
      %v565 = vadd.f32 %v560, %v563
      %v566 = vperm.slane %v483, 7
      %v567 = vmul.f32 %v555, %v566
      %v568 = vmul.f32 %v554, %v566
      %v569 = vadd.f32 %v564, %v567
      %v570 = vadd.f32 %v565, %v568
      %v571 = vperm.slane %v484, 6
      %v572 = vmul.f32 %v554, %v571
      %v573 = vmul.f32 %v553, %v571
      %v574 = vadd.f32 %v569, %v572
      %v575 = vadd.f32 %v570, %v573
      %v576 = vperm.slane %v485, 5
      %v577 = vmul.f32 %v553, %v576
      %v578 = vmul.f32 %v552, %v576
      %v579 = vadd.f32 %v574, %v577
      %v580 = vadd.f32 %v575, %v578
      %v581 = vperm.slane %v486, 4
      %v582 = vmul.f32 %v552, %v581
      %v583 = vmul.f32 %v551, %v581
      %v584 = vadd.f32 %v579, %v582
      %v585 = vadd.f32 %v580, %v583
      %v586 = vperm.slane %v487, 3
      %v587 = vmul.f32 %v551, %v586
      %v588 = vmul.f32 %v550, %v586
      %v589 = vadd.f32 %v584, %v587
      %v590 = vadd.f32 %v585, %v588
      %v591 = vrot.slane %v474, 7
      %v592 = vrot.slane %v475, 7
      %v593 = vrot.slane %v476, 7
      %v594 = vrot.slane %v477, 7
      %v595 = vrot.slane %v478, 7
      %v596 = vrot.slane %v479, 7
      %v597 = vrot.slane %v480, 7
      %v598 = vrot.slane %v481, 7
      %vm599 = vcmp.lt.s32.totalorder %v498, 1
      %v600 = vsel %vm599, %v597, %v598
      %v601 = vsel %vm599, %v596, %v597
      %v602 = vsel %vm599, %v595, %v596
      %v603 = vsel %vm599, %v594, %v595
      %v604 = vsel %vm599, %v593, %v594
      %v605 = vsel %vm599, %v592, %v593
      %v606 = vsel %vm599, %v591, %v592
      %v607 = vsel %vm599, %v598, %v591
      %v608 = vperm.slane %v482, 2
      %v609 = vmul.f32 %v607, %v608
      %v610 = vmul.f32 %v606, %v608
      %v611 = vperm.slane %v483, 1
      %v612 = vmul.f32 %v606, %v611
      %v613 = vmul.f32 %v605, %v611
      %v614 = vadd.f32 %v609, %v612
      %v615 = vadd.f32 %v610, %v613
      %v616 = vperm.slane %v484, 0
      %v617 = vmul.f32 %v605, %v616
      %v618 = vmul.f32 %v604, %v616
      %v619 = vadd.f32 %v614, %v617
      %v620 = vadd.f32 %v615, %v618
      %v621 = vperm.slane %v484, 7
      %v622 = vmul.f32 %v604, %v621
      %v623 = vmul.f32 %v603, %v621
      %v624 = vadd.f32 %v619, %v622
      %v625 = vadd.f32 %v620, %v623
      %v626 = vperm.slane %v485, 6
      %v627 = vmul.f32 %v603, %v626
      %v628 = vmul.f32 %v602, %v626
      %v629 = vadd.f32 %v624, %v627
      %v630 = vadd.f32 %v625, %v628
      %v631 = vperm.slane %v486, 5
      %v632 = vmul.f32 %v602, %v631
      %v633 = vmul.f32 %v601, %v631
      %v634 = vadd.f32 %v629, %v632
      %v635 = vadd.f32 %v630, %v633
      %v636 = vperm.slane %v487, 4
      %v637 = vmul.f32 %v601, %v636
      %v638 = vmul.f32 %v600, %v636
      %v639 = vadd.f32 %v634, %v637
      %v640 = vadd.f32 %v635, %v638
      %v641 = vperm.slane %v482, 3
      %v642 = vmul.f32 %v474, %v641
      %v643 = vmul.f32 %v475, %v641
      %v644 = vperm.slane %v483, 2
      %v645 = vmul.f32 %v475, %v644
      %v646 = vmul.f32 %v476, %v644
      %v647 = vadd.f32 %v642, %v645
      %v648 = vadd.f32 %v643, %v646
      %v649 = vperm.slane %v484, 1
      %v650 = vmul.f32 %v476, %v649
      %v651 = vmul.f32 %v477, %v649
      %v652 = vadd.f32 %v647, %v650
      %v653 = vadd.f32 %v648, %v651
      %v654 = vperm.slane %v485, 0
      %v655 = vmul.f32 %v477, %v654
      %v656 = vmul.f32 %v478, %v654
      %v657 = vadd.f32 %v652, %v655
      %v658 = vadd.f32 %v653, %v656
      %v659 = vperm.slane %v485, 7
      %v660 = vmul.f32 %v478, %v659
      %v661 = vmul.f32 %v479, %v659
      %v662 = vadd.f32 %v657, %v660
      %v663 = vadd.f32 %v658, %v661
      %v664 = vperm.slane %v486, 6
      %v665 = vmul.f32 %v479, %v664
      %v666 = vmul.f32 %v480, %v664
      %v667 = vadd.f32 %v662, %v665
      %v668 = vadd.f32 %v663, %v666
      %v669 = vperm.slane %v487, 5
      %v670 = vmul.f32 %v480, %v669
      %v671 = vmul.f32 %v481, %v669
      %v672 = vadd.f32 %v667, %v670
      %v673 = vadd.f32 %v668, %v671
      %v674 = vrot.slane %v474, 1
      %v675 = vrot.slane %v475, 1
      %v676 = vrot.slane %v476, 1
      %v677 = vrot.slane %v477, 1
      %v678 = vrot.slane %v478, 1
      %v679 = vrot.slane %v479, 1
      %v680 = vrot.slane %v480, 1
      %v681 = vrot.slane %v481, 1
      %vm682 = vcmp.lt.s32.totalorder %v498, 7
      %v683 = vsel %vm682, %v680, %v681
      %v684 = vsel %vm682, %v679, %v680
      %v685 = vsel %vm682, %v678, %v679
      %v686 = vsel %vm682, %v677, %v678
      %v687 = vsel %vm682, %v676, %v677
      %v688 = vsel %vm682, %v675, %v676
      %v689 = vsel %vm682, %v674, %v675
      %v690 = vsel %vm682, %v681, %v674
      %v691 = vperm.slane %v482, 4
      %v692 = vmul.f32 %v689, %v691
      %v693 = vmul.f32 %v688, %v691
      %v694 = vperm.slane %v483, 3
      %v695 = vmul.f32 %v688, %v694
      %v696 = vmul.f32 %v687, %v694
      %v697 = vadd.f32 %v692, %v695
      %v698 = vadd.f32 %v693, %v696
      %v699 = vperm.slane %v484, 2
      %v700 = vmul.f32 %v687, %v699
      %v701 = vmul.f32 %v686, %v699
      %v702 = vadd.f32 %v697, %v700
      %v703 = vadd.f32 %v698, %v701
      %v704 = vperm.slane %v485, 1
      %v705 = vmul.f32 %v686, %v704
      %v706 = vmul.f32 %v685, %v704
      %v707 = vadd.f32 %v702, %v705
      %v708 = vadd.f32 %v703, %v706
      %v709 = vperm.slane %v486, 0
      %v710 = vmul.f32 %v685, %v709
      %v711 = vmul.f32 %v684, %v709
      %v712 = vadd.f32 %v707, %v710
      %v713 = vadd.f32 %v708, %v711
      %v714 = vperm.slane %v486, 7
      %v715 = vmul.f32 %v684, %v714
      %v716 = vmul.f32 %v683, %v714
      %v717 = vadd.f32 %v712, %v715
      %v718 = vadd.f32 %v713, %v716
      %v719 = vperm.slane %v487, 6
      %v720 = vmul.f32 %v683, %v719
      %v721 = vmul.f32 %v690, %v719
      %v722 = vadd.f32 %v717, %v720
      %v723 = vadd.f32 %v718, %v721
      %v724 = vrot.slane %v474, 2
      %v725 = vrot.slane %v475, 2
      %v726 = vrot.slane %v476, 2
      %v727 = vrot.slane %v477, 2
      %v728 = vrot.slane %v478, 2
      %v729 = vrot.slane %v479, 2
      %v730 = vrot.slane %v480, 2
      %v731 = vrot.slane %v481, 2
      %vm732 = vcmp.lt.s32.totalorder %v498, 6
      %v733 = vsel %vm732, %v730, %v731
      %v734 = vsel %vm732, %v729, %v730
      %v735 = vsel %vm732, %v728, %v729
      %v736 = vsel %vm732, %v727, %v728
      %v737 = vsel %vm732, %v726, %v727
      %v738 = vsel %vm732, %v725, %v726
      %v739 = vsel %vm732, %v724, %v725
      %v740 = vsel %vm732, %v731, %v724
      %v741 = vperm.slane %v482, 5
      %v742 = vmul.f32 %v739, %v741
      %v743 = vmul.f32 %v738, %v741
      %v744 = vperm.slane %v483, 4
      %v745 = vmul.f32 %v738, %v744
      %v746 = vmul.f32 %v737, %v744
      %v747 = vadd.f32 %v742, %v745
      %v748 = vadd.f32 %v743, %v746
      %v749 = vperm.slane %v484, 3
      %v750 = vmul.f32 %v737, %v749
      %v751 = vmul.f32 %v736, %v749
      %v752 = vadd.f32 %v747, %v750
      %v753 = vadd.f32 %v748, %v751
      %v754 = vperm.slane %v485, 2
      %v755 = vmul.f32 %v736, %v754
      %v756 = vmul.f32 %v735, %v754
      %v757 = vadd.f32 %v752, %v755
      %v758 = vadd.f32 %v753, %v756
      %v759 = vperm.slane %v486, 1
      %v760 = vmul.f32 %v735, %v759
      %v761 = vmul.f32 %v734, %v759
      %v762 = vadd.f32 %v757, %v760
      %v763 = vadd.f32 %v758, %v761
      %v764 = vperm.slane %v487, 0
      %v765 = vmul.f32 %v734, %v764
      %v766 = vmul.f32 %v733, %v764
      %v767 = vadd.f32 %v762, %v765
      %v768 = vadd.f32 %v763, %v766
      %v769 = vperm.slane %v487, 7
      %v770 = vmul.f32 %v733, %v769
      %v771 = vmul.f32 %v740, %v769
      %v772 = vadd.f32 %v767, %v770
      %v773 = vadd.f32 %v768, %v771
      %v774 = vrot.slane %v474, 3
      %v775 = vrot.slane %v475, 3
      %v776 = vrot.slane %v476, 3
      %v777 = vrot.slane %v477, 3
      %v778 = vrot.slane %v478, 3
      %v779 = vrot.slane %v479, 3
      %v780 = vrot.slane %v480, 3
      %v781 = vrot.slane %v481, 3
      %vm782 = vcmp.lt.s32.totalorder %v498, 5
      %v783 = vsel %vm782, %v780, %v781
      %v784 = vsel %vm782, %v779, %v780
      %v785 = vsel %vm782, %v778, %v779
      %v786 = vsel %vm782, %v777, %v778
      %v787 = vsel %vm782, %v776, %v777
      %v788 = vsel %vm782, %v775, %v776
      %v789 = vsel %vm782, %v774, %v775
      %v790 = vsel %vm782, %v781, %v774
      %v791 = vperm.slane %v482, 6
      %v792 = vmul.f32 %v789, %v791
      %v793 = vmul.f32 %v788, %v791
      %v794 = vperm.slane %v483, 5
      %v795 = vmul.f32 %v788, %v794
      %v796 = vmul.f32 %v787, %v794
      %v797 = vadd.f32 %v792, %v795
      %v798 = vadd.f32 %v793, %v796
      %v799 = vperm.slane %v484, 4
      %v800 = vmul.f32 %v787, %v799
      %v801 = vmul.f32 %v786, %v799
      %v802 = vadd.f32 %v797, %v800
      %v803 = vadd.f32 %v798, %v801
      %v804 = vperm.slane %v485, 3
      %v805 = vmul.f32 %v786, %v804
      %v806 = vmul.f32 %v785, %v804
      %v807 = vadd.f32 %v802, %v805
      %v808 = vadd.f32 %v803, %v806
      %v809 = vperm.slane %v486, 2
      %v810 = vmul.f32 %v785, %v809
      %v811 = vmul.f32 %v784, %v809
      %v812 = vadd.f32 %v807, %v810
      %v813 = vadd.f32 %v808, %v811
      %v814 = vperm.slane %v487, 1
      %v815 = vmul.f32 %v784, %v814
      %v816 = vmul.f32 %v783, %v814
      %v817 = vadd.f32 %v812, %v815
      %v818 = vadd.f32 %v813, %v816
      %v819 = vperm.slane %v488, 0
      %v820 = vmul.f32 %v783, %v819
      %v821 = vmul.f32 %v790, %v819
      %v822 = vadd.f32 %v817, %v820
      %v823 = vadd.f32 %v818, %v821
      %v824 = vadd.f32 %v539, %v589
      %v825 = vadd.f32 %v540, %v590
      %v826 = vadd.f32 %v639, %v672
      %v827 = vadd.f32 %v640, %v673
      %v828 = vadd.f32 %v722, %v772
      %v829 = vadd.f32 %v723, %v773
      %v830 = vadd.f32 %v824, %v826
      %v831 = vadd.f32 %v825, %v827
      %v832 = vadd.f32 %v828, %v822
      %v833 = vadd.f32 %v829, %v823
      %v834 = vadd.f32 %v830, %v832
      %v835 = vadd.f32 %v831, %v833
      %v836 = vld [vmem:[%s3] sm:$0x1]
      %v838 = vperm.slane %v836, 0
      %v840 = vadd.f32 %v834, %v838
      %v841 = vadd.f32 %v835, %v838
      %v842 = vld [vmem:[%s4] sm:$0x1]
      %v843 = vld [vmem:[%s5] sm:$0x1]
      %vm844 = vcmask 130048
      %v845 = vsel %vm844, %v840, 0.0
      %846 = vadd.xlane.f32.xlu0 %v845
      %v847 = vpop.xlane.xlu0 %846
      %v848 = vsel %vm844, %v841, 0.0
      %849 = vadd.xlane.f32.xlu0 %v848
      %v850 = vpop.xlane.xlu0 %849
      %v851 = vrcp.pop 16.0
      %v852 = vmul.f32 16.0, %v851
      %v853 = vsub.f32 1.0, %v852
      %v854 = vmul.f32 %v851, %v853
      %v855 = vadd.f32 %v851, %v854
      %vm856 = vweird.f32 %v851
      %v857 = vsel %vm856, %v851, %v855
      %v858 = vmul.f32 %v847, %v857
      %v859 = vmul.f32 %v850, %v857
      %v860 = vmul.f32 %v840, %v840
      %v861 = vmul.f32 %v841, %v841
      %v862 = vsel %vm844, %v860, 0.0
      %863 = vadd.xlane.f32.xlu0 %v862
      %v864 = vpop.xlane.xlu0 %863
      %v865 = vsel %vm844, %v861, 0.0
      %866 = vadd.xlane.f32.xlu0 %v865
      %v867 = vpop.xlane.xlu0 %866
      %v868 = vmul.f32 %v864, %v857
      %v869 = vmul.f32 %v867, %v857
      %v870 = vmul.f32 %v858, %v858
      %v871 = vmul.f32 %v859, %v859
      %v872 = vsub.f32 %v868, %v870
      %v873 = vsub.f32 %v869, %v871
      %v874 = vmax.f32 %v872, 0.0
      %v875 = vmax.f32 %v873, 0.0
      %v876 = vsub.f32 %v840, %v858
      %v877 = vsub.f32 %v841, %v859
      %v878 = vadd.f32 %v874, 1e-06
      %v879 = vadd.f32 %v875, 1e-06
      %v880 = vrsqrt.pop %v878
      %v881 = vmul.f32 %v880, %v878
      %v882 = vmul.f32 %v881, %v880
      %v883 = vmul.f32 0.5, %v882
      %v884 = vsub.f32 1.5, %v883
      %v885 = vmul.f32 %v880, %v884
      %vm886 = vweird.f32 %v878
      %vm887 = vweird.f32 %v880
      %vm888 = vmor %vm886, %vm887
      %v889 = vsel %vm888, %v880, %v885
      %v890 = vrsqrt.pop %v879
      %v891 = vmul.f32 %v890, %v879
      %v892 = vmul.f32 %v891, %v890
      %v893 = vmul.f32 0.5, %v892
      %v894 = vsub.f32 1.5, %v893
      %v895 = vmul.f32 %v890, %v894
      %vm896 = vweird.f32 %v879
      %vm897 = vweird.f32 %v890
      %vm898 = vmor %vm896, %vm897
      %v899 = vsel %vm898, %v890, %v895
      %v900 = vmul.f32 %v876, %v889
      %v901 = vmul.f32 %v877, %v899
      %v903 = vperm.slane %v842, 0
      %v905 = vmul.f32 %v900, %v903
      %v906 = vmul.f32 %v901, %v903
      %v908 = vperm.slane %v843, 0
      %v910 = vadd.f32 %v905, %v908
      %v911 = vadd.f32 %v906, %v908
      %v912 = vpack.c.bf16 %v911, %v910
      %v913 = vld [vmem:[%s6] sm:$0xf]
      %v914 = vld [vmem:[%s6 + $0x4] sm:$0xf]
      %v915 = vld [vmem:[%s7] sm:$0x1]
      %v917 = vperm.slane %v915, 0
      %v921 = vunpack.c.l.b16 %v913
      %v922 = vunpack.c.l.b16 %v914
      %v923 = vpack.c.b16 %v922, %v921
      %v926 = vsel %vm844, %v912, 0
      %928 = vmatpush.bf16.msra.mxu0 0
      %929 = vmatpush.bf16.msra.mxu0 0
      %930 = vmatpush.bf16.msra.mxu0 0
      %931 = vmatpush.bf16.msra.mxu0 0
      %932 = vmatpush.bf16.msra.mxu0 0
      %933 = vmatpush.bf16.msra.mxu0 0
      %934 = vmatpush.bf16.msra.mxu0 0
      %935 = vmatpush.bf16.msra.mxu0 %v923
      %936 = vmatmul.bf16.gmra.mxu0 %v926
      %v937 = vpop.f32.mrf.mxu0
      %v938 = vadd.f32 %v917, %v937
      %v939 = vpop.f32.mrf.mxu0
      %v940 = vadd.f32 %v917, %v939
      %941 = vdwg.mxu0
      %v942 = vmul.f32 %v938, %v938
      %v943 = vmul.f32 %v940, %v940
      %v944 = vmul.f32 %v938, %v942
      %v945 = vmul.f32 %v940, %v943
      %v946 = vmul.f32 %v944, 0.044715
      %v947 = vmul.f32 %v945, 0.044715
      %v948 = vadd.f32 %v938, %v946
      %v949 = vadd.f32 %v940, %v947
      %v950 = vmul.f32 %v948, 0.7978846
      %v951 = vmul.f32 %v949, 0.7978846
      %v952 = vtanh.pop %v950
      %v953 = vtanh.pop %v951
      %v954 = vadd.f32 %v952, 1.0
      %v955 = vadd.f32 %v953, 1.0
      %v956 = vmul.f32 %v954, 0.5
      %v957 = vmul.f32 %v955, 0.5
      %v958 = vmul.f32 %v938, %v956
      %v959 = vmul.f32 %v940, %v957
      %v960 = vpack.c.bf16 %v959, %v958
      %v961 = vld [vmem:[%s8] sm:$0xf]
      %v962 = vld [vmem:[%s8 + $0x4] sm:$0xf]
      %v963 = vld [vmem:[%s8 + $0x8] sm:$0xf]
      %v964 = vld [vmem:[%s8 + $0xc] sm:$0xf]
      %v965 = vld [vmem:[%s8 + $0x10] sm:$0xf]
      %v966 = vld [vmem:[%s8 + $0x14] sm:$0xf]
      %v967 = vld [vmem:[%s8 + $0x18] sm:$0xf]
      %v968 = vld [vmem:[%s8 + $0x1c] sm:$0xf]
      %v969 = vld [vmem:[%s9] sm:$0x1]
      %v971 = vperm.slane %v969, 0
      %v981 = vunpack.c.l.b16 %v961
      %v982 = vunpack.c.l.b16 %v962
      %v983 = vunpack.c.l.b16 %v963
      %v984 = vunpack.c.l.b16 %v964
      %v985 = vunpack.c.l.b16 %v965
      %v986 = vunpack.c.l.b16 %v966
      %v987 = vunpack.c.l.b16 %v967
      %v988 = vunpack.c.l.b16 %v968
      %v989 = vpack.c.b16 %v982, %v981
      %v990 = vpack.c.b16 %v984, %v983
      %v991 = vpack.c.b16 %v986, %v985
      %v992 = vpack.c.b16 %v988, %v987
      %vm997 = vcmask 523264
      %v999 = vsel %vm997, %v960, 0
      %1001 = vmatpush.bf16.msra.mxu0 0
      %1002 = vmatpush.bf16.msra.mxu0 0
      %1003 = vmatpush.bf16.msra.mxu0 0
      %1004 = vmatpush.bf16.msra.mxu0 0
      %1005 = vmatpush.bf16.msra.mxu0 %v992
      %1006 = vmatpush.bf16.msra.mxu0 %v991
      %1007 = vmatpush.bf16.msra.mxu0 %v990
      %1008 = vmatpush.bf16.msra.mxu0 %v989
      %1009 = vmatmul.bf16.gmra.mxu0 %v999
      %v1010 = vpop.f32.mrf.mxu0
      %v1011 = vadd.f32 %v971, %v1010
      %v1012 = vpop.f32.mrf.mxu0
      %v1013 = vadd.f32 %v971, %v1012
      %1014 = vdwg.mxu0
      %v1015 = vld [vmem:[%s10] sm:$0x1]
      %v1017 = vperm.slane %v1015, 0
      %v1019 = vmul.f32 %v1011, %v1017
      %v1020 = vmul.f32 %v1013, %v1017
      %v1021 = vadd.f32 %v1019, %v477
      %v1022 = vadd.f32 %v1020, %v478
      %v1023 = vld [vmem:[%s1] sm:$0xff]
      %v1024 = vld [vmem:[%s1 + $0x8] sm:$0xff]
      %1026 = vset.pattern.permute.xlu0 0
      %1027 = vperm.xlu0 %1026, %v1023
      %v1028 = vpop.permute.xlu0 %1027
      %1031 = vset.pattern.permute.xlu0 0
      %1032 = vperm.xlu0 %1031, %v1024
      %v1033 = vpop.permute.xlu0 %1032
      %v1035 = vmul.f32 %v1021, %v1028
      %v1036 = vmul.f32 %v1022, %v1033
      %1037 = vst.msk [vmem:[%s466] sm:$0xff] %vm844, %v1035
      %1038 = vst.msk [vmem:[%s466 + $0x8] sm:$0xff] %vm844, %v1036
      %s1039 = sadd.s32 %s29, 2
      %s1040 = smul.u32 2, %s1039
      %p1041 = scmp.lt.s32.totalorder %s28, 1
      %s1042 = scalar_select %p1041, %s28, 1
      %p1043 = scmp.lt.s32.totalorder %s1040, 9
      %s1044 = scalar_select %p1043, %s1040, 9
      %s1045 = smul.addr %s1042, 10
      %s1046 = sadd.s32 %s1044, %s1045
      %s1047 = smul.addr %s1046, 8
      %s1048 = scalar_lea.vmem %s13, %s1047
      // Predicated region
      $region73: #{convnext_forward.8} parent=71 // pred_check
        %p1049 = pneg %p336
      $region74: #{convnext_forward.8} parent=71 // pred_check_branch
        %1051 = sbr.rel (%p1049) target = $region76
      $region75: #{convnext_forward.8} parent=71 // pred_region
        %s1052 = sadd.s32 %s29, 2
        %s1053 = smul.u32 2, %s1052
      $region76: #{convnext_forward.8} parent=71 // pred_fallthru
        _
    $region72: #{convnext_forward.8} parent=5 // pred_fallthru
      _
    %p1054 = scmp.le.s32.totalorder 2, %s19
    // Predicated region
    $region77: #{convnext_forward.8} parent=5 // pred_check
      %p1055 = pneg %p1054
    $region78: #{convnext_forward.8} parent=5 // pred_check_branch
      %1057 = sbr.rel (%p1055) target = $region80
    $region79: #{convnext_forward.8} parent=5 // pred_region
      %s1058 = ssub.s32 %s19, 2
      // Predicated region
      $region81: #{convnext_forward.8} parent=79 // pred_check
        %p1059 = pneg %p342
      $region82: #{convnext_forward.8} parent=79 // pred_check_branch
        %1061 = sbr.rel (%p1059) target = $region84
      $region83: #{convnext_forward.8} parent=79 // pred_region
        %s1062 = sadd.s32 %s31, 2
        %s1063 = smul.u32 2, %s1062
        %p1064 = scmp.lt.s32.totalorder %s30, 1
        %s1065 = scalar_select %p1064, %s30, 1
        %p1066 = scmp.lt.s32.totalorder %s1063, 9
        %s1067 = scalar_select %p1066, %s1063, 9
        %s1068 = smul.addr %s1065, 10
        %s1069 = sadd.s32 %s1067, %s1068
        %s1070 = smul.addr %s1069, 8
        %s1071 = scalar_lea.vmem %s13, %s1070
      $region84: #{convnext_forward.8} parent=79 // pred_fallthru
        _
    $region80: #{convnext_forward.8} parent=5 // pred_fallthru
      _
  $region6: #{convnext_forward.8} parent=0 // loop_footer
    %s23 = sadd.s32 1, %s19
  $region7: #{convnext_forward.8} parent=0 // loop_footer_branch
    %18 = sbr.rel target = $region3
  $region8: #{convnext_forward.8} parent=0 // loop_exit
    _

// kernel: convnext_forward.6
$region0: #{convnext_forward.6}
  #allocation0 [shape = 'u32[]', space=smem, size = 0x4, offset = 0x4, fixed_abs, tag = 'smem constant byte address 0x4 - core index']
  #allocation1 [shape = 'u32[72,128]{1,0:T(1,128)}', space=vmem, size = 0x9000, scoped, tag = 'internal scratch']
  %s0 = inlined_call_operand.vmem [shape: f32[2,192,8], index: 0, kind: input, shape index: {}, may-alias: {0,13}]
  %s1 = inlined_call_operand.vmem [shape: f32[64,1], index: 1, kind: input, shape index: {}]
  %s2 = inlined_call_operand.vmem [shape: f32[49,8], index: 2, kind: input, shape index: {}]
  %s3 = inlined_call_operand.vmem [shape: f32[1,8], index: 3, kind: input, shape index: {}]
  %s4 = inlined_call_operand.vmem [shape: f32[1,8], index: 4, kind: input, shape index: {}]
  %s5 = inlined_call_operand.vmem [shape: f32[1,8], index: 5, kind: input, shape index: {}]
  %s6 = inlined_call_operand.vmem [shape: bf16[8,32], index: 6, kind: input, shape index: {}]
  %s7 = inlined_call_operand.vmem [shape: f32[1,32], index: 7, kind: input, shape index: {}]
  %s8 = inlined_call_operand.vmem [shape: bf16[32,8], index: 8, kind: input, shape index: {}]
  %s9 = inlined_call_operand.vmem [shape: f32[1,8], index: 9, kind: input, shape index: {}]
  %s10 = inlined_call_operand.vmem [shape: f32[1,8], index: 10, kind: input, shape index: {}]
  %s11 = inlined_call_operand.vmem [shape: f32[1,8], index: 11, kind: input, shape index: {}]
  %s12 = inlined_call_operand.vmem [shape: f32[1,8], index: 12, kind: input, shape index: {}]
  %s13 = inlined_call_operand.vmem [shape: f32[2,192,8], index: 13, kind: output, shape index: {}, may-alias: {0,13}]
  %s14 = sld [smem:[#allocation0]]
  $region85: #{convnext_forward.6} parent=0
    _
  %s16 = ssub.s32 1, %s14
  %s17 = scalar_select 0, %s16, %s14
  loop: start=0, step=1, limit=4
  $region2: #{convnext_forward.6} parent=0 // loop_pre_header
    _
  $region3: #{convnext_forward.6} parent=0 // loop_header
    %s19 = sphi 0, %s23
    %p20 = scmp.ge.s32.totalorder %s19, 4
    %s26 = sphi 0, %s38
    %s27 = sphi 0, %s34
    %s28 = sphi 0, %s26
    %s29 = sphi 0, %s27
    %s30 = sphi 0, %s28
    %s31 = sphi 0, %s29
    %s41 = sphi 0, %s43
    %s44 = sphi 0, %s41
    %s45 = sphi 0, %s44
    %s61 = sphi 0, %s45
    %s65 = sphi 0, %s65
    %s67 = sphi 0, %s65
    %s68 = sphi 0, %s67
    %s82 = sphi 0, %s68
    %s86 = sphi 0, %s86
    %s88 = sphi 0, %s86
    %s89 = sphi 0, %s88
    %s103 = sphi 0, %s89
    %s107 = sphi 0, %s107
    %s109 = sphi 0, %s107
    %s110 = sphi 0, %s109
    %s124 = sphi 0, %s110
    %s128 = sphi 0, %s128
    %s130 = sphi 0, %s128
    %s131 = sphi 0, %s130
    %s145 = sphi 0, %s131
    %s149 = sphi 0, %s149
    %s151 = sphi 0, %s149
    %s152 = sphi 0, %s151
    %s166 = sphi 0, %s152
    %s170 = sphi 0, %s170
    %s172 = sphi 0, %s170
    %s173 = sphi 0, %s172
    %s187 = sphi 0, %s173
    %s191 = sphi 0, %s191
    %s193 = sphi 0, %s191
    %s194 = sphi 0, %s193
    %s208 = sphi 0, %s194
    %s212 = sphi 0, %s212
    %s214 = sphi 0, %s212
    %s215 = sphi 0, %s214
    %s229 = sphi 0, %s215
    %s233 = sphi 0, %s233
    %s235 = sphi 0, %s233
    %s236 = sphi 0, %s235
    %s250 = sphi 0, %s236
    %s254 = sphi 0, %s254
    %s256 = sphi 0, %s254
    %s257 = sphi 0, %s256
    %s271 = sphi 0, %s257
    %s275 = sphi 0, %s275
    %s277 = sphi 0, %s275
    %s278 = sphi 0, %s277
    %s292 = sphi 0, %s278
    %s296 = sphi 0, %s296
    %s298 = sphi 0, %s296
    %s299 = sphi 0, %s298
    %s313 = sphi 0, %s299
    %s323 = sphi 0, %s325
    %s326 = sphi 0, %s323
    %s327 = sphi 0, %s326
    %s343 = sphi 0, %s327
  $region4: #{convnext_forward.6} parent=0 // loop_header_branch
    %22 = sbr.rel (%p20) target = $region8
  $region5: #{convnext_forward.6} parent=0 // loop_body
    %s24 = ssub.s32 %s19, 1
    %s25 = ssub.s32 %s19, 2
    %s32 = sadd.s32 1, %s27
    %p33 = scmp.ge.s32.totalorder %s32, 1
    %s34 = scalar_select %p33, 0, %s32
    %s35 = sadd.s32 1, %s26
    %s36 = scalar_select %p33, %s35, %s26
    %p37 = scmp.ge.s32.totalorder %s36, 2
    %s38 = scalar_select %p37, 0, %s36
    %s39 = ssub.s32 %s26, %s38
    %p40 = scmp.eq.s32.totalorder %s39, 0
    %s42 = sadd.s32 %s41, 1
    %s43 = scalar_select %p40, %s41, %s42
    %p46 = pneg %p40
    %p47 = scmp.eq.s32.totalorder %s19, 1
    %p48 = por %p46, %p47
    %p49 = scmp.ne.s32.totalorder %s41, %s44
    %p50 = scmp.eq.s32.totalorder %s19, 0
    %p51 = por %p49, %p50
    %p52 = scmp.ne.s32.totalorder %s41, %s44
    %p53 = scmp.eq.s32.totalorder %s24, 1
    %p54 = por %p52, %p53
    %p55 = scmp.ne.s32.totalorder %s44, %s45
    %p56 = scmp.eq.s32.totalorder %s24, 0
    %p57 = por %p55, %p56
    %p58 = scmp.ne.s32.totalorder %s44, %s45
    %p59 = scmp.eq.s32.totalorder %s25, 1
    %p60 = por %p58, %p59
    %p62 = scmp.ne.s32.totalorder %s45, %s61
    %p63 = scmp.eq.s32.totalorder %s25, 0
    %p64 = por %p62, %p63
    %s66 = sadd.s32 %s65, 1
    %p69 = scmp.eq.s32.totalorder %s19, 1
    %p70 = scmp.ne.s32.totalorder %s65, %s67
    %p71 = scmp.eq.s32.totalorder %s19, 0
    %p72 = por %p70, %p71
    %p73 = scmp.ne.s32.totalorder %s65, %s67
    %p74 = scmp.eq.s32.totalorder %s24, 1
    %p75 = por %p73, %p74
    %p76 = scmp.ne.s32.totalorder %s67, %s68
    %p77 = scmp.eq.s32.totalorder %s24, 0
    %p78 = por %p76, %p77
    %p79 = scmp.ne.s32.totalorder %s67, %s68
    %p80 = scmp.eq.s32.totalorder %s25, 1
    %p81 = por %p79, %p80
    %p83 = scmp.ne.s32.totalorder %s68, %s82
    %p84 = scmp.eq.s32.totalorder %s25, 0
    %p85 = por %p83, %p84
    %s87 = sadd.s32 %s86, 1
    %p90 = scmp.eq.s32.totalorder %s19, 1
    %p91 = scmp.ne.s32.totalorder %s86, %s88
    %p92 = scmp.eq.s32.totalorder %s19, 0
    %p93 = por %p91, %p92
    %p94 = scmp.ne.s32.totalorder %s86, %s88
    %p95 = scmp.eq.s32.totalorder %s24, 1
    %p96 = por %p94, %p95
    %p97 = scmp.ne.s32.totalorder %s88, %s89
    %p98 = scmp.eq.s32.totalorder %s24, 0
    %p99 = por %p97, %p98
    %p100 = scmp.ne.s32.totalorder %s88, %s89
    %p101 = scmp.eq.s32.totalorder %s25, 1
    %p102 = por %p100, %p101
    %p104 = scmp.ne.s32.totalorder %s89, %s103
    %p105 = scmp.eq.s32.totalorder %s25, 0
    %p106 = por %p104, %p105
    %s108 = sadd.s32 %s107, 1
    %p111 = scmp.eq.s32.totalorder %s19, 1
    %p112 = scmp.ne.s32.totalorder %s107, %s109
    %p113 = scmp.eq.s32.totalorder %s19, 0
    %p114 = por %p112, %p113
    %p115 = scmp.ne.s32.totalorder %s107, %s109
    %p116 = scmp.eq.s32.totalorder %s24, 1
    %p117 = por %p115, %p116
    %p118 = scmp.ne.s32.totalorder %s109, %s110
    %p119 = scmp.eq.s32.totalorder %s24, 0
    %p120 = por %p118, %p119
    %p121 = scmp.ne.s32.totalorder %s109, %s110
    %p122 = scmp.eq.s32.totalorder %s25, 1
    %p123 = por %p121, %p122
    %p125 = scmp.ne.s32.totalorder %s110, %s124
    %p126 = scmp.eq.s32.totalorder %s25, 0
    %p127 = por %p125, %p126
    %s129 = sadd.s32 %s128, 1
    %p132 = scmp.eq.s32.totalorder %s19, 1
    %p133 = scmp.ne.s32.totalorder %s128, %s130
    %p134 = scmp.eq.s32.totalorder %s19, 0
    %p135 = por %p133, %p134
    %p136 = scmp.ne.s32.totalorder %s128, %s130
    %p137 = scmp.eq.s32.totalorder %s24, 1
    %p138 = por %p136, %p137
    %p139 = scmp.ne.s32.totalorder %s130, %s131
    %p140 = scmp.eq.s32.totalorder %s24, 0
    %p141 = por %p139, %p140
    %p142 = scmp.ne.s32.totalorder %s130, %s131
    %p143 = scmp.eq.s32.totalorder %s25, 1
    %p144 = por %p142, %p143
    %p146 = scmp.ne.s32.totalorder %s131, %s145
    %p147 = scmp.eq.s32.totalorder %s25, 0
    %p148 = por %p146, %p147
    %s150 = sadd.s32 %s149, 1
    %p153 = scmp.eq.s32.totalorder %s19, 1
    %p154 = scmp.ne.s32.totalorder %s149, %s151
    %p155 = scmp.eq.s32.totalorder %s19, 0
    %p156 = por %p154, %p155
    %p157 = scmp.ne.s32.totalorder %s149, %s151
    %p158 = scmp.eq.s32.totalorder %s24, 1
    %p159 = por %p157, %p158
    %p160 = scmp.ne.s32.totalorder %s151, %s152
    %p161 = scmp.eq.s32.totalorder %s24, 0
    %p162 = por %p160, %p161
    %p163 = scmp.ne.s32.totalorder %s151, %s152
    %p164 = scmp.eq.s32.totalorder %s25, 1
    %p165 = por %p163, %p164
    %p167 = scmp.ne.s32.totalorder %s152, %s166
    %p168 = scmp.eq.s32.totalorder %s25, 0
    %p169 = por %p167, %p168
    %s171 = sadd.s32 %s170, 1
    %p174 = scmp.eq.s32.totalorder %s19, 1
    %p175 = scmp.ne.s32.totalorder %s170, %s172
    %p176 = scmp.eq.s32.totalorder %s19, 0
    %p177 = por %p175, %p176
    %p178 = scmp.ne.s32.totalorder %s170, %s172
    %p179 = scmp.eq.s32.totalorder %s24, 1
    %p180 = por %p178, %p179
    %p181 = scmp.ne.s32.totalorder %s172, %s173
    %p182 = scmp.eq.s32.totalorder %s24, 0
    %p183 = por %p181, %p182
    %p184 = scmp.ne.s32.totalorder %s172, %s173
    %p185 = scmp.eq.s32.totalorder %s25, 1
    %p186 = por %p184, %p185
    %p188 = scmp.ne.s32.totalorder %s173, %s187
    %p189 = scmp.eq.s32.totalorder %s25, 0
    %p190 = por %p188, %p189
    %s192 = sadd.s32 %s191, 1
    %p195 = scmp.eq.s32.totalorder %s19, 1
    %p196 = scmp.ne.s32.totalorder %s191, %s193
    %p197 = scmp.eq.s32.totalorder %s19, 0
    %p198 = por %p196, %p197
    %p199 = scmp.ne.s32.totalorder %s191, %s193
    %p200 = scmp.eq.s32.totalorder %s24, 1
    %p201 = por %p199, %p200
    %p202 = scmp.ne.s32.totalorder %s193, %s194
    %p203 = scmp.eq.s32.totalorder %s24, 0
    %p204 = por %p202, %p203
    %p205 = scmp.ne.s32.totalorder %s193, %s194
    %p206 = scmp.eq.s32.totalorder %s25, 1
    %p207 = por %p205, %p206
    %p209 = scmp.ne.s32.totalorder %s194, %s208
    %p210 = scmp.eq.s32.totalorder %s25, 0
    %p211 = por %p209, %p210
    %s213 = sadd.s32 %s212, 1
    %p216 = scmp.eq.s32.totalorder %s19, 1
    %p217 = scmp.ne.s32.totalorder %s212, %s214
    %p218 = scmp.eq.s32.totalorder %s19, 0
    %p219 = por %p217, %p218
    %p220 = scmp.ne.s32.totalorder %s212, %s214
    %p221 = scmp.eq.s32.totalorder %s24, 1
    %p222 = por %p220, %p221
    %p223 = scmp.ne.s32.totalorder %s214, %s215
    %p224 = scmp.eq.s32.totalorder %s24, 0
    %p225 = por %p223, %p224
    %p226 = scmp.ne.s32.totalorder %s214, %s215
    %p227 = scmp.eq.s32.totalorder %s25, 1
    %p228 = por %p226, %p227
    %p230 = scmp.ne.s32.totalorder %s215, %s229
    %p231 = scmp.eq.s32.totalorder %s25, 0
    %p232 = por %p230, %p231
    %s234 = sadd.s32 %s233, 1
    %p237 = scmp.eq.s32.totalorder %s19, 1
    %p238 = scmp.ne.s32.totalorder %s233, %s235
    %p239 = scmp.eq.s32.totalorder %s19, 0
    %p240 = por %p238, %p239
    %p241 = scmp.ne.s32.totalorder %s233, %s235
    %p242 = scmp.eq.s32.totalorder %s24, 1
    %p243 = por %p241, %p242
    %p244 = scmp.ne.s32.totalorder %s235, %s236
    %p245 = scmp.eq.s32.totalorder %s24, 0
    %p246 = por %p244, %p245
    %p247 = scmp.ne.s32.totalorder %s235, %s236
    %p248 = scmp.eq.s32.totalorder %s25, 1
    %p249 = por %p247, %p248
    %p251 = scmp.ne.s32.totalorder %s236, %s250
    %p252 = scmp.eq.s32.totalorder %s25, 0
    %p253 = por %p251, %p252
    %s255 = sadd.s32 %s254, 1
    %p258 = scmp.eq.s32.totalorder %s19, 1
    %p259 = scmp.ne.s32.totalorder %s254, %s256
    %p260 = scmp.eq.s32.totalorder %s19, 0
    %p261 = por %p259, %p260
    %p262 = scmp.ne.s32.totalorder %s254, %s256
    %p263 = scmp.eq.s32.totalorder %s24, 1
    %p264 = por %p262, %p263
    %p265 = scmp.ne.s32.totalorder %s256, %s257
    %p266 = scmp.eq.s32.totalorder %s24, 0
    %p267 = por %p265, %p266
    %p268 = scmp.ne.s32.totalorder %s256, %s257
    %p269 = scmp.eq.s32.totalorder %s25, 1
    %p270 = por %p268, %p269
    %p272 = scmp.ne.s32.totalorder %s257, %s271
    %p273 = scmp.eq.s32.totalorder %s25, 0
    %p274 = por %p272, %p273
    %s276 = sadd.s32 %s275, 1
    %p279 = scmp.eq.s32.totalorder %s19, 1
    %p280 = scmp.ne.s32.totalorder %s275, %s277
    %p281 = scmp.eq.s32.totalorder %s19, 0
    %p282 = por %p280, %p281
    %p283 = scmp.ne.s32.totalorder %s275, %s277
    %p284 = scmp.eq.s32.totalorder %s24, 1
    %p285 = por %p283, %p284
    %p286 = scmp.ne.s32.totalorder %s277, %s278
    %p287 = scmp.eq.s32.totalorder %s24, 0
    %p288 = por %p286, %p287
    %p289 = scmp.ne.s32.totalorder %s277, %s278
    %p290 = scmp.eq.s32.totalorder %s25, 1
    %p291 = por %p289, %p290
    %p293 = scmp.ne.s32.totalorder %s278, %s292
    %p294 = scmp.eq.s32.totalorder %s25, 0
    %p295 = por %p293, %p294
    %s297 = sadd.s32 %s296, 1
    %p300 = scmp.eq.s32.totalorder %s19, 1
    %p301 = scmp.ne.s32.totalorder %s296, %s298
    %p302 = scmp.eq.s32.totalorder %s19, 0
    %p303 = por %p301, %p302
    %p304 = scmp.ne.s32.totalorder %s296, %s298
    %p305 = scmp.eq.s32.totalorder %s24, 1
    %p306 = por %p304, %p305
    %p307 = scmp.ne.s32.totalorder %s298, %s299
    %p308 = scmp.eq.s32.totalorder %s24, 0
    %p309 = por %p307, %p308
    %p310 = scmp.ne.s32.totalorder %s298, %s299
    %p311 = scmp.eq.s32.totalorder %s25, 1
    %p312 = por %p310, %p311
    %p314 = scmp.ne.s32.totalorder %s299, %s313
    %p315 = scmp.eq.s32.totalorder %s25, 0
    %p316 = por %p314, %p315
    %s317 = sadd.s32 %s27, 1
    %s318 = sadd.s32 %s34, 1
    %s319 = ssub.s32 %s26, %s38
    %s320 = ssub.s32 %s317, %s318
    %s321 = sor.u32 %s319, %s320
    %p322 = scmp.eq.s32.totalorder %s321, 0
    %s324 = sadd.s32 %s323, 1
    %s325 = scalar_select %p322, %s323, %s324
    %p328 = pneg %p322
    %p329 = scmp.eq.s32.totalorder %s19, 1
    %p330 = por %p328, %p329
    %p331 = scmp.ne.s32.totalorder %s323, %s326
    %p332 = scmp.eq.s32.totalorder %s19, 0
    %p333 = por %p331, %p332
    %p334 = scmp.ne.s32.totalorder %s323, %s326
    %p335 = scmp.eq.s32.totalorder %s24, 1
    %p336 = por %p334, %p335
    %p337 = scmp.ne.s32.totalorder %s326, %s327
    %p338 = scmp.eq.s32.totalorder %s24, 0
    %p339 = por %p337, %p338
    %p340 = scmp.ne.s32.totalorder %s326, %s327
    %p341 = scmp.eq.s32.totalorder %s25, 1
    %p342 = por %p340, %p341
    %p344 = scmp.ne.s32.totalorder %s327, %s343
    %p345 = scmp.eq.s32.totalorder %s25, 0
    %p346 = por %p344, %p345
    %p347 = scmp.le.s32.totalorder 1, %s19
    %p348 = scmp.lt.s32.totalorder %s19, 3
    %p349 = pnand %p347, %p348
    %p350 = pneg %p349
    // Predicated region
    $region9: #{convnext_forward.6} parent=5 // pred_check
      _
    $region10: #{convnext_forward.6} parent=5 // pred_check_branch
      %352 = sbr.rel (%p349) target = $region12
    $region11: #{convnext_forward.6} parent=5 // pred_region
      %s353 = ssub.s32 %s19, 1
      // Predicated region
      $region13: #{convnext_forward.6} parent=11 // pred_check
        %p354 = pneg %p78
      $region14: #{convnext_forward.6} parent=11 // pred_check_branch
        %356 = sbr.rel (%p354) target = $region16
      $region15: #{convnext_forward.6} parent=11 // pred_region
        _
      $region16: #{convnext_forward.6} parent=11 // pred_fallthru
        _
      // Predicated region
      $region17: #{convnext_forward.6} parent=11 // pred_check
        %p357 = pneg %p99
      $region18: #{convnext_forward.6} parent=11 // pred_check_branch
        %359 = sbr.rel (%p357) target = $region20
      $region19: #{convnext_forward.6} parent=11 // pred_region
        _
      $region20: #{convnext_forward.6} parent=11 // pred_fallthru
        _
      // Predicated region
      $region21: #{convnext_forward.6} parent=11 // pred_check
        %p360 = pneg %p120
      $region22: #{convnext_forward.6} parent=11 // pred_check_branch
        %362 = sbr.rel (%p360) target = $region24
      $region23: #{convnext_forward.6} parent=11 // pred_region
        _
      $region24: #{convnext_forward.6} parent=11 // pred_fallthru
        _
      // Predicated region
      $region25: #{convnext_forward.6} parent=11 // pred_check
        %p363 = pneg %p141
      $region26: #{convnext_forward.6} parent=11 // pred_check_branch
        %365 = sbr.rel (%p363) target = $region28
      $region27: #{convnext_forward.6} parent=11 // pred_region
        _
      $region28: #{convnext_forward.6} parent=11 // pred_fallthru
        _
      // Predicated region
      $region29: #{convnext_forward.6} parent=11 // pred_check
        %p366 = pneg %p162
      $region30: #{convnext_forward.6} parent=11 // pred_check_branch
        %368 = sbr.rel (%p366) target = $region32
      $region31: #{convnext_forward.6} parent=11 // pred_region
        _
      $region32: #{convnext_forward.6} parent=11 // pred_fallthru
        _
      // Predicated region
      $region33: #{convnext_forward.6} parent=11 // pred_check
        %p369 = pneg %p183
      $region34: #{convnext_forward.6} parent=11 // pred_check_branch
        %371 = sbr.rel (%p369) target = $region36
      $region35: #{convnext_forward.6} parent=11 // pred_region
        _
      $region36: #{convnext_forward.6} parent=11 // pred_fallthru
        _
      // Predicated region
      $region37: #{convnext_forward.6} parent=11 // pred_check
        %p372 = pneg %p204
      $region38: #{convnext_forward.6} parent=11 // pred_check_branch
        %374 = sbr.rel (%p372) target = $region40
      $region39: #{convnext_forward.6} parent=11 // pred_region
        _
      $region40: #{convnext_forward.6} parent=11 // pred_fallthru
        _
      // Predicated region
      $region41: #{convnext_forward.6} parent=11 // pred_check
        %p375 = pneg %p225
      $region42: #{convnext_forward.6} parent=11 // pred_check_branch
        %377 = sbr.rel (%p375) target = $region44
      $region43: #{convnext_forward.6} parent=11 // pred_region
        _
      $region44: #{convnext_forward.6} parent=11 // pred_fallthru
        _
      // Predicated region
      $region45: #{convnext_forward.6} parent=11 // pred_check
        %p378 = pneg %p246
      $region46: #{convnext_forward.6} parent=11 // pred_check_branch
        %380 = sbr.rel (%p378) target = $region48
      $region47: #{convnext_forward.6} parent=11 // pred_region
        _
      $region48: #{convnext_forward.6} parent=11 // pred_fallthru
        _
      // Predicated region
      $region49: #{convnext_forward.6} parent=11 // pred_check
        %p381 = pneg %p267
      $region50: #{convnext_forward.6} parent=11 // pred_check_branch
        %383 = sbr.rel (%p381) target = $region52
      $region51: #{convnext_forward.6} parent=11 // pred_region
        _
      $region52: #{convnext_forward.6} parent=11 // pred_fallthru
        _
      // Predicated region
      $region53: #{convnext_forward.6} parent=11 // pred_check
        %p384 = pneg %p288
      $region54: #{convnext_forward.6} parent=11 // pred_check_branch
        %386 = sbr.rel (%p384) target = $region56
      $region55: #{convnext_forward.6} parent=11 // pred_region
        _
      $region56: #{convnext_forward.6} parent=11 // pred_fallthru
        _
      // Predicated region
      $region57: #{convnext_forward.6} parent=11 // pred_check
        %p387 = pneg %p309
      $region58: #{convnext_forward.6} parent=11 // pred_check_branch
        %389 = sbr.rel (%p387) target = $region60
      $region59: #{convnext_forward.6} parent=11 // pred_region
        _
      $region60: #{convnext_forward.6} parent=11 // pred_fallthru
        _
    $region12: #{convnext_forward.6} parent=5 // pred_fallthru
      _
    %p390 = scmp.lt.s32.totalorder %s19, 2
    // Predicated region
    $region61: #{convnext_forward.6} parent=5 // pred_check
      %p391 = pneg %p390
    $region62: #{convnext_forward.6} parent=5 // pred_check_branch
      %393 = sbr.rel (%p391) target = $region64
    $region63: #{convnext_forward.6} parent=5 // pred_region
      // Predicated region
      $region65: #{convnext_forward.6} parent=63 // pred_check
        %p394 = pneg %p51
      $region66: #{convnext_forward.6} parent=63 // pred_check_branch
        %396 = sbr.rel (%p394) target = $region68
      $region67: #{convnext_forward.6} parent=63 // pred_region
        %p397 = scmp.lt.s32.totalorder %s26, 1
        %s398 = scalar_select %p397, %s26, 1
        %s399 = smul.addr %s398, 24
        %s400 = smul.addr %s399, 8
        %s401 = scalar_lea.vmem %s0, %s400
      $region68: #{convnext_forward.6} parent=63 // pred_fallthru
        _
    $region64: #{convnext_forward.6} parent=5 // pred_fallthru
      _
    %p402 = scmp.le.s32.totalorder 1, %s19
    %p403 = scmp.lt.s32.totalorder %s19, 3
    %p404 = pnand %p402, %p403
    %p405 = pneg %p404
    // Predicated region
    $region69: #{convnext_forward.6} parent=5 // pred_check
      _
    $region70: #{convnext_forward.6} parent=5 // pred_check_branch
      %407 = sbr.rel (%p404) target = $region72
    $region71: #{convnext_forward.6} parent=5 // pred_region
      %s408 = ssub.s32 %s19, 1
      %p409 = scmp.lt.s32.totalorder %s28, 1
      %s410 = scalar_select %p409, %s28, 1
      %s411 = smul.addr %s410, 24
      %s412 = smul.addr %s411, 8
      %s413 = scalar_lea.vmem %s0, %s412
      %p414 = pneg %p57
      %p415 = pneg %p54
      %p416 = pneg %p78
      %p417 = pneg %p75
      %p418 = pneg %p99
      %p419 = pneg %p96
      %p420 = pneg %p120
      %p421 = pneg %p117
      %p422 = pneg %p141
      %p423 = pneg %p138
      %p424 = pneg %p162
      %p425 = pneg %p159
      %p426 = pneg %p183
      %p427 = pneg %p180
      %p428 = pneg %p204
      %p429 = pneg %p201
      %p430 = pneg %p225
      %p431 = pneg %p222
      %p432 = pneg %p246
      %p433 = pneg %p243
      %p434 = pneg %p267
      %p435 = pneg %p264
      %p436 = pneg %p288
      %p437 = pneg %p285
      %p438 = pneg %p309
      %p439 = pneg %p306
      %p440 = pneg %p339
      %p441 = pneg %p336
      %s442 = sadd.s32 %s29, 1
      %s443 = smul.u32 8, %s442
      %p444 = scmp.lt.s32.totalorder %s28, 1
      %s445 = scalar_select %p444, %s28, 1
      %p446 = scmp.lt.s32.totalorder %s443, 23
      %s447 = scalar_select %p446, %s443, 23
      %s448 = smul.addr %s445, 24
      %s449 = sadd.s32 %s447, %s448
      %s450 = smul.addr %s449, 8
      %s451 = scalar_lea.vmem %s13, %s450
      %p452 = scmp.lt.s32.totalorder %s28, 1
      %s453 = scalar_select %p452, %s28, 1
      %s454 = smul.addr %s453, 24
      %s455 = smul.addr %s454, 8
      %s456 = scalar_lea.vmem %s0, %s455
      %s457 = sadd.s32 %s29, 1
      %s458 = smul.u32 8, %s457
      %p459 = scmp.lt.s32.totalorder %s28, 1
      %s460 = scalar_select %p459, %s28, 1
      %p461 = scmp.lt.s32.totalorder %s458, 23
      %s462 = scalar_select %p461, %s458, 23
      %s463 = smul.addr %s460, 24
      %s464 = sadd.s32 %s462, %s463
      %s465 = smul.addr %s464, 8
      %s466 = scalar_lea.vmem %s13, %s465
      %s467 = sadd.s32 %s29, 1
      %s468 = smul.u32 8, %s467
      %s470 = smul.u32 %s29, 4
      %s471 = sadd.s32 %s470, 1
      %s472 = smul.u32 %s471, 16
      %s473 = scalar_lea.vmem %s456, %s472
      %v474 = vld [vmem:[%s473] sm:$0xff]
      %v475 = vld [vmem:[%s473 + $0x8] sm:$0xff]
      %v476 = vld [vmem:[%s473 + $0x10] sm:$0xff]
      %v477 = vld [vmem:[%s473 + $0x18] sm:$0xff]
      %v478 = vld [vmem:[%s473 + $0x20] sm:$0xff]
      %v479 = vld [vmem:[%s473 + $0x28] sm:$0xff]
      %v480 = vld [vmem:[%s473 + $0x30] sm:$0xff]
      %v481 = vld [vmem:[%s473 + $0x38] sm:$0xff]
      %v482 = vld [vmem:[%s473 + $0x40] sm:$0xff]
      %v483 = vld [vmem:[%s473 + $0x48] sm:$0xff]
      %v484 = vld [vmem:[%s473 + $0x50] sm:$0xff]
      %v485 = vld [vmem:[%s473 + $0x58] sm:$0xff]
      %v486 = vld [vmem:[%s473 + $0x60] sm:$0xff]
      %v487 = vld [vmem:[%s473 + $0x68] sm:$0xff]
      %v488 = vld [vmem:[%s473 + $0x70] sm:$0xff]
      %v489 = vld [vmem:[%s473 + $0x78] sm:$0xff]
      %v490 = vld [vmem:[%s473 + $0x80] sm:$0xff]
      %v491 = vld [vmem:[%s473 + $0x88] sm:$0xff]
      %v492 = vld [vmem:[%s473 + $0x90] sm:$0xff]
      %v493 = vld [vmem:[%s473 + $0x98] sm:$0xff]
      %v494 = vld [vmem:[%s2] sm:$0xff]
      %v495 = vld [vmem:[%s2 + $0x8] sm:$0xff]
      %v496 = vld [vmem:[%s2 + $0x10] sm:$0xff]
      %v497 = vld [vmem:[%s2 + $0x18] sm:$0xff]
      %v498 = vld [vmem:[%s2 + $0x20] sm:$0xff]
      %v499 = vld [vmem:[%s2 + $0x28] sm:$0xff]
      %v500 = vld [vmem:[%s2 + $0x30] sm:$0x1]
      %v501 = vrot.slane %v474, 5
      %v502 = vrot.slane %v475, 5
      %v503 = vrot.slane %v476, 5
      %v504 = vrot.slane %v477, 5
      %v505 = vrot.slane %v478, 5
      %v506 = vrot.slane %v479, 5
      %v507 = vrot.slane %v480, 5
      %v508 = vrot.slane %v481, 5
      %v509 = vrot.slane %v482, 5
      %v510 = vrot.slane %v483, 5
      %v511 = vrot.slane %v484, 5
      %v512 = vrot.slane %v485, 5
      %v513 = vrot.slane %v486, 5
      %v514 = vrot.slane %v487, 5
      %v515 = vrot.slane %v488, 5
      %v516 = vrot.slane %v489, 5
      %v517 = vrot.slane %v490, 5
      %v518 = vrot.slane %v491, 5
      %v519 = vrot.slane %v492, 5
      %v520 = vrot.slane %v493, 5
      %v521 = vlaneseq
      %v522 = vshrl.u32 %v521, 7
      %vm523 = vcmp.lt.s32.totalorder %v522, 3
      %v524 = vsel %vm523, %v519, %v520
      %v525 = vsel %vm523, %v518, %v519
      %v526 = vsel %vm523, %v517, %v518
      %v527 = vsel %vm523, %v516, %v517
      %v528 = vsel %vm523, %v515, %v516
      %v529 = vsel %vm523, %v514, %v515
      %v530 = vsel %vm523, %v513, %v514
      %v531 = vsel %vm523, %v512, %v513
      %v532 = vsel %vm523, %v511, %v512
      %v533 = vsel %vm523, %v510, %v511
      %v534 = vsel %vm523, %v509, %v510
      %v535 = vsel %vm523, %v508, %v509
      %v536 = vsel %vm523, %v507, %v508
      %v537 = vsel %vm523, %v506, %v507
      %v538 = vsel %vm523, %v505, %v506
      %v539 = vsel %vm523, %v504, %v505
      %v540 = vsel %vm523, %v503, %v504
      %v541 = vsel %vm523, %v502, %v503
      %v542 = vsel %vm523, %v501, %v502
      %v543 = vsel %vm523, %v520, %v501
      %v544 = vperm.slane %v494, 0
      %v545 = vmul.f32 %v543, %v544
      %v546 = vmul.f32 %v542, %v544
      %v547 = vmul.f32 %v541, %v544
      %v548 = vmul.f32 %v540, %v544
      %v549 = vmul.f32 %v539, %v544
      %v550 = vmul.f32 %v538, %v544
      %v551 = vmul.f32 %v537, %v544
      %v552 = vmul.f32 %v536, %v544
      %v553 = vperm.slane %v494, 7
      %v554 = vmul.f32 %v541, %v553
      %v555 = vmul.f32 %v540, %v553
      %v556 = vmul.f32 %v539, %v553
      %v557 = vmul.f32 %v538, %v553
      %v558 = vmul.f32 %v537, %v553
      %v559 = vmul.f32 %v536, %v553
      %v560 = vmul.f32 %v535, %v553
      %v561 = vmul.f32 %v534, %v553
      %v562 = vadd.f32 %v545, %v554
      %v563 = vadd.f32 %v546, %v555
      %v564 = vadd.f32 %v547, %v556
      %v565 = vadd.f32 %v548, %v557
      %v566 = vadd.f32 %v549, %v558
      %v567 = vadd.f32 %v550, %v559
      %v568 = vadd.f32 %v551, %v560
      %v569 = vadd.f32 %v552, %v561
      %v570 = vperm.slane %v495, 6
      %v571 = vmul.f32 %v539, %v570
      %v572 = vmul.f32 %v538, %v570
      %v573 = vmul.f32 %v537, %v570
      %v574 = vmul.f32 %v536, %v570
      %v575 = vmul.f32 %v535, %v570
      %v576 = vmul.f32 %v534, %v570
      %v577 = vmul.f32 %v533, %v570
      %v578 = vmul.f32 %v532, %v570
      %v579 = vadd.f32 %v562, %v571
      %v580 = vadd.f32 %v563, %v572
      %v581 = vadd.f32 %v564, %v573
      %v582 = vadd.f32 %v565, %v574
      %v583 = vadd.f32 %v566, %v575
      %v584 = vadd.f32 %v567, %v576
      %v585 = vadd.f32 %v568, %v577
      %v586 = vadd.f32 %v569, %v578
      %v587 = vperm.slane %v496, 5
      %v588 = vmul.f32 %v537, %v587
      %v589 = vmul.f32 %v536, %v587
      %v590 = vmul.f32 %v535, %v587
      %v591 = vmul.f32 %v534, %v587
      %v592 = vmul.f32 %v533, %v587
      %v593 = vmul.f32 %v532, %v587
      %v594 = vmul.f32 %v531, %v587
      %v595 = vmul.f32 %v530, %v587
      %v596 = vadd.f32 %v579, %v588
      %v597 = vadd.f32 %v580, %v589
      %v598 = vadd.f32 %v581, %v590
      %v599 = vadd.f32 %v582, %v591
      %v600 = vadd.f32 %v583, %v592
      %v601 = vadd.f32 %v584, %v593
      %v602 = vadd.f32 %v585, %v594
      %v603 = vadd.f32 %v586, %v595
      %v604 = vperm.slane %v497, 4
      %v605 = vmul.f32 %v535, %v604
      %v606 = vmul.f32 %v534, %v604
      %v607 = vmul.f32 %v533, %v604
      %v608 = vmul.f32 %v532, %v604
      %v609 = vmul.f32 %v531, %v604
      %v610 = vmul.f32 %v530, %v604
      %v611 = vmul.f32 %v529, %v604
      %v612 = vmul.f32 %v528, %v604
      %v613 = vadd.f32 %v596, %v605
      %v614 = vadd.f32 %v597, %v606
      %v615 = vadd.f32 %v598, %v607
      %v616 = vadd.f32 %v599, %v608
      %v617 = vadd.f32 %v600, %v609
      %v618 = vadd.f32 %v601, %v610
      %v619 = vadd.f32 %v602, %v611
      %v620 = vadd.f32 %v603, %v612
      %v621 = vperm.slane %v498, 3
      %v622 = vmul.f32 %v533, %v621
      %v623 = vmul.f32 %v532, %v621
      %v624 = vmul.f32 %v531, %v621
      %v625 = vmul.f32 %v530, %v621
      %v626 = vmul.f32 %v529, %v621
      %v627 = vmul.f32 %v528, %v621
      %v628 = vmul.f32 %v527, %v621
      %v629 = vmul.f32 %v526, %v621
      %v630 = vadd.f32 %v613, %v622
      %v631 = vadd.f32 %v614, %v623
      %v632 = vadd.f32 %v615, %v624
      %v633 = vadd.f32 %v616, %v625
      %v634 = vadd.f32 %v617, %v626
      %v635 = vadd.f32 %v618, %v627
      %v636 = vadd.f32 %v619, %v628
      %v637 = vadd.f32 %v620, %v629
      %v638 = vperm.slane %v499, 2
      %v639 = vmul.f32 %v531, %v638
      %v640 = vmul.f32 %v530, %v638
      %v641 = vmul.f32 %v529, %v638
      %v642 = vmul.f32 %v528, %v638
      %v643 = vmul.f32 %v527, %v638
      %v644 = vmul.f32 %v526, %v638
      %v645 = vmul.f32 %v525, %v638
      %v646 = vmul.f32 %v524, %v638
      %v647 = vadd.f32 %v630, %v639
      %v648 = vadd.f32 %v631, %v640
      %v649 = vadd.f32 %v632, %v641
      %v650 = vadd.f32 %v633, %v642
      %v651 = vadd.f32 %v634, %v643
      %v652 = vadd.f32 %v635, %v644
      %v653 = vadd.f32 %v636, %v645
      %v654 = vadd.f32 %v637, %v646
      %v655 = vrot.slane %v474, 6
      %v656 = vrot.slane %v475, 6
      %v657 = vrot.slane %v476, 6
      %v658 = vrot.slane %v477, 6
      %v659 = vrot.slane %v478, 6
      %v660 = vrot.slane %v479, 6
      %v661 = vrot.slane %v480, 6
      %v662 = vrot.slane %v481, 6
      %v663 = vrot.slane %v482, 6
      %v664 = vrot.slane %v483, 6
      %v665 = vrot.slane %v484, 6
      %v666 = vrot.slane %v485, 6
      %v667 = vrot.slane %v486, 6
      %v668 = vrot.slane %v487, 6
      %v669 = vrot.slane %v488, 6
      %v670 = vrot.slane %v489, 6
      %v671 = vrot.slane %v490, 6
      %v672 = vrot.slane %v491, 6
      %v673 = vrot.slane %v492, 6
      %v674 = vrot.slane %v493, 6
      %vm675 = vcmp.lt.s32.totalorder %v522, 2
      %v676 = vsel %vm675, %v673, %v674
      %v677 = vsel %vm675, %v672, %v673
      %v678 = vsel %vm675, %v671, %v672
      %v679 = vsel %vm675, %v670, %v671
      %v680 = vsel %vm675, %v669, %v670
      %v681 = vsel %vm675, %v668, %v669
      %v682 = vsel %vm675, %v667, %v668
      %v683 = vsel %vm675, %v666, %v667
      %v684 = vsel %vm675, %v665, %v666
      %v685 = vsel %vm675, %v664, %v665
      %v686 = vsel %vm675, %v663, %v664
      %v687 = vsel %vm675, %v662, %v663
      %v688 = vsel %vm675, %v661, %v662
      %v689 = vsel %vm675, %v660, %v661
      %v690 = vsel %vm675, %v659, %v660
      %v691 = vsel %vm675, %v658, %v659
      %v692 = vsel %vm675, %v657, %v658
      %v693 = vsel %vm675, %v656, %v657
      %v694 = vsel %vm675, %v655, %v656
      %v695 = vsel %vm675, %v674, %v655
      %v696 = vperm.slane %v494, 1
      %v697 = vmul.f32 %v695, %v696
      %v698 = vmul.f32 %v694, %v696
      %v699 = vmul.f32 %v693, %v696
      %v700 = vmul.f32 %v692, %v696
      %v701 = vmul.f32 %v691, %v696
      %v702 = vmul.f32 %v690, %v696
      %v703 = vmul.f32 %v689, %v696
      %v704 = vmul.f32 %v688, %v696
      %v705 = vperm.slane %v495, 0
      %v706 = vmul.f32 %v693, %v705
      %v707 = vmul.f32 %v692, %v705
      %v708 = vmul.f32 %v691, %v705
      %v709 = vmul.f32 %v690, %v705
      %v710 = vmul.f32 %v689, %v705
      %v711 = vmul.f32 %v688, %v705
      %v712 = vmul.f32 %v687, %v705
      %v713 = vmul.f32 %v686, %v705
      %v714 = vadd.f32 %v697, %v706
      %v715 = vadd.f32 %v698, %v707
      %v716 = vadd.f32 %v699, %v708
      %v717 = vadd.f32 %v700, %v709
      %v718 = vadd.f32 %v701, %v710
      %v719 = vadd.f32 %v702, %v711
      %v720 = vadd.f32 %v703, %v712
      %v721 = vadd.f32 %v704, %v713
      %v722 = vperm.slane %v495, 7
      %v723 = vmul.f32 %v691, %v722
      %v724 = vmul.f32 %v690, %v722
      %v725 = vmul.f32 %v689, %v722
      %v726 = vmul.f32 %v688, %v722
      %v727 = vmul.f32 %v687, %v722
      %v728 = vmul.f32 %v686, %v722
      %v729 = vmul.f32 %v685, %v722
      %v730 = vmul.f32 %v684, %v722
      %v731 = vadd.f32 %v714, %v723
      %v732 = vadd.f32 %v715, %v724
      %v733 = vadd.f32 %v716, %v725
      %v734 = vadd.f32 %v717, %v726
      %v735 = vadd.f32 %v718, %v727
      %v736 = vadd.f32 %v719, %v728
      %v737 = vadd.f32 %v720, %v729
      %v738 = vadd.f32 %v721, %v730
      %v739 = vperm.slane %v496, 6
      %v740 = vmul.f32 %v689, %v739
      %v741 = vmul.f32 %v688, %v739
      %v742 = vmul.f32 %v687, %v739
      %v743 = vmul.f32 %v686, %v739
      %v744 = vmul.f32 %v685, %v739
      %v745 = vmul.f32 %v684, %v739
      %v746 = vmul.f32 %v683, %v739
      %v747 = vmul.f32 %v682, %v739
      %v748 = vadd.f32 %v731, %v740
      %v749 = vadd.f32 %v732, %v741
      %v750 = vadd.f32 %v733, %v742
      %v751 = vadd.f32 %v734, %v743
      %v752 = vadd.f32 %v735, %v744
      %v753 = vadd.f32 %v736, %v745
      %v754 = vadd.f32 %v737, %v746
      %v755 = vadd.f32 %v738, %v747
      %v756 = vperm.slane %v497, 5
      %v757 = vmul.f32 %v687, %v756
      %v758 = vmul.f32 %v686, %v756
      %v759 = vmul.f32 %v685, %v756
      %v760 = vmul.f32 %v684, %v756
      %v761 = vmul.f32 %v683, %v756
      %v762 = vmul.f32 %v682, %v756
      %v763 = vmul.f32 %v681, %v756
      %v764 = vmul.f32 %v680, %v756
      %v765 = vadd.f32 %v748, %v757
      %v766 = vadd.f32 %v749, %v758
      %v767 = vadd.f32 %v750, %v759
      %v768 = vadd.f32 %v751, %v760
      %v769 = vadd.f32 %v752, %v761
      %v770 = vadd.f32 %v753, %v762
      %v771 = vadd.f32 %v754, %v763
      %v772 = vadd.f32 %v755, %v764
      %v773 = vperm.slane %v498, 4
      %v774 = vmul.f32 %v685, %v773
      %v775 = vmul.f32 %v684, %v773
      %v776 = vmul.f32 %v683, %v773
      %v777 = vmul.f32 %v682, %v773
      %v778 = vmul.f32 %v681, %v773
      %v779 = vmul.f32 %v680, %v773
      %v780 = vmul.f32 %v679, %v773
      %v781 = vmul.f32 %v678, %v773
      %v782 = vadd.f32 %v765, %v774
      %v783 = vadd.f32 %v766, %v775
      %v784 = vadd.f32 %v767, %v776
      %v785 = vadd.f32 %v768, %v777
      %v786 = vadd.f32 %v769, %v778
      %v787 = vadd.f32 %v770, %v779
      %v788 = vadd.f32 %v771, %v780
      %v789 = vadd.f32 %v772, %v781
      %v790 = vperm.slane %v499, 3
      %v791 = vmul.f32 %v683, %v790
      %v792 = vmul.f32 %v682, %v790
      %v793 = vmul.f32 %v681, %v790
      %v794 = vmul.f32 %v680, %v790
      %v795 = vmul.f32 %v679, %v790
      %v796 = vmul.f32 %v678, %v790
      %v797 = vmul.f32 %v677, %v790
      %v798 = vmul.f32 %v676, %v790
      %v799 = vadd.f32 %v782, %v791
      %v800 = vadd.f32 %v783, %v792
      %v801 = vadd.f32 %v784, %v793
      %v802 = vadd.f32 %v785, %v794
      %v803 = vadd.f32 %v786, %v795
      %v804 = vadd.f32 %v787, %v796
      %v805 = vadd.f32 %v788, %v797
      %v806 = vadd.f32 %v789, %v798
      %v807 = vrot.slane %v474, 7
      %v808 = vrot.slane %v475, 7
      %v809 = vrot.slane %v476, 7
      %v810 = vrot.slane %v477, 7
      %v811 = vrot.slane %v478, 7
      %v812 = vrot.slane %v479, 7
      %v813 = vrot.slane %v480, 7
      %v814 = vrot.slane %v481, 7
      %v815 = vrot.slane %v482, 7
      %v816 = vrot.slane %v483, 7
      %v817 = vrot.slane %v484, 7
      %v818 = vrot.slane %v485, 7
      %v819 = vrot.slane %v486, 7
      %v820 = vrot.slane %v487, 7
      %v821 = vrot.slane %v488, 7
      %v822 = vrot.slane %v489, 7
      %v823 = vrot.slane %v490, 7
      %v824 = vrot.slane %v491, 7
      %v825 = vrot.slane %v492, 7
      %v826 = vrot.slane %v493, 7
      %vm827 = vcmp.lt.s32.totalorder %v522, 1
      %v828 = vsel %vm827, %v825, %v826
      %v829 = vsel %vm827, %v824, %v825
      %v830 = vsel %vm827, %v823, %v824
      %v831 = vsel %vm827, %v822, %v823
      %v832 = vsel %vm827, %v821, %v822
      %v833 = vsel %vm827, %v820, %v821
      %v834 = vsel %vm827, %v819, %v820
      %v835 = vsel %vm827, %v818, %v819
      %v836 = vsel %vm827, %v817, %v818
      %v837 = vsel %vm827, %v816, %v817
      %v838 = vsel %vm827, %v815, %v816
      %v839 = vsel %vm827, %v814, %v815
      %v840 = vsel %vm827, %v813, %v814
      %v841 = vsel %vm827, %v812, %v813
      %v842 = vsel %vm827, %v811, %v812
      %v843 = vsel %vm827, %v810, %v811
      %v844 = vsel %vm827, %v809, %v810
      %v845 = vsel %vm827, %v808, %v809
      %v846 = vsel %vm827, %v807, %v808
      %v847 = vsel %vm827, %v826, %v807
      %v848 = vperm.slane %v494, 2
      %v849 = vmul.f32 %v847, %v848
      %v850 = vmul.f32 %v846, %v848
      %v851 = vmul.f32 %v845, %v848
      %v852 = vmul.f32 %v844, %v848
      %v853 = vmul.f32 %v843, %v848
      %v854 = vmul.f32 %v842, %v848
      %v855 = vmul.f32 %v841, %v848
      %v856 = vmul.f32 %v840, %v848
      %v857 = vperm.slane %v495, 1
      %v858 = vmul.f32 %v845, %v857
      %v859 = vmul.f32 %v844, %v857
      %v860 = vmul.f32 %v843, %v857
      %v861 = vmul.f32 %v842, %v857
      %v862 = vmul.f32 %v841, %v857
      %v863 = vmul.f32 %v840, %v857
      %v864 = vmul.f32 %v839, %v857
      %v865 = vmul.f32 %v838, %v857
      %v866 = vadd.f32 %v849, %v858
      %v867 = vadd.f32 %v850, %v859
      %v868 = vadd.f32 %v851, %v860
      %v869 = vadd.f32 %v852, %v861
      %v870 = vadd.f32 %v853, %v862
      %v871 = vadd.f32 %v854, %v863
      %v872 = vadd.f32 %v855, %v864
      %v873 = vadd.f32 %v856, %v865
      %v874 = vperm.slane %v496, 0
      %v875 = vmul.f32 %v843, %v874
      %v876 = vmul.f32 %v842, %v874
      %v877 = vmul.f32 %v841, %v874
      %v878 = vmul.f32 %v840, %v874
      %v879 = vmul.f32 %v839, %v874
      %v880 = vmul.f32 %v838, %v874
      %v881 = vmul.f32 %v837, %v874
      %v882 = vmul.f32 %v836, %v874
      %v883 = vadd.f32 %v866, %v875
      %v884 = vadd.f32 %v867, %v876
      %v885 = vadd.f32 %v868, %v877
      %v886 = vadd.f32 %v869, %v878
      %v887 = vadd.f32 %v870, %v879
      %v888 = vadd.f32 %v871, %v880
      %v889 = vadd.f32 %v872, %v881
      %v890 = vadd.f32 %v873, %v882
      %v891 = vperm.slane %v496, 7
      %v892 = vmul.f32 %v841, %v891
      %v893 = vmul.f32 %v840, %v891
      %v894 = vmul.f32 %v839, %v891
      %v895 = vmul.f32 %v838, %v891
      %v896 = vmul.f32 %v837, %v891
      %v897 = vmul.f32 %v836, %v891
      %v898 = vmul.f32 %v835, %v891
      %v899 = vmul.f32 %v834, %v891
      %v900 = vadd.f32 %v883, %v892
      %v901 = vadd.f32 %v884, %v893
      %v902 = vadd.f32 %v885, %v894
      %v903 = vadd.f32 %v886, %v895
      %v904 = vadd.f32 %v887, %v896
      %v905 = vadd.f32 %v888, %v897
      %v906 = vadd.f32 %v889, %v898
      %v907 = vadd.f32 %v890, %v899
      %v908 = vperm.slane %v497, 6
      %v909 = vmul.f32 %v839, %v908
      %v910 = vmul.f32 %v838, %v908
      %v911 = vmul.f32 %v837, %v908
      %v912 = vmul.f32 %v836, %v908
      %v913 = vmul.f32 %v835, %v908
      %v914 = vmul.f32 %v834, %v908
      %v915 = vmul.f32 %v833, %v908
      %v916 = vmul.f32 %v832, %v908
      %v917 = vadd.f32 %v900, %v909
      %v918 = vadd.f32 %v901, %v910
      %v919 = vadd.f32 %v902, %v911
      %v920 = vadd.f32 %v903, %v912
      %v921 = vadd.f32 %v904, %v913
      %v922 = vadd.f32 %v905, %v914
      %v923 = vadd.f32 %v906, %v915
      %v924 = vadd.f32 %v907, %v916
      %v925 = vperm.slane %v498, 5
      %v926 = vmul.f32 %v837, %v925
      %v927 = vmul.f32 %v836, %v925
      %v928 = vmul.f32 %v835, %v925
      %v929 = vmul.f32 %v834, %v925
      %v930 = vmul.f32 %v833, %v925
      %v931 = vmul.f32 %v832, %v925
      %v932 = vmul.f32 %v831, %v925
      %v933 = vmul.f32 %v830, %v925
      %v934 = vadd.f32 %v917, %v926
      %v935 = vadd.f32 %v918, %v927
      %v936 = vadd.f32 %v919, %v928
      %v937 = vadd.f32 %v920, %v929
      %v938 = vadd.f32 %v921, %v930
      %v939 = vadd.f32 %v922, %v931
      %v940 = vadd.f32 %v923, %v932
      %v941 = vadd.f32 %v924, %v933
      %v942 = vperm.slane %v499, 4
      %v943 = vmul.f32 %v835, %v942
      %v944 = vmul.f32 %v834, %v942
      %v945 = vmul.f32 %v833, %v942
      %v946 = vmul.f32 %v832, %v942
      %v947 = vmul.f32 %v831, %v942
      %v948 = vmul.f32 %v830, %v942
      %v949 = vmul.f32 %v829, %v942
      %v950 = vmul.f32 %v828, %v942
      %v951 = vadd.f32 %v934, %v943
      %v952 = vadd.f32 %v935, %v944
      %v953 = vadd.f32 %v936, %v945
      %v954 = vadd.f32 %v937, %v946
      %v955 = vadd.f32 %v938, %v947
      %v956 = vadd.f32 %v939, %v948
      %v957 = vadd.f32 %v940, %v949
      %v958 = vadd.f32 %v941, %v950
      %v959 = vperm.slane %v494, 3
      %v960 = vmul.f32 %v474, %v959
      %v961 = vmul.f32 %v475, %v959
      %v962 = vmul.f32 %v476, %v959
      %v963 = vmul.f32 %v477, %v959
      %v964 = vmul.f32 %v478, %v959
      %v965 = vmul.f32 %v479, %v959
      %v966 = vmul.f32 %v480, %v959
      %v967 = vmul.f32 %v481, %v959
      %v968 = vperm.slane %v495, 2
      %v969 = vmul.f32 %v476, %v968
      %v970 = vmul.f32 %v477, %v968
      %v971 = vmul.f32 %v478, %v968
      %v972 = vmul.f32 %v479, %v968
      %v973 = vmul.f32 %v480, %v968
      %v974 = vmul.f32 %v481, %v968
      %v975 = vmul.f32 %v482, %v968
      %v976 = vmul.f32 %v483, %v968
      %v977 = vadd.f32 %v960, %v969
      %v978 = vadd.f32 %v961, %v970
      %v979 = vadd.f32 %v962, %v971
      %v980 = vadd.f32 %v963, %v972
      %v981 = vadd.f32 %v964, %v973
      %v982 = vadd.f32 %v965, %v974
      %v983 = vadd.f32 %v966, %v975
      %v984 = vadd.f32 %v967, %v976
      %v985 = vperm.slane %v496, 1
      %v986 = vmul.f32 %v478, %v985
      %v987 = vmul.f32 %v479, %v985
      %v988 = vmul.f32 %v480, %v985
      %v989 = vmul.f32 %v481, %v985
      %v990 = vmul.f32 %v482, %v985
      %v991 = vmul.f32 %v483, %v985
      %v992 = vmul.f32 %v484, %v985
      %v993 = vmul.f32 %v485, %v985
      %v994 = vadd.f32 %v977, %v986
      %v995 = vadd.f32 %v978, %v987
      %v996 = vadd.f32 %v979, %v988
      %v997 = vadd.f32 %v980, %v989
      %v998 = vadd.f32 %v981, %v990
      %v999 = vadd.f32 %v982, %v991
      %v1000 = vadd.f32 %v983, %v992
      %v1001 = vadd.f32 %v984, %v993
      %v1002 = vperm.slane %v497, 0
      %v1003 = vmul.f32 %v480, %v1002
      %v1004 = vmul.f32 %v481, %v1002
      %v1005 = vmul.f32 %v482, %v1002
      %v1006 = vmul.f32 %v483, %v1002
      %v1007 = vmul.f32 %v484, %v1002
      %v1008 = vmul.f32 %v485, %v1002
      %v1009 = vmul.f32 %v486, %v1002
      %v1010 = vmul.f32 %v487, %v1002
      %v1011 = vadd.f32 %v994, %v1003
      %v1012 = vadd.f32 %v995, %v1004
      %v1013 = vadd.f32 %v996, %v1005
      %v1014 = vadd.f32 %v997, %v1006
      %v1015 = vadd.f32 %v998, %v1007
      %v1016 = vadd.f32 %v999, %v1008
      %v1017 = vadd.f32 %v1000, %v1009
      %v1018 = vadd.f32 %v1001, %v1010
      %v1019 = vperm.slane %v497, 7
      %v1020 = vmul.f32 %v482, %v1019
      %v1021 = vmul.f32 %v483, %v1019
      %v1022 = vmul.f32 %v484, %v1019
      %v1023 = vmul.f32 %v485, %v1019
      %v1024 = vmul.f32 %v486, %v1019
      %v1025 = vmul.f32 %v487, %v1019
      %v1026 = vmul.f32 %v488, %v1019
      %v1027 = vmul.f32 %v489, %v1019
      %v1028 = vadd.f32 %v1011, %v1020
      %v1029 = vadd.f32 %v1012, %v1021
      %v1030 = vadd.f32 %v1013, %v1022
      %v1031 = vadd.f32 %v1014, %v1023
      %v1032 = vadd.f32 %v1015, %v1024
      %v1033 = vadd.f32 %v1016, %v1025
      %v1034 = vadd.f32 %v1017, %v1026
      %v1035 = vadd.f32 %v1018, %v1027
      %v1036 = vperm.slane %v498, 6
      %v1037 = vmul.f32 %v484, %v1036
      %v1038 = vmul.f32 %v485, %v1036
      %v1039 = vmul.f32 %v486, %v1036
      %v1040 = vmul.f32 %v487, %v1036
      %v1041 = vmul.f32 %v488, %v1036
      %v1042 = vmul.f32 %v489, %v1036
      %v1043 = vmul.f32 %v490, %v1036
      %v1044 = vmul.f32 %v491, %v1036
      %v1045 = vadd.f32 %v1028, %v1037
      %v1046 = vadd.f32 %v1029, %v1038
      %v1047 = vadd.f32 %v1030, %v1039
      %v1048 = vadd.f32 %v1031, %v1040
      %v1049 = vadd.f32 %v1032, %v1041
      %v1050 = vadd.f32 %v1033, %v1042
      %v1051 = vadd.f32 %v1034, %v1043
      %v1052 = vadd.f32 %v1035, %v1044
      %v1053 = vperm.slane %v499, 5
      %v1054 = vmul.f32 %v486, %v1053
      %v1055 = vmul.f32 %v487, %v1053
      %v1056 = vmul.f32 %v488, %v1053
      %v1057 = vmul.f32 %v489, %v1053
      %v1058 = vmul.f32 %v490, %v1053
      %v1059 = vmul.f32 %v491, %v1053
      %v1060 = vmul.f32 %v492, %v1053
      %v1061 = vmul.f32 %v493, %v1053
      %v1062 = vadd.f32 %v1045, %v1054
      %v1063 = vadd.f32 %v1046, %v1055
      %v1064 = vadd.f32 %v1047, %v1056
      %v1065 = vadd.f32 %v1048, %v1057
      %v1066 = vadd.f32 %v1049, %v1058
      %v1067 = vadd.f32 %v1050, %v1059
      %v1068 = vadd.f32 %v1051, %v1060
      %v1069 = vadd.f32 %v1052, %v1061
      %v1070 = vrot.slane %v474, 1
      %v1071 = vrot.slane %v475, 1
      %v1072 = vrot.slane %v476, 1
      %v1073 = vrot.slane %v477, 1
      %v1074 = vrot.slane %v478, 1
      %v1075 = vrot.slane %v479, 1
      %v1076 = vrot.slane %v480, 1
      %v1077 = vrot.slane %v481, 1
      %v1078 = vrot.slane %v482, 1
      %v1079 = vrot.slane %v483, 1
      %v1080 = vrot.slane %v484, 1
      %v1081 = vrot.slane %v485, 1
      %v1082 = vrot.slane %v486, 1
      %v1083 = vrot.slane %v487, 1
      %v1084 = vrot.slane %v488, 1
      %v1085 = vrot.slane %v489, 1
      %v1086 = vrot.slane %v490, 1
      %v1087 = vrot.slane %v491, 1
      %v1088 = vrot.slane %v492, 1
      %v1089 = vrot.slane %v493, 1
      %vm1090 = vcmp.lt.s32.totalorder %v522, 7
      %v1091 = vsel %vm1090, %v1088, %v1089
      %v1092 = vsel %vm1090, %v1087, %v1088
      %v1093 = vsel %vm1090, %v1086, %v1087
      %v1094 = vsel %vm1090, %v1085, %v1086
      %v1095 = vsel %vm1090, %v1084, %v1085
      %v1096 = vsel %vm1090, %v1083, %v1084
      %v1097 = vsel %vm1090, %v1082, %v1083
      %v1098 = vsel %vm1090, %v1081, %v1082
      %v1099 = vsel %vm1090, %v1080, %v1081
      %v1100 = vsel %vm1090, %v1079, %v1080
      %v1101 = vsel %vm1090, %v1078, %v1079
      %v1102 = vsel %vm1090, %v1077, %v1078
      %v1103 = vsel %vm1090, %v1076, %v1077
      %v1104 = vsel %vm1090, %v1075, %v1076
      %v1105 = vsel %vm1090, %v1074, %v1075
      %v1106 = vsel %vm1090, %v1073, %v1074
      %v1107 = vsel %vm1090, %v1072, %v1073
      %v1108 = vsel %vm1090, %v1071, %v1072
      %v1109 = vsel %vm1090, %v1070, %v1071
      %v1110 = vsel %vm1090, %v1089, %v1070
      %v1111 = vperm.slane %v494, 4
      %v1112 = vmul.f32 %v1109, %v1111
      %v1113 = vmul.f32 %v1108, %v1111
      %v1114 = vmul.f32 %v1107, %v1111
      %v1115 = vmul.f32 %v1106, %v1111
      %v1116 = vmul.f32 %v1105, %v1111
      %v1117 = vmul.f32 %v1104, %v1111
      %v1118 = vmul.f32 %v1103, %v1111
      %v1119 = vmul.f32 %v1102, %v1111
      %v1120 = vperm.slane %v495, 3
      %v1121 = vmul.f32 %v1107, %v1120
      %v1122 = vmul.f32 %v1106, %v1120
      %v1123 = vmul.f32 %v1105, %v1120
      %v1124 = vmul.f32 %v1104, %v1120
      %v1125 = vmul.f32 %v1103, %v1120
      %v1126 = vmul.f32 %v1102, %v1120
      %v1127 = vmul.f32 %v1101, %v1120
      %v1128 = vmul.f32 %v1100, %v1120
      %v1129 = vadd.f32 %v1112, %v1121
      %v1130 = vadd.f32 %v1113, %v1122
      %v1131 = vadd.f32 %v1114, %v1123
      %v1132 = vadd.f32 %v1115, %v1124
      %v1133 = vadd.f32 %v1116, %v1125
      %v1134 = vadd.f32 %v1117, %v1126
      %v1135 = vadd.f32 %v1118, %v1127
      %v1136 = vadd.f32 %v1119, %v1128
      %v1137 = vperm.slane %v496, 2
      %v1138 = vmul.f32 %v1105, %v1137
      %v1139 = vmul.f32 %v1104, %v1137
      %v1140 = vmul.f32 %v1103, %v1137
      %v1141 = vmul.f32 %v1102, %v1137
      %v1142 = vmul.f32 %v1101, %v1137
      %v1143 = vmul.f32 %v1100, %v1137
      %v1144 = vmul.f32 %v1099, %v1137
      %v1145 = vmul.f32 %v1098, %v1137
      %v1146 = vadd.f32 %v1129, %v1138
      %v1147 = vadd.f32 %v1130, %v1139
      %v1148 = vadd.f32 %v1131, %v1140
      %v1149 = vadd.f32 %v1132, %v1141
      %v1150 = vadd.f32 %v1133, %v1142
      %v1151 = vadd.f32 %v1134, %v1143
      %v1152 = vadd.f32 %v1135, %v1144
      %v1153 = vadd.f32 %v1136, %v1145
      %v1154 = vperm.slane %v497, 1
      %v1155 = vmul.f32 %v1103, %v1154
      %v1156 = vmul.f32 %v1102, %v1154
      %v1157 = vmul.f32 %v1101, %v1154
      %v1158 = vmul.f32 %v1100, %v1154
      %v1159 = vmul.f32 %v1099, %v1154
      %v1160 = vmul.f32 %v1098, %v1154
      %v1161 = vmul.f32 %v1097, %v1154
      %v1162 = vmul.f32 %v1096, %v1154
      %v1163 = vadd.f32 %v1146, %v1155
      %v1164 = vadd.f32 %v1147, %v1156
      %v1165 = vadd.f32 %v1148, %v1157
      %v1166 = vadd.f32 %v1149, %v1158
      %v1167 = vadd.f32 %v1150, %v1159
      %v1168 = vadd.f32 %v1151, %v1160
      %v1169 = vadd.f32 %v1152, %v1161
      %v1170 = vadd.f32 %v1153, %v1162
      %v1171 = vperm.slane %v498, 0
      %v1172 = vmul.f32 %v1101, %v1171
      %v1173 = vmul.f32 %v1100, %v1171
      %v1174 = vmul.f32 %v1099, %v1171
      %v1175 = vmul.f32 %v1098, %v1171
      %v1176 = vmul.f32 %v1097, %v1171
      %v1177 = vmul.f32 %v1096, %v1171
      %v1178 = vmul.f32 %v1095, %v1171
      %v1179 = vmul.f32 %v1094, %v1171
      %v1180 = vadd.f32 %v1163, %v1172
      %v1181 = vadd.f32 %v1164, %v1173
      %v1182 = vadd.f32 %v1165, %v1174
      %v1183 = vadd.f32 %v1166, %v1175
      %v1184 = vadd.f32 %v1167, %v1176
      %v1185 = vadd.f32 %v1168, %v1177
      %v1186 = vadd.f32 %v1169, %v1178
      %v1187 = vadd.f32 %v1170, %v1179
      %v1188 = vperm.slane %v498, 7
      %v1189 = vmul.f32 %v1099, %v1188
      %v1190 = vmul.f32 %v1098, %v1188
      %v1191 = vmul.f32 %v1097, %v1188
      %v1192 = vmul.f32 %v1096, %v1188
      %v1193 = vmul.f32 %v1095, %v1188
      %v1194 = vmul.f32 %v1094, %v1188
      %v1195 = vmul.f32 %v1093, %v1188
      %v1196 = vmul.f32 %v1092, %v1188
      %v1197 = vadd.f32 %v1180, %v1189
      %v1198 = vadd.f32 %v1181, %v1190
      %v1199 = vadd.f32 %v1182, %v1191
      %v1200 = vadd.f32 %v1183, %v1192
      %v1201 = vadd.f32 %v1184, %v1193
      %v1202 = vadd.f32 %v1185, %v1194
      %v1203 = vadd.f32 %v1186, %v1195
      %v1204 = vadd.f32 %v1187, %v1196
      %v1205 = vperm.slane %v499, 6
      %v1206 = vmul.f32 %v1097, %v1205
      %v1207 = vmul.f32 %v1096, %v1205
      %v1208 = vmul.f32 %v1095, %v1205
      %v1209 = vmul.f32 %v1094, %v1205
      %v1210 = vmul.f32 %v1093, %v1205
      %v1211 = vmul.f32 %v1092, %v1205
      %v1212 = vmul.f32 %v1091, %v1205
      %v1213 = vmul.f32 %v1110, %v1205
      %v1214 = vadd.f32 %v1197, %v1206
      %v1215 = vadd.f32 %v1198, %v1207
      %v1216 = vadd.f32 %v1199, %v1208
      %v1217 = vadd.f32 %v1200, %v1209
      %v1218 = vadd.f32 %v1201, %v1210
      %v1219 = vadd.f32 %v1202, %v1211
      %v1220 = vadd.f32 %v1203, %v1212
      %v1221 = vadd.f32 %v1204, %v1213
      %v1222 = vrot.slane %v474, 2
      %v1223 = vrot.slane %v475, 2
      %v1224 = vrot.slane %v476, 2
      %v1225 = vrot.slane %v477, 2
      %v1226 = vrot.slane %v478, 2
      %v1227 = vrot.slane %v479, 2
      %v1228 = vrot.slane %v480, 2
      %v1229 = vrot.slane %v481, 2
      %v1230 = vrot.slane %v482, 2
      %v1231 = vrot.slane %v483, 2
      %v1232 = vrot.slane %v484, 2
      %v1233 = vrot.slane %v485, 2
      %v1234 = vrot.slane %v486, 2
      %v1235 = vrot.slane %v487, 2
      %v1236 = vrot.slane %v488, 2
      %v1237 = vrot.slane %v489, 2
      %v1238 = vrot.slane %v490, 2
      %v1239 = vrot.slane %v491, 2
      %v1240 = vrot.slane %v492, 2
      %v1241 = vrot.slane %v493, 2
      %vm1242 = vcmp.lt.s32.totalorder %v522, 6
      %v1243 = vsel %vm1242, %v1240, %v1241
      %v1244 = vsel %vm1242, %v1239, %v1240
      %v1245 = vsel %vm1242, %v1238, %v1239
      %v1246 = vsel %vm1242, %v1237, %v1238
      %v1247 = vsel %vm1242, %v1236, %v1237
      %v1248 = vsel %vm1242, %v1235, %v1236
      %v1249 = vsel %vm1242, %v1234, %v1235
      %v1250 = vsel %vm1242, %v1233, %v1234
      %v1251 = vsel %vm1242, %v1232, %v1233
      %v1252 = vsel %vm1242, %v1231, %v1232
      %v1253 = vsel %vm1242, %v1230, %v1231
      %v1254 = vsel %vm1242, %v1229, %v1230
      %v1255 = vsel %vm1242, %v1228, %v1229
      %v1256 = vsel %vm1242, %v1227, %v1228
      %v1257 = vsel %vm1242, %v1226, %v1227
      %v1258 = vsel %vm1242, %v1225, %v1226
      %v1259 = vsel %vm1242, %v1224, %v1225
      %v1260 = vsel %vm1242, %v1223, %v1224
      %v1261 = vsel %vm1242, %v1222, %v1223
      %v1262 = vsel %vm1242, %v1241, %v1222
      %v1263 = vperm.slane %v494, 5
      %v1264 = vmul.f32 %v1261, %v1263
      %v1265 = vmul.f32 %v1260, %v1263
      %v1266 = vmul.f32 %v1259, %v1263
      %v1267 = vmul.f32 %v1258, %v1263
      %v1268 = vmul.f32 %v1257, %v1263
      %v1269 = vmul.f32 %v1256, %v1263
      %v1270 = vmul.f32 %v1255, %v1263
      %v1271 = vmul.f32 %v1254, %v1263
      %v1272 = vperm.slane %v495, 4
      %v1273 = vmul.f32 %v1259, %v1272
      %v1274 = vmul.f32 %v1258, %v1272
      %v1275 = vmul.f32 %v1257, %v1272
      %v1276 = vmul.f32 %v1256, %v1272
      %v1277 = vmul.f32 %v1255, %v1272
      %v1278 = vmul.f32 %v1254, %v1272
      %v1279 = vmul.f32 %v1253, %v1272
      %v1280 = vmul.f32 %v1252, %v1272
      %v1281 = vadd.f32 %v1264, %v1273
      %v1282 = vadd.f32 %v1265, %v1274
      %v1283 = vadd.f32 %v1266, %v1275
      %v1284 = vadd.f32 %v1267, %v1276
      %v1285 = vadd.f32 %v1268, %v1277
      %v1286 = vadd.f32 %v1269, %v1278
      %v1287 = vadd.f32 %v1270, %v1279
      %v1288 = vadd.f32 %v1271, %v1280
      %v1289 = vperm.slane %v496, 3
      %v1290 = vmul.f32 %v1257, %v1289
      %v1291 = vmul.f32 %v1256, %v1289
      %v1292 = vmul.f32 %v1255, %v1289
      %v1293 = vmul.f32 %v1254, %v1289
      %v1294 = vmul.f32 %v1253, %v1289
      %v1295 = vmul.f32 %v1252, %v1289
      %v1296 = vmul.f32 %v1251, %v1289
      %v1297 = vmul.f32 %v1250, %v1289
      %v1298 = vadd.f32 %v1281, %v1290
      %v1299 = vadd.f32 %v1282, %v1291
      %v1300 = vadd.f32 %v1283, %v1292
      %v1301 = vadd.f32 %v1284, %v1293
      %v1302 = vadd.f32 %v1285, %v1294
      %v1303 = vadd.f32 %v1286, %v1295
      %v1304 = vadd.f32 %v1287, %v1296
      %v1305 = vadd.f32 %v1288, %v1297
      %v1306 = vperm.slane %v497, 2
      %v1307 = vmul.f32 %v1255, %v1306
      %v1308 = vmul.f32 %v1254, %v1306
      %v1309 = vmul.f32 %v1253, %v1306
      %v1310 = vmul.f32 %v1252, %v1306
      %v1311 = vmul.f32 %v1251, %v1306
      %v1312 = vmul.f32 %v1250, %v1306
      %v1313 = vmul.f32 %v1249, %v1306
      %v1314 = vmul.f32 %v1248, %v1306
      %v1315 = vadd.f32 %v1298, %v1307
      %v1316 = vadd.f32 %v1299, %v1308
      %v1317 = vadd.f32 %v1300, %v1309
      %v1318 = vadd.f32 %v1301, %v1310
      %v1319 = vadd.f32 %v1302, %v1311
      %v1320 = vadd.f32 %v1303, %v1312
      %v1321 = vadd.f32 %v1304, %v1313
      %v1322 = vadd.f32 %v1305, %v1314
      %v1323 = vperm.slane %v498, 1
      %v1324 = vmul.f32 %v1253, %v1323
      %v1325 = vmul.f32 %v1252, %v1323
      %v1326 = vmul.f32 %v1251, %v1323
      %v1327 = vmul.f32 %v1250, %v1323
      %v1328 = vmul.f32 %v1249, %v1323
      %v1329 = vmul.f32 %v1248, %v1323
      %v1330 = vmul.f32 %v1247, %v1323
      %v1331 = vmul.f32 %v1246, %v1323
      %v1332 = vadd.f32 %v1315, %v1324
      %v1333 = vadd.f32 %v1316, %v1325
      %v1334 = vadd.f32 %v1317, %v1326
      %v1335 = vadd.f32 %v1318, %v1327
      %v1336 = vadd.f32 %v1319, %v1328
      %v1337 = vadd.f32 %v1320, %v1329
      %v1338 = vadd.f32 %v1321, %v1330
      %v1339 = vadd.f32 %v1322, %v1331
      %v1340 = vperm.slane %v499, 0
      %v1341 = vmul.f32 %v1251, %v1340
      %v1342 = vmul.f32 %v1250, %v1340
      %v1343 = vmul.f32 %v1249, %v1340
      %v1344 = vmul.f32 %v1248, %v1340
      %v1345 = vmul.f32 %v1247, %v1340
      %v1346 = vmul.f32 %v1246, %v1340
      %v1347 = vmul.f32 %v1245, %v1340
      %v1348 = vmul.f32 %v1244, %v1340
      %v1349 = vadd.f32 %v1332, %v1341
      %v1350 = vadd.f32 %v1333, %v1342
      %v1351 = vadd.f32 %v1334, %v1343
      %v1352 = vadd.f32 %v1335, %v1344
      %v1353 = vadd.f32 %v1336, %v1345
      %v1354 = vadd.f32 %v1337, %v1346
      %v1355 = vadd.f32 %v1338, %v1347
      %v1356 = vadd.f32 %v1339, %v1348
      %v1357 = vperm.slane %v499, 7
      %v1358 = vmul.f32 %v1249, %v1357
      %v1359 = vmul.f32 %v1248, %v1357
      %v1360 = vmul.f32 %v1247, %v1357
      %v1361 = vmul.f32 %v1246, %v1357
      %v1362 = vmul.f32 %v1245, %v1357
      %v1363 = vmul.f32 %v1244, %v1357
      %v1364 = vmul.f32 %v1243, %v1357
      %v1365 = vmul.f32 %v1262, %v1357
      %v1366 = vadd.f32 %v1349, %v1358
      %v1367 = vadd.f32 %v1350, %v1359
      %v1368 = vadd.f32 %v1351, %v1360
      %v1369 = vadd.f32 %v1352, %v1361
      %v1370 = vadd.f32 %v1353, %v1362
      %v1371 = vadd.f32 %v1354, %v1363
      %v1372 = vadd.f32 %v1355, %v1364
      %v1373 = vadd.f32 %v1356, %v1365
      %v1374 = vrot.slane %v474, 3
      %v1375 = vrot.slane %v475, 3
      %v1376 = vrot.slane %v476, 3
      %v1377 = vrot.slane %v477, 3
      %v1378 = vrot.slane %v478, 3
      %v1379 = vrot.slane %v479, 3
      %v1380 = vrot.slane %v480, 3
      %v1381 = vrot.slane %v481, 3
      %v1382 = vrot.slane %v482, 3
      %v1383 = vrot.slane %v483, 3
      %v1384 = vrot.slane %v484, 3
      %v1385 = vrot.slane %v485, 3
      %v1386 = vrot.slane %v486, 3
      %v1387 = vrot.slane %v487, 3
      %v1388 = vrot.slane %v488, 3
      %v1389 = vrot.slane %v489, 3
      %v1390 = vrot.slane %v490, 3
      %v1391 = vrot.slane %v491, 3
      %v1392 = vrot.slane %v492, 3
      %v1393 = vrot.slane %v493, 3
      %vm1394 = vcmp.lt.s32.totalorder %v522, 5
      %v1395 = vsel %vm1394, %v1392, %v1393
      %v1396 = vsel %vm1394, %v1391, %v1392
      %v1397 = vsel %vm1394, %v1390, %v1391
      %v1398 = vsel %vm1394, %v1389, %v1390
      %v1399 = vsel %vm1394, %v1388, %v1389
      %v1400 = vsel %vm1394, %v1387, %v1388
      %v1401 = vsel %vm1394, %v1386, %v1387
      %v1402 = vsel %vm1394, %v1385, %v1386
      %v1403 = vsel %vm1394, %v1384, %v1385
      %v1404 = vsel %vm1394, %v1383, %v1384
      %v1405 = vsel %vm1394, %v1382, %v1383
      %v1406 = vsel %vm1394, %v1381, %v1382
      %v1407 = vsel %vm1394, %v1380, %v1381
      %v1408 = vsel %vm1394, %v1379, %v1380
      %v1409 = vsel %vm1394, %v1378, %v1379
      %v1410 = vsel %vm1394, %v1377, %v1378
      %v1411 = vsel %vm1394, %v1376, %v1377
      %v1412 = vsel %vm1394, %v1375, %v1376
      %v1413 = vsel %vm1394, %v1374, %v1375
      %v1414 = vsel %vm1394, %v1393, %v1374
      %v1415 = vperm.slane %v494, 6
      %v1416 = vmul.f32 %v1413, %v1415
      %v1417 = vmul.f32 %v1412, %v1415
      %v1418 = vmul.f32 %v1411, %v1415
      %v1419 = vmul.f32 %v1410, %v1415
      %v1420 = vmul.f32 %v1409, %v1415
      %v1421 = vmul.f32 %v1408, %v1415
      %v1422 = vmul.f32 %v1407, %v1415
      %v1423 = vmul.f32 %v1406, %v1415
      %v1424 = vperm.slane %v495, 5
      %v1425 = vmul.f32 %v1411, %v1424
      %v1426 = vmul.f32 %v1410, %v1424
      %v1427 = vmul.f32 %v1409, %v1424
      %v1428 = vmul.f32 %v1408, %v1424
      %v1429 = vmul.f32 %v1407, %v1424
      %v1430 = vmul.f32 %v1406, %v1424
      %v1431 = vmul.f32 %v1405, %v1424
      %v1432 = vmul.f32 %v1404, %v1424
      %v1433 = vadd.f32 %v1416, %v1425
      %v1434 = vadd.f32 %v1417, %v1426
      %v1435 = vadd.f32 %v1418, %v1427
      %v1436 = vadd.f32 %v1419, %v1428
      %v1437 = vadd.f32 %v1420, %v1429
      %v1438 = vadd.f32 %v1421, %v1430
      %v1439 = vadd.f32 %v1422, %v1431
      %v1440 = vadd.f32 %v1423, %v1432
      %v1441 = vperm.slane %v496, 4
      %v1442 = vmul.f32 %v1409, %v1441
      %v1443 = vmul.f32 %v1408, %v1441
      %v1444 = vmul.f32 %v1407, %v1441
      %v1445 = vmul.f32 %v1406, %v1441
      %v1446 = vmul.f32 %v1405, %v1441
      %v1447 = vmul.f32 %v1404, %v1441
      %v1448 = vmul.f32 %v1403, %v1441
      %v1449 = vmul.f32 %v1402, %v1441
      %v1450 = vadd.f32 %v1433, %v1442
      %v1451 = vadd.f32 %v1434, %v1443
      %v1452 = vadd.f32 %v1435, %v1444
      %v1453 = vadd.f32 %v1436, %v1445
      %v1454 = vadd.f32 %v1437, %v1446
      %v1455 = vadd.f32 %v1438, %v1447
      %v1456 = vadd.f32 %v1439, %v1448
      %v1457 = vadd.f32 %v1440, %v1449
      %v1458 = vperm.slane %v497, 3
      %v1459 = vmul.f32 %v1407, %v1458
      %v1460 = vmul.f32 %v1406, %v1458
      %v1461 = vmul.f32 %v1405, %v1458
      %v1462 = vmul.f32 %v1404, %v1458
      %v1463 = vmul.f32 %v1403, %v1458
      %v1464 = vmul.f32 %v1402, %v1458
      %v1465 = vmul.f32 %v1401, %v1458
      %v1466 = vmul.f32 %v1400, %v1458
      %v1467 = vadd.f32 %v1450, %v1459
      %v1468 = vadd.f32 %v1451, %v1460
      %v1469 = vadd.f32 %v1452, %v1461
      %v1470 = vadd.f32 %v1453, %v1462
      %v1471 = vadd.f32 %v1454, %v1463
      %v1472 = vadd.f32 %v1455, %v1464
      %v1473 = vadd.f32 %v1456, %v1465
      %v1474 = vadd.f32 %v1457, %v1466
      %v1475 = vperm.slane %v498, 2
      %v1476 = vmul.f32 %v1405, %v1475
      %v1477 = vmul.f32 %v1404, %v1475
      %v1478 = vmul.f32 %v1403, %v1475
      %v1479 = vmul.f32 %v1402, %v1475
      %v1480 = vmul.f32 %v1401, %v1475
      %v1481 = vmul.f32 %v1400, %v1475
      %v1482 = vmul.f32 %v1399, %v1475
      %v1483 = vmul.f32 %v1398, %v1475
      %v1484 = vadd.f32 %v1467, %v1476
      %v1485 = vadd.f32 %v1468, %v1477
      %v1486 = vadd.f32 %v1469, %v1478
      %v1487 = vadd.f32 %v1470, %v1479
      %v1488 = vadd.f32 %v1471, %v1480
      %v1489 = vadd.f32 %v1472, %v1481
      %v1490 = vadd.f32 %v1473, %v1482
      %v1491 = vadd.f32 %v1474, %v1483
      %v1492 = vperm.slane %v499, 1
      %v1493 = vmul.f32 %v1403, %v1492
      %v1494 = vmul.f32 %v1402, %v1492
      %v1495 = vmul.f32 %v1401, %v1492
      %v1496 = vmul.f32 %v1400, %v1492
      %v1497 = vmul.f32 %v1399, %v1492
      %v1498 = vmul.f32 %v1398, %v1492
      %v1499 = vmul.f32 %v1397, %v1492
      %v1500 = vmul.f32 %v1396, %v1492
      %v1501 = vadd.f32 %v1484, %v1493
      %v1502 = vadd.f32 %v1485, %v1494
      %v1503 = vadd.f32 %v1486, %v1495
      %v1504 = vadd.f32 %v1487, %v1496
      %v1505 = vadd.f32 %v1488, %v1497
      %v1506 = vadd.f32 %v1489, %v1498
      %v1507 = vadd.f32 %v1490, %v1499
      %v1508 = vadd.f32 %v1491, %v1500
      %v1509 = vperm.slane %v500, 0
      %v1510 = vmul.f32 %v1401, %v1509
      %v1511 = vmul.f32 %v1400, %v1509
      %v1512 = vmul.f32 %v1399, %v1509
      %v1513 = vmul.f32 %v1398, %v1509
      %v1514 = vmul.f32 %v1397, %v1509
      %v1515 = vmul.f32 %v1396, %v1509
      %v1516 = vmul.f32 %v1395, %v1509
      %v1517 = vmul.f32 %v1414, %v1509
      %v1518 = vadd.f32 %v1501, %v1510
      %v1519 = vadd.f32 %v1502, %v1511
      %v1520 = vadd.f32 %v1503, %v1512
      %v1521 = vadd.f32 %v1504, %v1513
      %v1522 = vadd.f32 %v1505, %v1514
      %v1523 = vadd.f32 %v1506, %v1515
      %v1524 = vadd.f32 %v1507, %v1516
      %v1525 = vadd.f32 %v1508, %v1517
      %v1526 = vadd.f32 %v647, %v799
      %v1527 = vadd.f32 %v648, %v800
      %v1528 = vadd.f32 %v649, %v801
      %v1529 = vadd.f32 %v650, %v802
      %v1530 = vadd.f32 %v651, %v803
      %v1531 = vadd.f32 %v652, %v804
      %v1532 = vadd.f32 %v653, %v805
      %v1533 = vadd.f32 %v654, %v806
      %v1534 = vadd.f32 %v951, %v1062
      %v1535 = vadd.f32 %v952, %v1063
      %v1536 = vadd.f32 %v953, %v1064
      %v1537 = vadd.f32 %v954, %v1065
      %v1538 = vadd.f32 %v955, %v1066
      %v1539 = vadd.f32 %v956, %v1067
      %v1540 = vadd.f32 %v957, %v1068
      %v1541 = vadd.f32 %v958, %v1069
      %v1542 = vadd.f32 %v1214, %v1366
      %v1543 = vadd.f32 %v1215, %v1367
      %v1544 = vadd.f32 %v1216, %v1368
      %v1545 = vadd.f32 %v1217, %v1369
      %v1546 = vadd.f32 %v1218, %v1370
      %v1547 = vadd.f32 %v1219, %v1371
      %v1548 = vadd.f32 %v1220, %v1372
      %v1549 = vadd.f32 %v1221, %v1373
      %v1550 = vadd.f32 %v1526, %v1534
      %v1551 = vadd.f32 %v1527, %v1535
      %v1552 = vadd.f32 %v1528, %v1536
      %v1553 = vadd.f32 %v1529, %v1537
      %v1554 = vadd.f32 %v1530, %v1538
      %v1555 = vadd.f32 %v1531, %v1539
      %v1556 = vadd.f32 %v1532, %v1540
      %v1557 = vadd.f32 %v1533, %v1541
      %v1558 = vadd.f32 %v1542, %v1518
      %v1559 = vadd.f32 %v1543, %v1519
      %v1560 = vadd.f32 %v1544, %v1520
      %v1561 = vadd.f32 %v1545, %v1521
      %v1562 = vadd.f32 %v1546, %v1522
      %v1563 = vadd.f32 %v1547, %v1523
      %v1564 = vadd.f32 %v1548, %v1524
      %v1565 = vadd.f32 %v1549, %v1525
      %v1566 = vadd.f32 %v1550, %v1558
      %v1567 = vadd.f32 %v1551, %v1559
      %v1568 = vadd.f32 %v1552, %v1560
      %v1569 = vadd.f32 %v1553, %v1561
      %v1570 = vadd.f32 %v1554, %v1562
      %v1571 = vadd.f32 %v1555, %v1563
      %v1572 = vadd.f32 %v1556, %v1564
      %v1573 = vadd.f32 %v1557, %v1565
      %v1574 = vld [vmem:[%s3] sm:$0x1]
      %v1576 = vperm.slane %v1574, 0
      %v1578 = vadd.f32 %v1566, %v1576
      %v1579 = vadd.f32 %v1567, %v1576
      %v1580 = vadd.f32 %v1568, %v1576
      %v1581 = vadd.f32 %v1569, %v1576
      %v1582 = vadd.f32 %v1570, %v1576
      %v1583 = vadd.f32 %v1571, %v1576
      %v1584 = vadd.f32 %v1572, %v1576
      %v1585 = vadd.f32 %v1573, %v1576
      %v1586 = vld [vmem:[%s4] sm:$0x1]
      %v1587 = vld [vmem:[%s5] sm:$0x1]
      %vm1588 = vcmask 64512
      %v1589 = vsel %vm1588, %v1578, 0.0
      %1590 = vadd.xlane.f32.xlu0 %v1589
      %v1591 = vpop.xlane.xlu0 %1590
      %v1592 = vsel %vm1588, %v1579, 0.0
      %1593 = vadd.xlane.f32.xlu0 %v1592
      %v1594 = vpop.xlane.xlu0 %1593
      %v1595 = vsel %vm1588, %v1580, 0.0
      %1596 = vadd.xlane.f32.xlu0 %v1595
      %v1597 = vpop.xlane.xlu0 %1596
      %v1598 = vsel %vm1588, %v1581, 0.0
      %1599 = vadd.xlane.f32.xlu0 %v1598
      %v1600 = vpop.xlane.xlu0 %1599
      %v1601 = vsel %vm1588, %v1582, 0.0
      %1602 = vadd.xlane.f32.xlu0 %v1601
      %v1603 = vpop.xlane.xlu0 %1602
      %v1604 = vsel %vm1588, %v1583, 0.0
      %1605 = vadd.xlane.f32.xlu0 %v1604
      %v1606 = vpop.xlane.xlu0 %1605
      %v1607 = vsel %vm1588, %v1584, 0.0
      %1608 = vadd.xlane.f32.xlu0 %v1607
      %v1609 = vpop.xlane.xlu0 %1608
      %v1610 = vsel %vm1588, %v1585, 0.0
      %1611 = vadd.xlane.f32.xlu0 %v1610
      %v1612 = vpop.xlane.xlu0 %1611
      %v1613 = vrcp.pop 8.0
      %v1614 = vmul.f32 8.0, %v1613
      %v1615 = vsub.f32 1.0, %v1614
      %v1616 = vmul.f32 %v1613, %v1615
      %v1617 = vadd.f32 %v1613, %v1616
      %vm1618 = vweird.f32 %v1613
      %v1619 = vsel %vm1618, %v1613, %v1617
      %v1620 = vmul.f32 %v1591, %v1619
      %v1621 = vmul.f32 %v1594, %v1619
      %v1622 = vmul.f32 %v1597, %v1619
      %v1623 = vmul.f32 %v1600, %v1619
      %v1624 = vmul.f32 %v1603, %v1619
      %v1625 = vmul.f32 %v1606, %v1619
      %v1626 = vmul.f32 %v1609, %v1619
      %v1627 = vmul.f32 %v1612, %v1619
      %v1628 = vmul.f32 %v1578, %v1578
      %v1629 = vmul.f32 %v1579, %v1579
      %v1630 = vmul.f32 %v1580, %v1580
      %v1631 = vmul.f32 %v1581, %v1581
      %v1632 = vmul.f32 %v1582, %v1582
      %v1633 = vmul.f32 %v1583, %v1583
      %v1634 = vmul.f32 %v1584, %v1584
      %v1635 = vmul.f32 %v1585, %v1585
      %v1636 = vsel %vm1588, %v1628, 0.0
      %1637 = vadd.xlane.f32.xlu0 %v1636
      %v1638 = vpop.xlane.xlu0 %1637
      %v1639 = vsel %vm1588, %v1629, 0.0
      %1640 = vadd.xlane.f32.xlu0 %v1639
      %v1641 = vpop.xlane.xlu0 %1640
      %v1642 = vsel %vm1588, %v1630, 0.0
      %1643 = vadd.xlane.f32.xlu0 %v1642
      %v1644 = vpop.xlane.xlu0 %1643
      %v1645 = vsel %vm1588, %v1631, 0.0
      %1646 = vadd.xlane.f32.xlu0 %v1645
      %v1647 = vpop.xlane.xlu0 %1646
      %v1648 = vsel %vm1588, %v1632, 0.0
      %1649 = vadd.xlane.f32.xlu0 %v1648
      %v1650 = vpop.xlane.xlu0 %1649
      %v1651 = vsel %vm1588, %v1633, 0.0
      %1652 = vadd.xlane.f32.xlu0 %v1651
      %v1653 = vpop.xlane.xlu0 %1652
      %v1654 = vsel %vm1588, %v1634, 0.0
      %1655 = vadd.xlane.f32.xlu0 %v1654
      %v1656 = vpop.xlane.xlu0 %1655
      %v1657 = vsel %vm1588, %v1635, 0.0
      %1658 = vadd.xlane.f32.xlu0 %v1657
      %v1659 = vpop.xlane.xlu0 %1658
      %v1660 = vmul.f32 %v1638, %v1619
      %v1661 = vmul.f32 %v1641, %v1619
      %v1662 = vmul.f32 %v1644, %v1619
      %v1663 = vmul.f32 %v1647, %v1619
      %v1664 = vmul.f32 %v1650, %v1619
      %v1665 = vmul.f32 %v1653, %v1619
      %v1666 = vmul.f32 %v1656, %v1619
      %v1667 = vmul.f32 %v1659, %v1619
      %v1668 = vmul.f32 %v1620, %v1620
      %v1669 = vmul.f32 %v1621, %v1621
      %v1670 = vmul.f32 %v1622, %v1622
      %v1671 = vmul.f32 %v1623, %v1623
      %v1672 = vmul.f32 %v1624, %v1624
      %v1673 = vmul.f32 %v1625, %v1625
      %v1674 = vmul.f32 %v1626, %v1626
      %v1675 = vmul.f32 %v1627, %v1627
      %v1676 = vsub.f32 %v1660, %v1668
      %v1677 = vsub.f32 %v1661, %v1669
      %v1678 = vsub.f32 %v1662, %v1670
      %v1679 = vsub.f32 %v1663, %v1671
      %v1680 = vsub.f32 %v1664, %v1672
      %v1681 = vsub.f32 %v1665, %v1673
      %v1682 = vsub.f32 %v1666, %v1674
      %v1683 = vsub.f32 %v1667, %v1675
      %v1684 = vmax.f32 %v1676, 0.0
      %v1685 = vmax.f32 %v1677, 0.0
      %v1686 = vmax.f32 %v1678, 0.0
      %v1687 = vmax.f32 %v1679, 0.0
      %v1688 = vmax.f32 %v1680, 0.0
      %v1689 = vmax.f32 %v1681, 0.0
      %v1690 = vmax.f32 %v1682, 0.0
      %v1691 = vmax.f32 %v1683, 0.0
      %v1692 = vsub.f32 %v1578, %v1620
      %v1693 = vsub.f32 %v1579, %v1621
      %v1694 = vsub.f32 %v1580, %v1622
      %v1695 = vsub.f32 %v1581, %v1623
      %v1696 = vsub.f32 %v1582, %v1624
      %v1697 = vsub.f32 %v1583, %v1625
      %v1698 = vsub.f32 %v1584, %v1626
      %v1699 = vsub.f32 %v1585, %v1627
      %v1700 = vadd.f32 %v1684, 1e-06
      %v1701 = vadd.f32 %v1685, 1e-06
      %v1702 = vadd.f32 %v1686, 1e-06
      %v1703 = vadd.f32 %v1687, 1e-06
      %v1704 = vadd.f32 %v1688, 1e-06
      %v1705 = vadd.f32 %v1689, 1e-06
      %v1706 = vadd.f32 %v1690, 1e-06
      %v1707 = vadd.f32 %v1691, 1e-06
      %v1708 = vrsqrt.pop %v1700
      %v1709 = vmul.f32 %v1708, %v1700
      %v1710 = vmul.f32 %v1709, %v1708
      %v1711 = vmul.f32 0.5, %v1710
      %v1712 = vsub.f32 1.5, %v1711
      %v1713 = vmul.f32 %v1708, %v1712
      %vm1714 = vweird.f32 %v1700
      %vm1715 = vweird.f32 %v1708
      %vm1716 = vmor %vm1714, %vm1715
      %v1717 = vsel %vm1716, %v1708, %v1713
      %v1718 = vrsqrt.pop %v1701
      %v1719 = vmul.f32 %v1718, %v1701
      %v1720 = vmul.f32 %v1719, %v1718
      %v1721 = vmul.f32 0.5, %v1720
      %v1722 = vsub.f32 1.5, %v1721
      %v1723 = vmul.f32 %v1718, %v1722
      %vm1724 = vweird.f32 %v1701
      %vm1725 = vweird.f32 %v1718
      %vm1726 = vmor %vm1724, %vm1725
      %v1727 = vsel %vm1726, %v1718, %v1723
      %v1728 = vrsqrt.pop %v1702
      %v1729 = vmul.f32 %v1728, %v1702
      %v1730 = vmul.f32 %v1729, %v1728
      %v1731 = vmul.f32 0.5, %v1730
      %v1732 = vsub.f32 1.5, %v1731
      %v1733 = vmul.f32 %v1728, %v1732
      %vm1734 = vweird.f32 %v1702
      %vm1735 = vweird.f32 %v1728
      %vm1736 = vmor %vm1734, %vm1735
      %v1737 = vsel %vm1736, %v1728, %v1733
      %v1738 = vrsqrt.pop %v1703
      %v1739 = vmul.f32 %v1738, %v1703
      %v1740 = vmul.f32 %v1739, %v1738
      %v1741 = vmul.f32 0.5, %v1740
      %v1742 = vsub.f32 1.5, %v1741
      %v1743 = vmul.f32 %v1738, %v1742
      %vm1744 = vweird.f32 %v1703
      %vm1745 = vweird.f32 %v1738
      %vm1746 = vmor %vm1744, %vm1745
      %v1747 = vsel %vm1746, %v1738, %v1743
      %v1748 = vrsqrt.pop %v1704
      %v1749 = vmul.f32 %v1748, %v1704
      %v1750 = vmul.f32 %v1749, %v1748
      %v1751 = vmul.f32 0.5, %v1750
      %v1752 = vsub.f32 1.5, %v1751
      %v1753 = vmul.f32 %v1748, %v1752
      %vm1754 = vweird.f32 %v1704
      %vm1755 = vweird.f32 %v1748
      %vm1756 = vmor %vm1754, %vm1755
      %v1757 = vsel %vm1756, %v1748, %v1753
      %v1758 = vrsqrt.pop %v1705
      %v1759 = vmul.f32 %v1758, %v1705
      %v1760 = vmul.f32 %v1759, %v1758
      %v1761 = vmul.f32 0.5, %v1760
      %v1762 = vsub.f32 1.5, %v1761
      %v1763 = vmul.f32 %v1758, %v1762
      %vm1764 = vweird.f32 %v1705
      %vm1765 = vweird.f32 %v1758
      %vm1766 = vmor %vm1764, %vm1765
      %v1767 = vsel %vm1766, %v1758, %v1763
      %v1768 = vrsqrt.pop %v1706
      %v1769 = vmul.f32 %v1768, %v1706
      %v1770 = vmul.f32 %v1769, %v1768
      %v1771 = vmul.f32 0.5, %v1770
      %v1772 = vsub.f32 1.5, %v1771
      %v1773 = vmul.f32 %v1768, %v1772
      %vm1774 = vweird.f32 %v1706
      %vm1775 = vweird.f32 %v1768
      %vm1776 = vmor %vm1774, %vm1775
      %v1777 = vsel %vm1776, %v1768, %v1773
      %v1778 = vrsqrt.pop %v1707
      %v1779 = vmul.f32 %v1778, %v1707
      %v1780 = vmul.f32 %v1779, %v1778
      %v1781 = vmul.f32 0.5, %v1780
      %v1782 = vsub.f32 1.5, %v1781
      %v1783 = vmul.f32 %v1778, %v1782
      %vm1784 = vweird.f32 %v1707
      %vm1785 = vweird.f32 %v1778
      %vm1786 = vmor %vm1784, %vm1785
      %v1787 = vsel %vm1786, %v1778, %v1783
      %v1788 = vmul.f32 %v1692, %v1717
      %v1789 = vmul.f32 %v1693, %v1727
      %v1790 = vmul.f32 %v1694, %v1737
      %v1791 = vmul.f32 %v1695, %v1747
      %v1792 = vmul.f32 %v1696, %v1757
      %v1793 = vmul.f32 %v1697, %v1767
      %v1794 = vmul.f32 %v1698, %v1777
      %v1795 = vmul.f32 %v1699, %v1787
      %v1797 = vperm.slane %v1586, 0
      %v1799 = vmul.f32 %v1788, %v1797
      %v1800 = vmul.f32 %v1789, %v1797
      %v1801 = vmul.f32 %v1790, %v1797
      %v1802 = vmul.f32 %v1791, %v1797
      %v1803 = vmul.f32 %v1792, %v1797
      %v1804 = vmul.f32 %v1793, %v1797
      %v1805 = vmul.f32 %v1794, %v1797
      %v1806 = vmul.f32 %v1795, %v1797
      %v1808 = vperm.slane %v1587, 0
      %v1810 = vadd.f32 %v1799, %v1808
      %v1811 = vadd.f32 %v1800, %v1808
      %v1812 = vadd.f32 %v1801, %v1808
      %v1813 = vadd.f32 %v1802, %v1808
      %v1814 = vadd.f32 %v1803, %v1808
      %v1815 = vadd.f32 %v1804, %v1808
      %v1816 = vadd.f32 %v1805, %v1808
      %v1817 = vadd.f32 %v1806, %v1808
      %v1818 = vpack.c.bf16 %v1811, %v1810
      %v1819 = vpack.c.bf16 %v1813, %v1812
      %v1820 = vpack.c.bf16 %v1815, %v1814
      %v1821 = vpack.c.bf16 %v1817, %v1816
      %v1822 = vld [vmem:[%s6] sm:$0xf]
      %v1823 = vld [vmem:[%s7] sm:$0x1]
      %v1825 = vperm.slane %v1823, 0
      %v1828 = vsel %vm1588, %v1818, 0
      %v1831 = vsel %vm1588, %v1819, 0
      %v1834 = vsel %vm1588, %v1820, 0
      %v1837 = vsel %vm1588, %v1821, 0
      %vm1839 = vcmask 1043456
      %v1841 = vsel %vm1839, %v1822, 0
      %1843 = vmatpush.bf16.msra.mxu0 0
      %1844 = vmatpush.bf16.msra.mxu0 0
      %1845 = vmatpush.bf16.msra.mxu0 0
      %1846 = vmatpush.bf16.msra.mxu0 0
      %1847 = vmatpush.bf16.msra.mxu0 0
      %1848 = vmatpush.bf16.msra.mxu0 0
      %1849 = vmatpush.bf16.msra.mxu0 0
      %1850 = vmatpush.bf16.msra.mxu0 %v1841
      %1851 = vmatmul.bf16.gmra.mxu0 %v1828
      %v1852 = vpop.f32.mrf.mxu0
      %v1853 = vadd.f32 %v1825, %v1852
      %v1854 = vpop.f32.mrf.mxu0
      %v1855 = vadd.f32 %v1825, %v1854
      %1856 = vmatmul.bf16.gmra.mxu0 %v1831
      %v1857 = vpop.f32.mrf.mxu0
      %v1858 = vadd.f32 %v1825, %v1857
      %v1859 = vpop.f32.mrf.mxu0
      %v1860 = vadd.f32 %v1825, %v1859
      %1861 = vmatmul.bf16.gmra.mxu0 %v1834
      %v1862 = vpop.f32.mrf.mxu0
      %v1863 = vadd.f32 %v1825, %v1862
      %v1864 = vpop.f32.mrf.mxu0
      %v1865 = vadd.f32 %v1825, %v1864
      %1866 = vmatmul.bf16.gmra.mxu0 %v1837
      %v1867 = vpop.f32.mrf.mxu0
      %v1868 = vadd.f32 %v1825, %v1867
      %v1869 = vpop.f32.mrf.mxu0
      %v1870 = vadd.f32 %v1825, %v1869
      %1871 = vdwg.mxu0
      %v1872 = vmul.f32 %v1853, %v1853
      %v1873 = vmul.f32 %v1855, %v1855
      %v1874 = vmul.f32 %v1858, %v1858
      %v1875 = vmul.f32 %v1860, %v1860
      %v1876 = vmul.f32 %v1863, %v1863
      %v1877 = vmul.f32 %v1865, %v1865
      %v1878 = vmul.f32 %v1868, %v1868
      %v1879 = vmul.f32 %v1870, %v1870
      %v1880 = vmul.f32 %v1853, %v1872
      %v1881 = vmul.f32 %v1855, %v1873
      %v1882 = vmul.f32 %v1858, %v1874
      %v1883 = vmul.f32 %v1860, %v1875
      %v1884 = vmul.f32 %v1863, %v1876
      %v1885 = vmul.f32 %v1865, %v1877
      %v1886 = vmul.f32 %v1868, %v1878
      %v1887 = vmul.f32 %v1870, %v1879
      %v1888 = vmul.f32 %v1880, 0.044715
      %v1889 = vmul.f32 %v1881, 0.044715
      %v1890 = vmul.f32 %v1882, 0.044715
      %v1891 = vmul.f32 %v1883, 0.044715
      %v1892 = vmul.f32 %v1884, 0.044715
      %v1893 = vmul.f32 %v1885, 0.044715
      %v1894 = vmul.f32 %v1886, 0.044715
      %v1895 = vmul.f32 %v1887, 0.044715
      %v1896 = vadd.f32 %v1853, %v1888
      %v1897 = vadd.f32 %v1855, %v1889
      %v1898 = vadd.f32 %v1858, %v1890
      %v1899 = vadd.f32 %v1860, %v1891
      %v1900 = vadd.f32 %v1863, %v1892
      %v1901 = vadd.f32 %v1865, %v1893
      %v1902 = vadd.f32 %v1868, %v1894
      %v1903 = vadd.f32 %v1870, %v1895
      %v1904 = vmul.f32 %v1896, 0.7978846
      %v1905 = vmul.f32 %v1897, 0.7978846
      %v1906 = vmul.f32 %v1898, 0.7978846
      %v1907 = vmul.f32 %v1899, 0.7978846
      %v1908 = vmul.f32 %v1900, 0.7978846
      %v1909 = vmul.f32 %v1901, 0.7978846
      %v1910 = vmul.f32 %v1902, 0.7978846
      %v1911 = vmul.f32 %v1903, 0.7978846
      %v1912 = vtanh.pop %v1904
      %v1913 = vtanh.pop %v1905
      %v1914 = vtanh.pop %v1906
      %v1915 = vtanh.pop %v1907
      %v1916 = vtanh.pop %v1908
      %v1917 = vtanh.pop %v1909
      %v1918 = vtanh.pop %v1910
      %v1919 = vtanh.pop %v1911
      %v1920 = vadd.f32 %v1912, 1.0
      %v1921 = vadd.f32 %v1913, 1.0
      %v1922 = vadd.f32 %v1914, 1.0
      %v1923 = vadd.f32 %v1915, 1.0
      %v1924 = vadd.f32 %v1916, 1.0
      %v1925 = vadd.f32 %v1917, 1.0
      %v1926 = vadd.f32 %v1918, 1.0
      %v1927 = vadd.f32 %v1919, 1.0
      %v1928 = vmul.f32 %v1920, 0.5
      %v1929 = vmul.f32 %v1921, 0.5
      %v1930 = vmul.f32 %v1922, 0.5
      %v1931 = vmul.f32 %v1923, 0.5
      %v1932 = vmul.f32 %v1924, 0.5
      %v1933 = vmul.f32 %v1925, 0.5
      %v1934 = vmul.f32 %v1926, 0.5
      %v1935 = vmul.f32 %v1927, 0.5
      %v1936 = vmul.f32 %v1853, %v1928
      %v1937 = vmul.f32 %v1855, %v1929
      %v1938 = vmul.f32 %v1858, %v1930
      %v1939 = vmul.f32 %v1860, %v1931
      %v1940 = vmul.f32 %v1863, %v1932
      %v1941 = vmul.f32 %v1865, %v1933
      %v1942 = vmul.f32 %v1868, %v1934
      %v1943 = vmul.f32 %v1870, %v1935
      %v1944 = vpack.c.bf16 %v1937, %v1936
      %v1945 = vpack.c.bf16 %v1939, %v1938
      %v1946 = vpack.c.bf16 %v1941, %v1940
      %v1947 = vpack.c.bf16 %v1943, %v1942
      %v1948 = vld [vmem:[%s8] sm:$0xf]
      %v1949 = vld [vmem:[%s8 + $0x4] sm:$0xf]
      %v1950 = vld [vmem:[%s8 + $0x8] sm:$0xf]
      %v1951 = vld [vmem:[%s8 + $0xc] sm:$0xf]
      %v1952 = vld [vmem:[%s9] sm:$0x1]
      %v1954 = vperm.slane %v1952, 0
      %v1960 = vunpack.c.l.b16 %v1948
      %v1961 = vunpack.c.l.b16 %v1949
      %v1962 = vunpack.c.l.b16 %v1950
      %v1963 = vunpack.c.l.b16 %v1951
      %v1964 = vpack.c.b16 %v1961, %v1960
      %v1965 = vpack.c.b16 %v1963, %v1962
      %vm1968 = vcmask 261120
      %v1970 = vsel %vm1968, %v1944, 0
      %v1973 = vsel %vm1968, %v1945, 0
      %v1976 = vsel %vm1968, %v1946, 0
      %v1979 = vsel %vm1968, %v1947, 0
      %1981 = vmatpush.bf16.msra.mxu0 0
      %1982 = vmatpush.bf16.msra.mxu0 0
      %1983 = vmatpush.bf16.msra.mxu0 0
      %1984 = vmatpush.bf16.msra.mxu0 0
      %1985 = vmatpush.bf16.msra.mxu0 0
      %1986 = vmatpush.bf16.msra.mxu0 0
      %1987 = vmatpush.bf16.msra.mxu0 %v1965
      %1988 = vmatpush.bf16.msra.mxu0 %v1964
      %1989 = vmatmul.bf16.gmra.mxu0 %v1970
      %v1990 = vpop.f32.mrf.mxu0
      %v1991 = vadd.f32 %v1954, %v1990
      %v1992 = vpop.f32.mrf.mxu0
      %v1993 = vadd.f32 %v1954, %v1992
      %1994 = vmatmul.bf16.gmra.mxu0 %v1973
      %v1995 = vpop.f32.mrf.mxu0
      %v1996 = vadd.f32 %v1954, %v1995
      %v1997 = vpop.f32.mrf.mxu0
      %v1998 = vadd.f32 %v1954, %v1997
      %1999 = vmatmul.bf16.gmra.mxu0 %v1976
      %v2000 = vpop.f32.mrf.mxu0
      %v2001 = vadd.f32 %v1954, %v2000
      %v2002 = vpop.f32.mrf.mxu0
      %v2003 = vadd.f32 %v1954, %v2002
      %2004 = vmatmul.bf16.gmra.mxu0 %v1979
      %v2005 = vpop.f32.mrf.mxu0
      %v2006 = vadd.f32 %v1954, %v2005
      %v2007 = vpop.f32.mrf.mxu0
      %v2008 = vadd.f32 %v1954, %v2007
      %2009 = vdwg.mxu0
      %v2010 = vld [vmem:[%s10] sm:$0x1]
      %v2012 = vperm.slane %v2010, 0
      %v2014 = vmul.f32 %v1991, %v2012
      %v2015 = vmul.f32 %v1993, %v2012
      %v2016 = vmul.f32 %v1996, %v2012
      %v2017 = vmul.f32 %v1998, %v2012
      %v2018 = vmul.f32 %v2001, %v2012
      %v2019 = vmul.f32 %v2003, %v2012
      %v2020 = vmul.f32 %v2006, %v2012
      %v2021 = vmul.f32 %v2008, %v2012
      %v2022 = vadd.f32 %v2014, %v480
      %v2023 = vadd.f32 %v2015, %v481
      %v2024 = vadd.f32 %v2016, %v482
      %v2025 = vadd.f32 %v2017, %v483
      %v2026 = vadd.f32 %v2018, %v484
      %v2027 = vadd.f32 %v2019, %v485
      %v2028 = vadd.f32 %v2020, %v486
      %v2029 = vadd.f32 %v2021, %v487
      %v2030 = vld [vmem:[%s11] sm:$0x1]
      %v2031 = vld [vmem:[%s12] sm:$0x1]
      %v2032 = vsel %vm1588, %v2022, 0.0
      %2033 = vadd.xlane.f32.xlu0 %v2032
      %v2034 = vpop.xlane.xlu0 %2033
      %v2035 = vsel %vm1588, %v2023, 0.0
      %2036 = vadd.xlane.f32.xlu0 %v2035
      %v2037 = vpop.xlane.xlu0 %2036
      %v2038 = vsel %vm1588, %v2024, 0.0
      %2039 = vadd.xlane.f32.xlu0 %v2038
      %v2040 = vpop.xlane.xlu0 %2039
      %v2041 = vsel %vm1588, %v2025, 0.0
      %2042 = vadd.xlane.f32.xlu0 %v2041
      %v2043 = vpop.xlane.xlu0 %2042
      %v2044 = vsel %vm1588, %v2026, 0.0
      %2045 = vadd.xlane.f32.xlu0 %v2044
      %v2046 = vpop.xlane.xlu0 %2045
      %v2047 = vsel %vm1588, %v2027, 0.0
      %2048 = vadd.xlane.f32.xlu0 %v2047
      %v2049 = vpop.xlane.xlu0 %2048
      %v2050 = vsel %vm1588, %v2028, 0.0
      %2051 = vadd.xlane.f32.xlu0 %v2050
      %v2052 = vpop.xlane.xlu0 %2051
      %v2053 = vsel %vm1588, %v2029, 0.0
      %2054 = vadd.xlane.f32.xlu0 %v2053
      %v2055 = vpop.xlane.xlu0 %2054
      %v2056 = vmul.f32 %v2034, %v1619
      %v2057 = vmul.f32 %v2037, %v1619
      %v2058 = vmul.f32 %v2040, %v1619
      %v2059 = vmul.f32 %v2043, %v1619
      %v2060 = vmul.f32 %v2046, %v1619
      %v2061 = vmul.f32 %v2049, %v1619
      %v2062 = vmul.f32 %v2052, %v1619
      %v2063 = vmul.f32 %v2055, %v1619
      %v2064 = vmul.f32 %v2022, %v2022
      %v2065 = vmul.f32 %v2023, %v2023
      %v2066 = vmul.f32 %v2024, %v2024
      %v2067 = vmul.f32 %v2025, %v2025
      %v2068 = vmul.f32 %v2026, %v2026
      %v2069 = vmul.f32 %v2027, %v2027
      %v2070 = vmul.f32 %v2028, %v2028
      %v2071 = vmul.f32 %v2029, %v2029
      %v2072 = vsel %vm1588, %v2064, 0.0
      %2073 = vadd.xlane.f32.xlu0 %v2072
      %v2074 = vpop.xlane.xlu0 %2073
      %v2075 = vsel %vm1588, %v2065, 0.0
      %2076 = vadd.xlane.f32.xlu0 %v2075
      %v2077 = vpop.xlane.xlu0 %2076
      %v2078 = vsel %vm1588, %v2066, 0.0
      %2079 = vadd.xlane.f32.xlu0 %v2078
      %v2080 = vpop.xlane.xlu0 %2079
      %v2081 = vsel %vm1588, %v2067, 0.0
      %2082 = vadd.xlane.f32.xlu0 %v2081
      %v2083 = vpop.xlane.xlu0 %2082
      %v2084 = vsel %vm1588, %v2068, 0.0
      %2085 = vadd.xlane.f32.xlu0 %v2084
      %v2086 = vpop.xlane.xlu0 %2085
      %v2087 = vsel %vm1588, %v2069, 0.0
      %2088 = vadd.xlane.f32.xlu0 %v2087
      %v2089 = vpop.xlane.xlu0 %2088
      %v2090 = vsel %vm1588, %v2070, 0.0
      %2091 = vadd.xlane.f32.xlu0 %v2090
      %v2092 = vpop.xlane.xlu0 %2091
      %v2093 = vsel %vm1588, %v2071, 0.0
      %2094 = vadd.xlane.f32.xlu0 %v2093
      %v2095 = vpop.xlane.xlu0 %2094
      %v2096 = vmul.f32 %v2074, %v1619
      %v2097 = vmul.f32 %v2077, %v1619
      %v2098 = vmul.f32 %v2080, %v1619
      %v2099 = vmul.f32 %v2083, %v1619
      %v2100 = vmul.f32 %v2086, %v1619
      %v2101 = vmul.f32 %v2089, %v1619
      %v2102 = vmul.f32 %v2092, %v1619
      %v2103 = vmul.f32 %v2095, %v1619
      %v2104 = vmul.f32 %v2056, %v2056
      %v2105 = vmul.f32 %v2057, %v2057
      %v2106 = vmul.f32 %v2058, %v2058
      %v2107 = vmul.f32 %v2059, %v2059
      %v2108 = vmul.f32 %v2060, %v2060
      %v2109 = vmul.f32 %v2061, %v2061
      %v2110 = vmul.f32 %v2062, %v2062
      %v2111 = vmul.f32 %v2063, %v2063
      %v2112 = vsub.f32 %v2096, %v2104
      %v2113 = vsub.f32 %v2097, %v2105
      %v2114 = vsub.f32 %v2098, %v2106
      %v2115 = vsub.f32 %v2099, %v2107
      %v2116 = vsub.f32 %v2100, %v2108
      %v2117 = vsub.f32 %v2101, %v2109
      %v2118 = vsub.f32 %v2102, %v2110
      %v2119 = vsub.f32 %v2103, %v2111
      %v2120 = vmax.f32 %v2112, 0.0
      %v2121 = vmax.f32 %v2113, 0.0
      %v2122 = vmax.f32 %v2114, 0.0
      %v2123 = vmax.f32 %v2115, 0.0
      %v2124 = vmax.f32 %v2116, 0.0
      %v2125 = vmax.f32 %v2117, 0.0
      %v2126 = vmax.f32 %v2118, 0.0
      %v2127 = vmax.f32 %v2119, 0.0
      %v2128 = vsub.f32 %v2022, %v2056
      %v2129 = vsub.f32 %v2023, %v2057
      %v2130 = vsub.f32 %v2024, %v2058
      %v2131 = vsub.f32 %v2025, %v2059
      %v2132 = vsub.f32 %v2026, %v2060
      %v2133 = vsub.f32 %v2027, %v2061
      %v2134 = vsub.f32 %v2028, %v2062
      %v2135 = vsub.f32 %v2029, %v2063
      %v2136 = vadd.f32 %v2120, 1e-06
      %v2137 = vadd.f32 %v2121, 1e-06
      %v2138 = vadd.f32 %v2122, 1e-06
      %v2139 = vadd.f32 %v2123, 1e-06
      %v2140 = vadd.f32 %v2124, 1e-06
      %v2141 = vadd.f32 %v2125, 1e-06
      %v2142 = vadd.f32 %v2126, 1e-06
      %v2143 = vadd.f32 %v2127, 1e-06
      %v2144 = vrsqrt.pop %v2136
      %v2145 = vmul.f32 %v2144, %v2136
      %v2146 = vmul.f32 %v2145, %v2144
      %v2147 = vmul.f32 0.5, %v2146
      %v2148 = vsub.f32 1.5, %v2147
      %v2149 = vmul.f32 %v2144, %v2148
      %vm2150 = vweird.f32 %v2136
      %vm2151 = vweird.f32 %v2144
      %vm2152 = vmor %vm2150, %vm2151
      %v2153 = vsel %vm2152, %v2144, %v2149
      %v2154 = vrsqrt.pop %v2137
      %v2155 = vmul.f32 %v2154, %v2137
      %v2156 = vmul.f32 %v2155, %v2154
      %v2157 = vmul.f32 0.5, %v2156
      %v2158 = vsub.f32 1.5, %v2157
      %v2159 = vmul.f32 %v2154, %v2158
      %vm2160 = vweird.f32 %v2137
      %vm2161 = vweird.f32 %v2154
      %vm2162 = vmor %vm2160, %vm2161
      %v2163 = vsel %vm2162, %v2154, %v2159
      %v2164 = vrsqrt.pop %v2138
      %v2165 = vmul.f32 %v2164, %v2138
      %v2166 = vmul.f32 %v2165, %v2164
      %v2167 = vmul.f32 0.5, %v2166
      %v2168 = vsub.f32 1.5, %v2167
      %v2169 = vmul.f32 %v2164, %v2168
      %vm2170 = vweird.f32 %v2138
      %vm2171 = vweird.f32 %v2164
      %vm2172 = vmor %vm2170, %vm2171
      %v2173 = vsel %vm2172, %v2164, %v2169
      %v2174 = vrsqrt.pop %v2139
      %v2175 = vmul.f32 %v2174, %v2139
      %v2176 = vmul.f32 %v2175, %v2174
      %v2177 = vmul.f32 0.5, %v2176
      %v2178 = vsub.f32 1.5, %v2177
      %v2179 = vmul.f32 %v2174, %v2178
      %vm2180 = vweird.f32 %v2139
      %vm2181 = vweird.f32 %v2174
      %vm2182 = vmor %vm2180, %vm2181
      %v2183 = vsel %vm2182, %v2174, %v2179
      %v2184 = vrsqrt.pop %v2140
      %v2185 = vmul.f32 %v2184, %v2140
      %v2186 = vmul.f32 %v2185, %v2184
      %v2187 = vmul.f32 0.5, %v2186
      %v2188 = vsub.f32 1.5, %v2187
      %v2189 = vmul.f32 %v2184, %v2188
      %vm2190 = vweird.f32 %v2140
      %vm2191 = vweird.f32 %v2184
      %vm2192 = vmor %vm2190, %vm2191
      %v2193 = vsel %vm2192, %v2184, %v2189
      %v2194 = vrsqrt.pop %v2141
      %v2195 = vmul.f32 %v2194, %v2141
      %v2196 = vmul.f32 %v2195, %v2194
      %v2197 = vmul.f32 0.5, %v2196
      %v2198 = vsub.f32 1.5, %v2197
      %v2199 = vmul.f32 %v2194, %v2198
      %vm2200 = vweird.f32 %v2141
      %vm2201 = vweird.f32 %v2194
      %vm2202 = vmor %vm2200, %vm2201
      %v2203 = vsel %vm2202, %v2194, %v2199
      %v2204 = vrsqrt.pop %v2142
      %v2205 = vmul.f32 %v2204, %v2142
      %v2206 = vmul.f32 %v2205, %v2204
      %v2207 = vmul.f32 0.5, %v2206
      %v2208 = vsub.f32 1.5, %v2207
      %v2209 = vmul.f32 %v2204, %v2208
      %vm2210 = vweird.f32 %v2142
      %vm2211 = vweird.f32 %v2204
      %vm2212 = vmor %vm2210, %vm2211
      %v2213 = vsel %vm2212, %v2204, %v2209
      %v2214 = vrsqrt.pop %v2143
      %v2215 = vmul.f32 %v2214, %v2143
      %v2216 = vmul.f32 %v2215, %v2214
      %v2217 = vmul.f32 0.5, %v2216
      %v2218 = vsub.f32 1.5, %v2217
      %v2219 = vmul.f32 %v2214, %v2218
      %vm2220 = vweird.f32 %v2143
      %vm2221 = vweird.f32 %v2214
      %vm2222 = vmor %vm2220, %vm2221
      %v2223 = vsel %vm2222, %v2214, %v2219
      %v2224 = vmul.f32 %v2128, %v2153
      %v2225 = vmul.f32 %v2129, %v2163
      %v2226 = vmul.f32 %v2130, %v2173
      %v2227 = vmul.f32 %v2131, %v2183
      %v2228 = vmul.f32 %v2132, %v2193
      %v2229 = vmul.f32 %v2133, %v2203
      %v2230 = vmul.f32 %v2134, %v2213
      %v2231 = vmul.f32 %v2135, %v2223
      %v2233 = vperm.slane %v2030, 0
      %v2235 = vmul.f32 %v2224, %v2233
      %v2236 = vmul.f32 %v2225, %v2233
      %v2237 = vmul.f32 %v2226, %v2233
      %v2238 = vmul.f32 %v2227, %v2233
      %v2239 = vmul.f32 %v2228, %v2233
      %v2240 = vmul.f32 %v2229, %v2233
      %v2241 = vmul.f32 %v2230, %v2233
      %v2242 = vmul.f32 %v2231, %v2233
      %v2244 = vperm.slane %v2031, 0
      %v2246 = vadd.f32 %v2235, %v2244
      %v2247 = vadd.f32 %v2236, %v2244
      %v2248 = vadd.f32 %v2237, %v2244
      %v2249 = vadd.f32 %v2238, %v2244
      %v2250 = vadd.f32 %v2239, %v2244
      %v2251 = vadd.f32 %v2240, %v2244
      %v2252 = vadd.f32 %v2241, %v2244
      %v2253 = vadd.f32 %v2242, %v2244
      %v2254 = vld [vmem:[%s1] sm:$0xff]
      %v2255 = vld [vmem:[%s1 + $0x8] sm:$0xff]
      %v2256 = vld [vmem:[%s1 + $0x10] sm:$0xff]
      %v2257 = vld [vmem:[%s1 + $0x18] sm:$0xff]
      %v2258 = vld [vmem:[%s1 + $0x20] sm:$0xff]
      %v2259 = vld [vmem:[%s1 + $0x28] sm:$0xff]
      %v2260 = vld [vmem:[%s1 + $0x30] sm:$0xff]
      %v2261 = vld [vmem:[%s1 + $0x38] sm:$0xff]
      %2263 = vset.pattern.permute.xlu0 0
      %2264 = vperm.xlu0 %2263, %v2254
      %v2265 = vpop.permute.xlu0 %2264
      %2268 = vset.pattern.permute.xlu0 0
      %2269 = vperm.xlu0 %2268, %v2255
      %v2270 = vpop.permute.xlu0 %2269
      %2273 = vset.pattern.permute.xlu0 0
      %2274 = vperm.xlu0 %2273, %v2256
      %v2275 = vpop.permute.xlu0 %2274
      %2278 = vset.pattern.permute.xlu0 0
      %2279 = vperm.xlu0 %2278, %v2257
      %v2280 = vpop.permute.xlu0 %2279
      %2283 = vset.pattern.permute.xlu0 0
      %2284 = vperm.xlu0 %2283, %v2258
      %v2285 = vpop.permute.xlu0 %2284
      %2288 = vset.pattern.permute.xlu0 0
      %2289 = vperm.xlu0 %2288, %v2259
      %v2290 = vpop.permute.xlu0 %2289
      %2293 = vset.pattern.permute.xlu0 0
      %2294 = vperm.xlu0 %2293, %v2260
      %v2295 = vpop.permute.xlu0 %2294
      %2298 = vset.pattern.permute.xlu0 0
      %2299 = vperm.xlu0 %2298, %v2261
      %v2300 = vpop.permute.xlu0 %2299
      %v2302 = vmul.f32 %v2246, %v2265
      %v2303 = vmul.f32 %v2247, %v2270
      %v2304 = vmul.f32 %v2248, %v2275
      %v2305 = vmul.f32 %v2249, %v2280
      %v2306 = vmul.f32 %v2250, %v2285
      %v2307 = vmul.f32 %v2251, %v2290
      %v2308 = vmul.f32 %v2252, %v2295
      %v2309 = vmul.f32 %v2253, %v2300
      %2310 = vst.msk [vmem:[%s466] sm:$0xff] %vm1588, %v2302
      %2311 = vst.msk [vmem:[%s466 + $0x8] sm:$0xff] %vm1588, %v2303
      %2312 = vst.msk [vmem:[%s466 + $0x10] sm:$0xff] %vm1588, %v2304
      %2313 = vst.msk [vmem:[%s466 + $0x18] sm:$0xff] %vm1588, %v2305
      %2314 = vst.msk [vmem:[%s466 + $0x20] sm:$0xff] %vm1588, %v2306
      %2315 = vst.msk [vmem:[%s466 + $0x28] sm:$0xff] %vm1588, %v2307
      %2316 = vst.msk [vmem:[%s466 + $0x30] sm:$0xff] %vm1588, %v2308
      %2317 = vst.msk [vmem:[%s466 + $0x38] sm:$0xff] %vm1588, %v2309
      %s2318 = sadd.s32 %s29, 1
      %s2319 = smul.u32 8, %s2318
      %p2320 = scmp.lt.s32.totalorder %s28, 1
      %s2321 = scalar_select %p2320, %s28, 1
      %p2322 = scmp.lt.s32.totalorder %s2319, 23
      %s2323 = scalar_select %p2322, %s2319, 23
      %s2324 = smul.addr %s2321, 24
      %s2325 = sadd.s32 %s2323, %s2324
      %s2326 = smul.addr %s2325, 8
      %s2327 = scalar_lea.vmem %s13, %s2326
      // Predicated region
      $region73: #{convnext_forward.6} parent=71 // pred_check
        %p2328 = pneg %p336
      $region74: #{convnext_forward.6} parent=71 // pred_check_branch
        %2330 = sbr.rel (%p2328) target = $region76
      $region75: #{convnext_forward.6} parent=71 // pred_region
        %s2331 = sadd.s32 %s29, 1
        %s2332 = smul.u32 8, %s2331
      $region76: #{convnext_forward.6} parent=71 // pred_fallthru
        _
    $region72: #{convnext_forward.6} parent=5 // pred_fallthru
      _
    %p2333 = scmp.le.s32.totalorder 2, %s19
    // Predicated region
    $region77: #{convnext_forward.6} parent=5 // pred_check
      %p2334 = pneg %p2333
    $region78: #{convnext_forward.6} parent=5 // pred_check_branch
      %2336 = sbr.rel (%p2334) target = $region80
    $region79: #{convnext_forward.6} parent=5 // pred_region
      %s2337 = ssub.s32 %s19, 2
      // Predicated region
      $region81: #{convnext_forward.6} parent=79 // pred_check
        %p2338 = pneg %p342
      $region82: #{convnext_forward.6} parent=79 // pred_check_branch
        %2340 = sbr.rel (%p2338) target = $region84
      $region83: #{convnext_forward.6} parent=79 // pred_region
        %s2341 = sadd.s32 %s31, 1
        %s2342 = smul.u32 8, %s2341
        %p2343 = scmp.lt.s32.totalorder %s30, 1
        %s2344 = scalar_select %p2343, %s30, 1
        %p2345 = scmp.lt.s32.totalorder %s2342, 23
        %s2346 = scalar_select %p2345, %s2342, 23
        %s2347 = smul.addr %s2344, 24
        %s2348 = sadd.s32 %s2346, %s2347
        %s2349 = smul.addr %s2348, 8
        %s2350 = scalar_lea.vmem %s13, %s2349
      $region84: #{convnext_forward.6} parent=79 // pred_fallthru
        _
    $region80: #{convnext_forward.6} parent=5 // pred_fallthru
      _
  $region6: #{convnext_forward.6} parent=0 // loop_footer
    %s23 = sadd.s32 1, %s19
  $region7: #{convnext_forward.6} parent=0 // loop_footer_branch
    %18 = sbr.rel target = $region3
  $region8: #{convnext_forward.6} parent=0 // loop_exit
    _

</llo_original>
